<compile_context>
chip_gen: v5e
topology: v5e:2x2
jax: 0.10.0
libtpu: 0.0.40
codegen_flags: <defaults>
</compile_context>

<pallas_src>
import functools

import jax
import jax.numpy as jnp
from jax.experimental import pallas as pl
from jax.experimental.pallas import tpu as pltpu


def _mha_kernel(q_in_ref, k_in_ref, v_in_ref,
                wq_ref, bq_ref, wk_ref, bk_ref, wv_ref, bv_ref,
                wo_ref, bo_ref, gamma_ref, beta_ref,
                o_ref,
                qh_ref, kh_ref, vh_ref, m_ref, l_ref, acc_ref,
                *, num_heads, eps):
    ki = pl.program_id(2)
    nk = pl.num_programs(2)

    # ---- once per (batch, q-tile): reset online-softmax state, project the Q tile ----
    @pl.when(ki == 0)
    def _init():
        m_ref[...] = jnp.full(m_ref.shape, -jnp.inf, jnp.float32)
        l_ref[...] = jnp.zeros(l_ref.shape, jnp.float32)
        acc_ref[...] = jnp.zeros(acc_ref.shape, jnp.float32)
        x_q = q_in_ref[0].astype(jnp.bfloat16)                        # (TQ, D)
        for h in range(num_heads):                                    # scratch writes bound liveness
            qh = jnp.dot(x_q, wq_ref[h],
                         preferred_element_type=jnp.float32) + bq_ref[h]
            qh_ref[h] = qh.astype(jnp.bfloat16)                       # scale pre-folded into wq/bq

    # ---- project this K/V tile into head-major scratch (bf16 MXU operands) -----------
    x_k = k_in_ref[0].astype(jnp.bfloat16)                            # (TK, D)
    x_v = v_in_ref[0].astype(jnp.bfloat16)
    for h in range(num_heads):
        kh = jnp.dot(x_k, wk_ref[h], preferred_element_type=jnp.float32) + bk_ref[h]
        vh = jnp.dot(x_v, wv_ref[h], preferred_element_type=jnp.float32) + bv_ref[h]
        kh_ref[h] = kh.astype(jnp.bfloat16)
        vh_ref[h] = vh.astype(jnp.bfloat16)

    # ---- batched-over-heads attention with online softmax (f32 statistics) -----------
    s = jnp.einsum('hqd,hkd->hqk', qh_ref[...], kh_ref[...],
                   preferred_element_type=jnp.float32)                # (H, TQ, TK) f32
    m_prev = m_ref[...]
    m_new = jnp.maximum(m_prev, jnp.max(s, axis=-1, keepdims=True))   # (H, TQ, 1)
    alpha = jnp.exp(m_prev - m_new)
    p = jnp.exp(s - m_new)
    l_ref[...] = alpha * l_ref[...] + jnp.sum(p, axis=-1, keepdims=True)
    acc_ref[...] = alpha * acc_ref[...] + jnp.einsum(
        'hqk,hkd->hqd', p.astype(jnp.bfloat16), vh_ref[...],
        preferred_element_type=jnp.float32)
    m_ref[...] = m_new

    # ---- once per (batch, q-tile): output projection + residual + LayerNorm ----------
    @pl.when(ki == nk - 1)
    def _finalize():
        bo = bo_ref[...]                                              # (1, D) f32, hoisted reads
        gamma = gamma_ref[...]
        beta = beta_ref[...]
        out = bo
        for h in range(num_heads):
            inv_l = pl.reciprocal(l_ref[h], approx=True)              # (TQ, 1)
            a_h = (acc_ref[h] * inv_l).astype(jnp.bfloat16)           # (TQ, hd)
            out = out + jnp.dot(a_h, wo_ref[h],
                                preferred_element_type=jnp.float32)   # (TQ, D)
        res = q_in_ref[0].astype(jnp.float32) + out                   # residual in f32
        mean = jnp.mean(res, axis=-1, keepdims=True)
        cent = res - mean
        var = jnp.mean(cent * cent, axis=-1, keepdims=True)
        y = cent * jax.lax.rsqrt(var + eps)
        o_ref[0] = (y * gamma + beta).astype(o_ref.dtype)


def multi_head_hierarchical_attention(query, key, value, params, *, num_heads,
                                      tq=256, tk=256, eps=1e-5):
    """query/key/value: [B, N, D].  Returns LayerNorm(query + MHA(query, key, value))."""
    B, N, D = query.shape
    assert D % num_heads == 0, "dim must be divisible by num_heads"
    hd = D // num_heads
    scaling = float(hd) ** -0.5

    tq = min(tq, N)
    tk = min(tk, N)
    assert N % tq == 0 and N % tk == 0, "sequence length must divide the tile sizes"
    n_q, n_k = N // tq, N // tk

    f32, bf16 = jnp.float32, jnp.bfloat16

    # PyTorch Linear weight is (out, in): y = x @ W.T + b.  Split the *output* features of
    # Q/K/V into heads (head-major weights -> per-head 2-D matmuls, no in-kernel relayout),
    # and the *input* features of the output projection.  Fold 1/sqrt(hd) into the Q proj.
    def split_qkv(w, b, scale=1.0):
        w_h = (w.T * scale).reshape(D, num_heads, hd).transpose(1, 0, 2)   # (H, D, hd)
        b_h = (b * scale).reshape(num_heads, 1, hd)                        # (H, 1, hd)
        return w_h.astype(bf16), b_h.astype(f32)

    wq_h, bq_h = split_qkv(params["wq"], params["bq"], scaling)
    wk_h, bk_h = split_qkv(params["wk"], params["bk"])
    wv_h, bv_h = split_qkv(params["wv"], params["bv"])
    wo_h = params["wo"].T.reshape(num_heads, hd, D).astype(bf16)           # (H, hd, D)
    bo = params["bo"].reshape(1, D).astype(f32)
    gamma = params["gamma"].reshape(1, D).astype(f32)
    beta = params["beta"].reshape(1, D).astype(f32)

    def const_spec(a):
        nd = a.ndim
        return pl.BlockSpec(a.shape, lambda b, qi, ki: (0,) * nd)

    q_spec = pl.BlockSpec((1, tq, D), lambda b, qi, ki: (b, qi, 0))
    kv_spec = pl.BlockSpec((1, tk, D), lambda b, qi, ki: (b, ki, 0))
    out_spec = pl.BlockSpec((1, tq, D), lambda b, qi, ki: (b, qi, 0))

    kernel = functools.partial(_mha_kernel, num_heads=num_heads, eps=eps)

    # Explicit VMEM budget (inputs/outputs are double-buffered by the pipeline); keep the
    # requested limit under v7x's 64 MiB physical VMEM.
    vmem_est = (
        2 * tq * D * 4 + 2 * 2 * tk * D * 4 + 2 * tq * D * 4            # q / k / v / out tiles
        + 2 * 4 * D * D * 2 + 8 * D * 4                                 # weights + biases
        + (tq + 2 * tk) * D * 2 + tq * D * 4 + 2 * num_heads * tq * 4   # head + softmax scratch
        + 4 * num_heads * tq * tk * 4                                   # scores/probs temporaries
    )
    vmem_limit = int(min(max(vmem_est + (8 << 20), 32 << 20), 64 << 20))

    flops = 2 * B * N * D * D * (2 + 2 * n_q) + 4 * B * N * N * D
    cost = pl.CostEstimate(
        flops=int(flops),
        transcendentals=int(B * num_heads * N * N),
        bytes_accessed=int(4 * B * N * D * 4 + 4 * D * D * 2),
    )

    return pl.pallas_call(
        kernel,
        out_shape=jax.ShapeDtypeStruct((B, N, D), query.dtype),
        grid_spec=pltpu.PrefetchScalarGridSpec(
            num_scalar_prefetch=0,
            grid=(B, n_q, n_k),
            in_specs=[
                q_spec, kv_spec, kv_spec,
                const_spec(wq_h), const_spec(bq_h),
                const_spec(wk_h), const_spec(bk_h),
                const_spec(wv_h), const_spec(bv_h),
                const_spec(wo_h), const_spec(bo),
                const_spec(gamma), const_spec(beta),
            ],
            out_specs=out_spec,
            scratch_shapes=[
                pltpu.VMEM((num_heads, tq, hd), bf16),   # Q heads (per q-tile)
                pltpu.VMEM((num_heads, tk, hd), bf16),   # K heads (per kv-tile)
                pltpu.VMEM((num_heads, tk, hd), bf16),   # V heads (per kv-tile)
                pltpu.VMEM((num_heads, tq, 1), f32),     # running max
                pltpu.VMEM((num_heads, tq, 1), f32),     # running sum
                pltpu.VMEM((num_heads, tq, hd), f32),    # output accumulator
            ],
        ),
        compiler_params=pltpu.CompilerParams(
            dimension_semantics=("parallel", "parallel", "arbitrary"),
            vmem_limit_bytes=vmem_limit,
        ),
        cost_estimate=cost,
    )(query, key, value,
      wq_h, bq_h, wk_h, bk_h, wv_h, bv_h, wo_h, bo, gamma, beta)


def _reference(query, key, value, params, *, num_heads):
    """Pure-JAX f32 reference mirroring the PyTorch forward (dropout=identity, mask=None)."""
    B, N, D = query.shape
    hd = D // num_heads
    scaling = float(hd) ** -0.5

    def proj(x, w, b):
        return x @ w.T + b

    q = proj(query, params["wq"], params["bq"]).reshape(B, N, num_heads, hd).transpose(0, 2, 1, 3)
    k = proj(key, params["wk"], params["bk"]).reshape(B, N, num_heads, hd).transpose(0, 2, 1, 3)
    v = proj(value, params["wv"], params["bv"]).reshape(B, N, num_heads, hd).transpose(0, 2, 1, 3)
    scores = jnp.einsum("bhnd,bhmd->bhnm", q, k) * scaling
    attn = jax.nn.softmax(scores, axis=-1)
    out = jnp.einsum("bhnm,bhmd->bhnd", attn, v)
    out = out.transpose(0, 2, 1, 3).reshape(B, N, D)
    out = proj(out, params["wo"], params["bo"])
    res = query + out
    mean = jnp.mean(res, axis=-1, keepdims=True)
    var = jnp.mean((res - mean) ** 2, axis=-1, keepdims=True)
    normed = (res - mean) / jnp.sqrt(var + 1e-5)
    return normed * params["gamma"] + params["beta"]


if __name__ == "__main__":
    B, N, D = 2, 16, 32
    num_heads = 8

    key0 = jax.random.PRNGKey(0)
    keys = jax.random.split(key0, 11)

    # Deterministic synthetic parameters (nn.Linear(dim, dim) / nn.LayerNorm(dim) shapes).
    params = {
        "wq": jax.random.normal(keys[0], (D, D), jnp.float32) * 0.1,
        "bq": jax.random.normal(keys[1], (D,), jnp.float32) * 0.1,
        "wk": jax.random.normal(keys[2], (D, D), jnp.float32) * 0.1,
        "bk": jax.random.normal(keys[3], (D,), jnp.float32) * 0.1,
        "wv": jax.random.normal(keys[4], (D, D), jnp.float32) * 0.1,
        "bv": jax.random.normal(keys[5], (D,), jnp.float32) * 0.1,
        "wo": jax.random.normal(keys[6], (D, D), jnp.float32) * 0.1,
        "bo": jax.random.normal(keys[7], (D,), jnp.float32) * 0.1,
        "gamma": jnp.ones((D,), jnp.float32),
        "beta": jnp.zeros((D,), jnp.float32),
    }

    query = jax.random.normal(keys[8], (B, N, D), jnp.float32)
    key_in = jax.random.normal(keys[9], (B, N, D), jnp.float32)
    value = jax.random.normal(keys[10], (B, N, D), jnp.float32)

    # Small tiles so the multi-step online-softmax path (init / accumulate / finalize) is
    # actually exercised even at N=16.
    out = multi_head_hierarchical_attention(query, key_in, value, params,
                                            num_heads=num_heads, tq=8, tk=8)
    out = jax.block_until_ready(out)

    ref = _reference(query, key_in, value, params, num_heads=num_heads)
    assert out.shape == (B, N, D)
    # Tolerance reflects bf16 MXU operands + approximate softmax reciprocal vs. an f32 reference.
    assert jnp.allclose(out, ref, atol=5e-2, rtol=5e-2), "mismatch vs pure-JAX reference"

    print("KERNEL_OK")
</pallas_src>

<mosaic_0001>
module attributes {stable_mosaic.version = 11 : i64} {
  func.func @_mha_kernel(%arg0: i32, %arg1: i32, %arg2: i32, %arg3: memref<1x8x32xf32, #tpu.memory_space<vmem>>, %arg4: memref<1x8x32xf32, #tpu.memory_space<vmem>>, %arg5: memref<1x8x32xf32, #tpu.memory_space<vmem>>, %arg6: memref<8x32x4xbf16, #tpu.memory_space<vmem>>, %arg7: memref<8x1x4xf32, #tpu.memory_space<vmem>>, %arg8: memref<8x32x4xbf16, #tpu.memory_space<vmem>>, %arg9: memref<8x1x4xf32, #tpu.memory_space<vmem>>, %arg10: memref<8x32x4xbf16, #tpu.memory_space<vmem>>, %arg11: memref<8x1x4xf32, #tpu.memory_space<vmem>>, %arg12: memref<8x4x32xbf16, #tpu.memory_space<vmem>>, %arg13: memref<1x32xf32, #tpu.memory_space<vmem>>, %arg14: memref<1x32xf32, #tpu.memory_space<vmem>>, %arg15: memref<1x32xf32, #tpu.memory_space<vmem>>, %arg16: memref<1x8x32xf32, #tpu.memory_space<vmem>>, %arg17: memref<8x8x4xbf16, #tpu.memory_space<vmem>>, %arg18: memref<8x8x4xbf16, #tpu.memory_space<vmem>>, %arg19: memref<8x8x4xbf16, #tpu.memory_space<vmem>>, %arg20: memref<8x8x1xf32, #tpu.memory_space<vmem>>, %arg21: memref<8x8x1xf32, #tpu.memory_space<vmem>>, %arg22: memref<8x8x4xf32, #tpu.memory_space<vmem>>) attributes {dimension_semantics = [#tpu.dimension_semantics<parallel>, #tpu.dimension_semantics<parallel>, #tpu.dimension_semantics<arbitrary>], iteration_bounds = array<i64: 2, 2, 2>, scalar_prefetch = 0 : i64, scratch_operands = 6 : i64, tpu.core_type = #tpu.core_type<tc>, window_params = [{transform_indices = @transform_0, window_bounds = array<i64: 1, 8, 32>}, {transform_indices = @transform_1, window_bounds = array<i64: 1, 8, 32>}, {transform_indices = @transform_2, window_bounds = array<i64: 1, 8, 32>}, {pipeline_mode = #tpu.pipeline_mode<synchronous>, transform_indices = @transform_3, window_bounds = array<i64: 8, 32, 4>}, {pipeline_mode = #tpu.pipeline_mode<synchronous>, transform_indices = @transform_4, window_bounds = array<i64: 8, 1, 4>}, {pipeline_mode = #tpu.pipeline_mode<synchronous>, transform_indices = @transform_5, window_bounds = array<i64: 8, 32, 4>}, {pipeline_mode = #tpu.pipeline_mode<synchronous>, transform_indices = @transform_6, window_bounds = array<i64: 8, 1, 4>}, {pipeline_mode = #tpu.pipeline_mode<synchronous>, transform_indices = @transform_7, window_bounds = array<i64: 8, 32, 4>}, {pipeline_mode = #tpu.pipeline_mode<synchronous>, transform_indices = @transform_8, window_bounds = array<i64: 8, 1, 4>}, {pipeline_mode = #tpu.pipeline_mode<synchronous>, transform_indices = @transform_9, window_bounds = array<i64: 8, 4, 32>}, {pipeline_mode = #tpu.pipeline_mode<synchronous>, transform_indices = @transform_10, window_bounds = array<i64: 1, 32>}, {pipeline_mode = #tpu.pipeline_mode<synchronous>, transform_indices = @transform_11, window_bounds = array<i64: 1, 32>}, {pipeline_mode = #tpu.pipeline_mode<synchronous>, transform_indices = @transform_12, window_bounds = array<i64: 1, 32>}, {transform_indices = @transform_13, window_bounds = array<i64: 1, 8, 32>}]} {
    %c0_i32 = arith.constant 0 : i32
    %0 = arith.cmpi eq, %arg2, %c0_i32 : i32
    %1 = arith.extui %0 : i1 to i32
    %c0_i32_0 = arith.constant 0 : i32
    %2 = arith.cmpi ne, %1, %c0_i32_0 : i32
    scf.if %2 {
      %cst_190 = arith.constant 0xFF800000 : f32
      %215 = vector.broadcast %cst_190 : f32 to vector<8x8x1xf32>
      %c0_191 = arith.constant 0 : index
      %c0_192 = arith.constant 0 : index
      %c0_193 = arith.constant 0 : index
      %216 = vector.load %arg20[%c0_191, %c0_192, %c0_193] : memref<8x8x1xf32, #tpu.memory_space<vmem>>, vector<8x8x1xf32>
      tpu.vector_store %arg20[%c0_191, %c0_192, %c0_193], %215 {strides = array<i32>} : memref<8x8x1xf32, #tpu.memory_space<vmem>>, vector<8x8x1xf32>,
      %cst_194 = arith.constant 0.000000e+00 : f32
      %217 = vector.broadcast %cst_194 : f32 to vector<8x8x1xf32>
      %c0_195 = arith.constant 0 : index
      %c0_196 = arith.constant 0 : index
      %c0_197 = arith.constant 0 : index
      %218 = vector.load %arg21[%c0_195, %c0_196, %c0_197] : memref<8x8x1xf32, #tpu.memory_space<vmem>>, vector<8x8x1xf32>
      tpu.vector_store %arg21[%c0_195, %c0_196, %c0_197], %217 {strides = array<i32>} : memref<8x8x1xf32, #tpu.memory_space<vmem>>, vector<8x8x1xf32>,
      %cst_198 = arith.constant 0.000000e+00 : f32
      %219 = vector.broadcast %cst_198 : f32 to vector<8x8x4xf32>
      %c0_199 = arith.constant 0 : index
      %c0_200 = arith.constant 0 : index
      %c0_201 = arith.constant 0 : index
      %220 = vector.load %arg22[%c0_199, %c0_200, %c0_201] : memref<8x8x4xf32, #tpu.memory_space<vmem>>, vector<8x8x4xf32>
      tpu.vector_store %arg22[%c0_199, %c0_200, %c0_201], %219 {strides = array<i32>} : memref<8x8x4xf32, #tpu.memory_space<vmem>>, vector<8x8x4xf32>,
      %c0_202 = arith.constant 0 : index
      %c0_203 = arith.constant 0 : index
      %c0_204 = arith.constant 0 : index
      %221 = vector.load %arg3[%c0_202, %c0_203, %c0_204] : memref<1x8x32xf32, #tpu.memory_space<vmem>>, vector<1x8x32xf32>
      %222 = vector.shape_cast %221 : vector<1x8x32xf32> to vector<8x32xf32>
      %223 = arith.truncf %222 : vector<8x32xf32> to vector<8x32xbf16>
      %c0_205 = arith.constant 0 : index
      %c0_206 = arith.constant 0 : index
      %c0_207 = arith.constant 0 : index
      %224 = vector.load %arg6[%c0_205, %c0_206, %c0_207] : memref<8x32x4xbf16, #tpu.memory_space<vmem>>, vector<1x32x4xbf16>
      %225 = vector.shape_cast %224 : vector<1x32x4xbf16> to vector<32x4xbf16>
      %cst_208 = arith.constant dense<0.000000e+00> : vector<8x4xf32>
      %226 = tpu.matmul %223, %225, %cst_208 {dimension_numbers = #tpu.dot_dimension_numbers<[1], [0], [0], [1], [0, 0, 1, 1], [], []>} : vector<8x32xbf16>, vector<32x4xbf16>, vector<8x4xf32> -> vector<8x4xf32>
      %c0_209 = arith.constant 0 : index
      %c0_210 = arith.constant 0 : index
      %c0_211 = arith.constant 0 : index
      %227 = vector.load %arg7[%c0_209, %c0_210, %c0_211] : memref<8x1x4xf32, #tpu.memory_space<vmem>>, vector<1x1x4xf32>
      %228 = vector.shape_cast %227 : vector<1x1x4xf32> to vector<1x4xf32>
      %229 = vector.broadcast %228 : vector<1x4xf32> to vector<8x4xf32>
      %230 = arith.addf %226, %229 : vector<8x4xf32>
      %231 = arith.truncf %230 : vector<8x4xf32> to vector<8x4xbf16>
      %c0_212 = arith.constant 0 : index
      %c0_213 = arith.constant 0 : index
      %c0_214 = arith.constant 0 : index
      %232 = vector.load %arg17[%c0_212, %c0_213, %c0_214] : memref<8x8x4xbf16, #tpu.memory_space<vmem>>, vector<1x8x4xbf16>
      %233 = vector.shape_cast %232 : vector<1x8x4xbf16> to vector<8x4xbf16>
      %234 = vector.shape_cast %231 : vector<8x4xbf16> to vector<1x8x4xbf16>
      tpu.vector_store %arg17[%c0_212, %c0_213, %c0_214], %234 {strides = array<i32>} : memref<8x8x4xbf16, #tpu.memory_space<vmem>>, vector<1x8x4xbf16>,
      %c1_215 = arith.constant 1 : index
      %c0_216 = arith.constant 0 : index
      %c0_217 = arith.constant 0 : index
      %235 = vector.load %arg6[%c1_215, %c0_216, %c0_217] : memref<8x32x4xbf16, #tpu.memory_space<vmem>>, vector<1x32x4xbf16>
      %236 = vector.shape_cast %235 : vector<1x32x4xbf16> to vector<32x4xbf16>
      %cst_218 = arith.constant dense<0.000000e+00> : vector<8x4xf32>
      %237 = tpu.matmul %223, %236, %cst_218 {dimension_numbers = #tpu.dot_dimension_numbers<[1], [0], [0], [1], [0, 0, 1, 1], [], []>} : vector<8x32xbf16>, vector<32x4xbf16>, vector<8x4xf32> -> vector<8x4xf32>
      %c1_219 = arith.constant 1 : index
      %c0_220 = arith.constant 0 : index
      %c0_221 = arith.constant 0 : index
      %238 = vector.load %arg7[%c1_219, %c0_220, %c0_221] : memref<8x1x4xf32, #tpu.memory_space<vmem>>, vector<1x1x4xf32>
      %239 = vector.shape_cast %238 : vector<1x1x4xf32> to vector<1x4xf32>
      %240 = vector.broadcast %239 : vector<1x4xf32> to vector<8x4xf32>
      %241 = arith.addf %237, %240 : vector<8x4xf32>
      %242 = arith.truncf %241 : vector<8x4xf32> to vector<8x4xbf16>
      %c1_222 = arith.constant 1 : index
      %c0_223 = arith.constant 0 : index
      %c0_224 = arith.constant 0 : index
      %243 = vector.load %arg17[%c1_222, %c0_223, %c0_224] : memref<8x8x4xbf16, #tpu.memory_space<vmem>>, vector<1x8x4xbf16>
      %244 = vector.shape_cast %243 : vector<1x8x4xbf16> to vector<8x4xbf16>
      %245 = vector.shape_cast %242 : vector<8x4xbf16> to vector<1x8x4xbf16>
      tpu.vector_store %arg17[%c1_222, %c0_223, %c0_224], %245 {strides = array<i32>} : memref<8x8x4xbf16, #tpu.memory_space<vmem>>, vector<1x8x4xbf16>,
      %c2_225 = arith.constant 2 : index
      %c0_226 = arith.constant 0 : index
      %c0_227 = arith.constant 0 : index
      %246 = vector.load %arg6[%c2_225, %c0_226, %c0_227] : memref<8x32x4xbf16, #tpu.memory_space<vmem>>, vector<1x32x4xbf16>
      %247 = vector.shape_cast %246 : vector<1x32x4xbf16> to vector<32x4xbf16>
      %cst_228 = arith.constant dense<0.000000e+00> : vector<8x4xf32>
      %248 = tpu.matmul %223, %247, %cst_228 {dimension_numbers = #tpu.dot_dimension_numbers<[1], [0], [0], [1], [0, 0, 1, 1], [], []>} : vector<8x32xbf16>, vector<32x4xbf16>, vector<8x4xf32> -> vector<8x4xf32>
      %c2_229 = arith.constant 2 : index
      %c0_230 = arith.constant 0 : index
      %c0_231 = arith.constant 0 : index
      %249 = vector.load %arg7[%c2_229, %c0_230, %c0_231] : memref<8x1x4xf32, #tpu.memory_space<vmem>>, vector<1x1x4xf32>
      %250 = vector.shape_cast %249 : vector<1x1x4xf32> to vector<1x4xf32>
      %251 = vector.broadcast %250 : vector<1x4xf32> to vector<8x4xf32>
      %252 = arith.addf %248, %251 : vector<8x4xf32>
      %253 = arith.truncf %252 : vector<8x4xf32> to vector<8x4xbf16>
      %c2_232 = arith.constant 2 : index
      %c0_233 = arith.constant 0 : index
      %c0_234 = arith.constant 0 : index
      %254 = vector.load %arg17[%c2_232, %c0_233, %c0_234] : memref<8x8x4xbf16, #tpu.memory_space<vmem>>, vector<1x8x4xbf16>
      %255 = vector.shape_cast %254 : vector<1x8x4xbf16> to vector<8x4xbf16>
      %256 = vector.shape_cast %253 : vector<8x4xbf16> to vector<1x8x4xbf16>
      tpu.vector_store %arg17[%c2_232, %c0_233, %c0_234], %256 {strides = array<i32>} : memref<8x8x4xbf16, #tpu.memory_space<vmem>>, vector<1x8x4xbf16>,
      %c3_235 = arith.constant 3 : index
      %c0_236 = arith.constant 0 : index
      %c0_237 = arith.constant 0 : index
      %257 = vector.load %arg6[%c3_235, %c0_236, %c0_237] : memref<8x32x4xbf16, #tpu.memory_space<vmem>>, vector<1x32x4xbf16>
      %258 = vector.shape_cast %257 : vector<1x32x4xbf16> to vector<32x4xbf16>
      %cst_238 = arith.constant dense<0.000000e+00> : vector<8x4xf32>
      %259 = tpu.matmul %223, %258, %cst_238 {dimension_numbers = #tpu.dot_dimension_numbers<[1], [0], [0], [1], [0, 0, 1, 1], [], []>} : vector<8x32xbf16>, vector<32x4xbf16>, vector<8x4xf32> -> vector<8x4xf32>
      %c3_239 = arith.constant 3 : index
      %c0_240 = arith.constant 0 : index
      %c0_241 = arith.constant 0 : index
      %260 = vector.load %arg7[%c3_239, %c0_240, %c0_241] : memref<8x1x4xf32, #tpu.memory_space<vmem>>, vector<1x1x4xf32>
      %261 = vector.shape_cast %260 : vector<1x1x4xf32> to vector<1x4xf32>
      %262 = vector.broadcast %261 : vector<1x4xf32> to vector<8x4xf32>
      %263 = arith.addf %259, %262 : vector<8x4xf32>
      %264 = arith.truncf %263 : vector<8x4xf32> to vector<8x4xbf16>
      %c3_242 = arith.constant 3 : index
      %c0_243 = arith.constant 0 : index
      %c0_244 = arith.constant 0 : index
      %265 = vector.load %arg17[%c3_242, %c0_243, %c0_244] : memref<8x8x4xbf16, #tpu.memory_space<vmem>>, vector<1x8x4xbf16>
      %266 = vector.shape_cast %265 : vector<1x8x4xbf16> to vector<8x4xbf16>
      %267 = vector.shape_cast %264 : vector<8x4xbf16> to vector<1x8x4xbf16>
      tpu.vector_store %arg17[%c3_242, %c0_243, %c0_244], %267 {strides = array<i32>} : memref<8x8x4xbf16, #tpu.memory_space<vmem>>, vector<1x8x4xbf16>,
      %c4_245 = arith.constant 4 : index
      %c0_246 = arith.constant 0 : index
      %c0_247 = arith.constant 0 : index
      %268 = vector.load %arg6[%c4_245, %c0_246, %c0_247] : memref<8x32x4xbf16, #tpu.memory_space<vmem>>, vector<1x32x4xbf16>
      %269 = vector.shape_cast %268 : vector<1x32x4xbf16> to vector<32x4xbf16>
      %cst_248 = arith.constant dense<0.000000e+00> : vector<8x4xf32>
      %270 = tpu.matmul %223, %269, %cst_248 {dimension_numbers = #tpu.dot_dimension_numbers<[1], [0], [0], [1], [0, 0, 1, 1], [], []>} : vector<8x32xbf16>, vector<32x4xbf16>, vector<8x4xf32> -> vector<8x4xf32>
      %c4_249 = arith.constant 4 : index
      %c0_250 = arith.constant 0 : index
      %c0_251 = arith.constant 0 : index
      %271 = vector.load %arg7[%c4_249, %c0_250, %c0_251] : memref<8x1x4xf32, #tpu.memory_space<vmem>>, vector<1x1x4xf32>
      %272 = vector.shape_cast %271 : vector<1x1x4xf32> to vector<1x4xf32>
      %273 = vector.broadcast %272 : vector<1x4xf32> to vector<8x4xf32>
      %274 = arith.addf %270, %273 : vector<8x4xf32>
      %275 = arith.truncf %274 : vector<8x4xf32> to vector<8x4xbf16>
      %c4_252 = arith.constant 4 : index
      %c0_253 = arith.constant 0 : index
      %c0_254 = arith.constant 0 : index
      %276 = vector.load %arg17[%c4_252, %c0_253, %c0_254] : memref<8x8x4xbf16, #tpu.memory_space<vmem>>, vector<1x8x4xbf16>
      %277 = vector.shape_cast %276 : vector<1x8x4xbf16> to vector<8x4xbf16>
      %278 = vector.shape_cast %275 : vector<8x4xbf16> to vector<1x8x4xbf16>
      tpu.vector_store %arg17[%c4_252, %c0_253, %c0_254], %278 {strides = array<i32>} : memref<8x8x4xbf16, #tpu.memory_space<vmem>>, vector<1x8x4xbf16>,
      %c5_255 = arith.constant 5 : index
      %c0_256 = arith.constant 0 : index
      %c0_257 = arith.constant 0 : index
      %279 = vector.load %arg6[%c5_255, %c0_256, %c0_257] : memref<8x32x4xbf16, #tpu.memory_space<vmem>>, vector<1x32x4xbf16>
      %280 = vector.shape_cast %279 : vector<1x32x4xbf16> to vector<32x4xbf16>
      %cst_258 = arith.constant dense<0.000000e+00> : vector<8x4xf32>
      %281 = tpu.matmul %223, %280, %cst_258 {dimension_numbers = #tpu.dot_dimension_numbers<[1], [0], [0], [1], [0, 0, 1, 1], [], []>} : vector<8x32xbf16>, vector<32x4xbf16>, vector<8x4xf32> -> vector<8x4xf32>
      %c5_259 = arith.constant 5 : index
      %c0_260 = arith.constant 0 : index
      %c0_261 = arith.constant 0 : index
      %282 = vector.load %arg7[%c5_259, %c0_260, %c0_261] : memref<8x1x4xf32, #tpu.memory_space<vmem>>, vector<1x1x4xf32>
      %283 = vector.shape_cast %282 : vector<1x1x4xf32> to vector<1x4xf32>
      %284 = vector.broadcast %283 : vector<1x4xf32> to vector<8x4xf32>
      %285 = arith.addf %281, %284 : vector<8x4xf32>
      %286 = arith.truncf %285 : vector<8x4xf32> to vector<8x4xbf16>
      %c5_262 = arith.constant 5 : index
      %c0_263 = arith.constant 0 : index
      %c0_264 = arith.constant 0 : index
      %287 = vector.load %arg17[%c5_262, %c0_263, %c0_264] : memref<8x8x4xbf16, #tpu.memory_space<vmem>>, vector<1x8x4xbf16>
      %288 = vector.shape_cast %287 : vector<1x8x4xbf16> to vector<8x4xbf16>
      %289 = vector.shape_cast %286 : vector<8x4xbf16> to vector<1x8x4xbf16>
      tpu.vector_store %arg17[%c5_262, %c0_263, %c0_264], %289 {strides = array<i32>} : memref<8x8x4xbf16, #tpu.memory_space<vmem>>, vector<1x8x4xbf16>,
      %c6_265 = arith.constant 6 : index
      %c0_266 = arith.constant 0 : index
      %c0_267 = arith.constant 0 : index
      %290 = vector.load %arg6[%c6_265, %c0_266, %c0_267] : memref<8x32x4xbf16, #tpu.memory_space<vmem>>, vector<1x32x4xbf16>
      %291 = vector.shape_cast %290 : vector<1x32x4xbf16> to vector<32x4xbf16>
      %cst_268 = arith.constant dense<0.000000e+00> : vector<8x4xf32>
      %292 = tpu.matmul %223, %291, %cst_268 {dimension_numbers = #tpu.dot_dimension_numbers<[1], [0], [0], [1], [0, 0, 1, 1], [], []>} : vector<8x32xbf16>, vector<32x4xbf16>, vector<8x4xf32> -> vector<8x4xf32>
      %c6_269 = arith.constant 6 : index
      %c0_270 = arith.constant 0 : index
      %c0_271 = arith.constant 0 : index
      %293 = vector.load %arg7[%c6_269, %c0_270, %c0_271] : memref<8x1x4xf32, #tpu.memory_space<vmem>>, vector<1x1x4xf32>
      %294 = vector.shape_cast %293 : vector<1x1x4xf32> to vector<1x4xf32>
      %295 = vector.broadcast %294 : vector<1x4xf32> to vector<8x4xf32>
      %296 = arith.addf %292, %295 : vector<8x4xf32>
      %297 = arith.truncf %296 : vector<8x4xf32> to vector<8x4xbf16>
      %c6_272 = arith.constant 6 : index
      %c0_273 = arith.constant 0 : index
      %c0_274 = arith.constant 0 : index
      %298 = vector.load %arg17[%c6_272, %c0_273, %c0_274] : memref<8x8x4xbf16, #tpu.memory_space<vmem>>, vector<1x8x4xbf16>
      %299 = vector.shape_cast %298 : vector<1x8x4xbf16> to vector<8x4xbf16>
      %300 = vector.shape_cast %297 : vector<8x4xbf16> to vector<1x8x4xbf16>
      tpu.vector_store %arg17[%c6_272, %c0_273, %c0_274], %300 {strides = array<i32>} : memref<8x8x4xbf16, #tpu.memory_space<vmem>>, vector<1x8x4xbf16>,
      %c7_275 = arith.constant 7 : index
      %c0_276 = arith.constant 0 : index
      %c0_277 = arith.constant 0 : index
      %301 = vector.load %arg6[%c7_275, %c0_276, %c0_277] : memref<8x32x4xbf16, #tpu.memory_space<vmem>>, vector<1x32x4xbf16>
      %302 = vector.shape_cast %301 : vector<1x32x4xbf16> to vector<32x4xbf16>
      %cst_278 = arith.constant dense<0.000000e+00> : vector<8x4xf32>
      %303 = tpu.matmul %223, %302, %cst_278 {dimension_numbers = #tpu.dot_dimension_numbers<[1], [0], [0], [1], [0, 0, 1, 1], [], []>} : vector<8x32xbf16>, vector<32x4xbf16>, vector<8x4xf32> -> vector<8x4xf32>
      %c7_279 = arith.constant 7 : index
      %c0_280 = arith.constant 0 : index
      %c0_281 = arith.constant 0 : index
      %304 = vector.load %arg7[%c7_279, %c0_280, %c0_281] : memref<8x1x4xf32, #tpu.memory_space<vmem>>, vector<1x1x4xf32>
      %305 = vector.shape_cast %304 : vector<1x1x4xf32> to vector<1x4xf32>
      %306 = vector.broadcast %305 : vector<1x4xf32> to vector<8x4xf32>
      %307 = arith.addf %303, %306 : vector<8x4xf32>
      %308 = arith.truncf %307 : vector<8x4xf32> to vector<8x4xbf16>
      %c7_282 = arith.constant 7 : index
      %c0_283 = arith.constant 0 : index
      %c0_284 = arith.constant 0 : index
      %309 = vector.load %arg17[%c7_282, %c0_283, %c0_284] : memref<8x8x4xbf16, #tpu.memory_space<vmem>>, vector<1x8x4xbf16>
      %310 = vector.shape_cast %309 : vector<1x8x4xbf16> to vector<8x4xbf16>
      %311 = vector.shape_cast %308 : vector<8x4xbf16> to vector<1x8x4xbf16>
      tpu.vector_store %arg17[%c7_282, %c0_283, %c0_284], %311 {strides = array<i32>} : memref<8x8x4xbf16, #tpu.memory_space<vmem>>, vector<1x8x4xbf16>,
    } else {
    }
    %c0 = arith.constant 0 : index
    %c0_1 = arith.constant 0 : index
    %c0_2 = arith.constant 0 : index
    %3 = vector.load %arg4[%c0, %c0_1, %c0_2] : memref<1x8x32xf32, #tpu.memory_space<vmem>>, vector<1x8x32xf32>
    %4 = vector.shape_cast %3 : vector<1x8x32xf32> to vector<8x32xf32>
    %5 = arith.truncf %4 : vector<8x32xf32> to vector<8x32xbf16>
    %c0_3 = arith.constant 0 : index
    %c0_4 = arith.constant 0 : index
    %c0_5 = arith.constant 0 : index
    %6 = vector.load %arg5[%c0_3, %c0_4, %c0_5] : memref<1x8x32xf32, #tpu.memory_space<vmem>>, vector<1x8x32xf32>
    %7 = vector.shape_cast %6 : vector<1x8x32xf32> to vector<8x32xf32>
    %8 = arith.truncf %7 : vector<8x32xf32> to vector<8x32xbf16>
    %c0_6 = arith.constant 0 : index
    %c0_7 = arith.constant 0 : index
    %c0_8 = arith.constant 0 : index
    %9 = vector.load %arg8[%c0_6, %c0_7, %c0_8] : memref<8x32x4xbf16, #tpu.memory_space<vmem>>, vector<1x32x4xbf16>
    %10 = vector.shape_cast %9 : vector<1x32x4xbf16> to vector<32x4xbf16>
    %cst = arith.constant dense<0.000000e+00> : vector<8x4xf32>
    %11 = tpu.matmul %5, %10, %cst {dimension_numbers = #tpu.dot_dimension_numbers<[1], [0], [0], [1], [0, 0, 1, 1], [], []>} : vector<8x32xbf16>, vector<32x4xbf16>, vector<8x4xf32> -> vector<8x4xf32>
    %c0_9 = arith.constant 0 : index
    %c0_10 = arith.constant 0 : index
    %c0_11 = arith.constant 0 : index
    %12 = vector.load %arg9[%c0_9, %c0_10, %c0_11] : memref<8x1x4xf32, #tpu.memory_space<vmem>>, vector<1x1x4xf32>
    %13 = vector.shape_cast %12 : vector<1x1x4xf32> to vector<1x4xf32>
    %14 = vector.broadcast %13 : vector<1x4xf32> to vector<8x4xf32>
    %15 = arith.addf %11, %14 : vector<8x4xf32>
    %c0_12 = arith.constant 0 : index
    %c0_13 = arith.constant 0 : index
    %c0_14 = arith.constant 0 : index
    %16 = vector.load %arg10[%c0_12, %c0_13, %c0_14] : memref<8x32x4xbf16, #tpu.memory_space<vmem>>, vector<1x32x4xbf16>
    %17 = vector.shape_cast %16 : vector<1x32x4xbf16> to vector<32x4xbf16>
    %cst_15 = arith.constant dense<0.000000e+00> : vector<8x4xf32>
    %18 = tpu.matmul %8, %17, %cst_15 {dimension_numbers = #tpu.dot_dimension_numbers<[1], [0], [0], [1], [0, 0, 1, 1], [], []>} : vector<8x32xbf16>, vector<32x4xbf16>, vector<8x4xf32> -> vector<8x4xf32>
    %c0_16 = arith.constant 0 : index
    %c0_17 = arith.constant 0 : index
    %c0_18 = arith.constant 0 : index
    %19 = vector.load %arg11[%c0_16, %c0_17, %c0_18] : memref<8x1x4xf32, #tpu.memory_space<vmem>>, vector<1x1x4xf32>
    %20 = vector.shape_cast %19 : vector<1x1x4xf32> to vector<1x4xf32>
    %21 = vector.broadcast %20 : vector<1x4xf32> to vector<8x4xf32>
    %22 = arith.addf %18, %21 : vector<8x4xf32>
    %23 = arith.truncf %15 : vector<8x4xf32> to vector<8x4xbf16>
    %c0_19 = arith.constant 0 : index
    %c0_20 = arith.constant 0 : index
    %c0_21 = arith.constant 0 : index
    %24 = vector.load %arg18[%c0_19, %c0_20, %c0_21] : memref<8x8x4xbf16, #tpu.memory_space<vmem>>, vector<1x8x4xbf16>
    %25 = vector.shape_cast %24 : vector<1x8x4xbf16> to vector<8x4xbf16>
    %26 = vector.shape_cast %23 : vector<8x4xbf16> to vector<1x8x4xbf16>
    tpu.vector_store %arg18[%c0_19, %c0_20, %c0_21], %26 {strides = array<i32>} : memref<8x8x4xbf16, #tpu.memory_space<vmem>>, vector<1x8x4xbf16>,
    %27 = arith.truncf %22 : vector<8x4xf32> to vector<8x4xbf16>
    %c0_22 = arith.constant 0 : index
    %c0_23 = arith.constant 0 : index
    %c0_24 = arith.constant 0 : index
    %28 = vector.load %arg19[%c0_22, %c0_23, %c0_24] : memref<8x8x4xbf16, #tpu.memory_space<vmem>>, vector<1x8x4xbf16>
    %29 = vector.shape_cast %28 : vector<1x8x4xbf16> to vector<8x4xbf16>
    %30 = vector.shape_cast %27 : vector<8x4xbf16> to vector<1x8x4xbf16>
    tpu.vector_store %arg19[%c0_22, %c0_23, %c0_24], %30 {strides = array<i32>} : memref<8x8x4xbf16, #tpu.memory_space<vmem>>, vector<1x8x4xbf16>,
    %c1 = arith.constant 1 : index
    %c0_25 = arith.constant 0 : index
    %c0_26 = arith.constant 0 : index
    %31 = vector.load %arg8[%c1, %c0_25, %c0_26] : memref<8x32x4xbf16, #tpu.memory_space<vmem>>, vector<1x32x4xbf16>
    %32 = vector.shape_cast %31 : vector<1x32x4xbf16> to vector<32x4xbf16>
    %cst_27 = arith.constant dense<0.000000e+00> : vector<8x4xf32>
    %33 = tpu.matmul %5, %32, %cst_27 {dimension_numbers = #tpu.dot_dimension_numbers<[1], [0], [0], [1], [0, 0, 1, 1], [], []>} : vector<8x32xbf16>, vector<32x4xbf16>, vector<8x4xf32> -> vector<8x4xf32>
    %c1_28 = arith.constant 1 : index
    %c0_29 = arith.constant 0 : index
    %c0_30 = arith.constant 0 : index
    %34 = vector.load %arg9[%c1_28, %c0_29, %c0_30] : memref<8x1x4xf32, #tpu.memory_space<vmem>>, vector<1x1x4xf32>
    %35 = vector.shape_cast %34 : vector<1x1x4xf32> to vector<1x4xf32>
    %36 = vector.broadcast %35 : vector<1x4xf32> to vector<8x4xf32>
    %37 = arith.addf %33, %36 : vector<8x4xf32>
    %c1_31 = arith.constant 1 : index
    %c0_32 = arith.constant 0 : index
    %c0_33 = arith.constant 0 : index
    %38 = vector.load %arg10[%c1_31, %c0_32, %c0_33] : memref<8x32x4xbf16, #tpu.memory_space<vmem>>, vector<1x32x4xbf16>
    %39 = vector.shape_cast %38 : vector<1x32x4xbf16> to vector<32x4xbf16>
    %cst_34 = arith.constant dense<0.000000e+00> : vector<8x4xf32>
    %40 = tpu.matmul %8, %39, %cst_34 {dimension_numbers = #tpu.dot_dimension_numbers<[1], [0], [0], [1], [0, 0, 1, 1], [], []>} : vector<8x32xbf16>, vector<32x4xbf16>, vector<8x4xf32> -> vector<8x4xf32>
    %c1_35 = arith.constant 1 : index
    %c0_36 = arith.constant 0 : index
    %c0_37 = arith.constant 0 : index
    %41 = vector.load %arg11[%c1_35, %c0_36, %c0_37] : memref<8x1x4xf32, #tpu.memory_space<vmem>>, vector<1x1x4xf32>
    %42 = vector.shape_cast %41 : vector<1x1x4xf32> to vector<1x4xf32>
    %43 = vector.broadcast %42 : vector<1x4xf32> to vector<8x4xf32>
    %44 = arith.addf %40, %43 : vector<8x4xf32>
    %45 = arith.truncf %37 : vector<8x4xf32> to vector<8x4xbf16>
    %c1_38 = arith.constant 1 : index
    %c0_39 = arith.constant 0 : index
    %c0_40 = arith.constant 0 : index
    %46 = vector.load %arg18[%c1_38, %c0_39, %c0_40] : memref<8x8x4xbf16, #tpu.memory_space<vmem>>, vector<1x8x4xbf16>
    %47 = vector.shape_cast %46 : vector<1x8x4xbf16> to vector<8x4xbf16>
    %48 = vector.shape_cast %45 : vector<8x4xbf16> to vector<1x8x4xbf16>
    tpu.vector_store %arg18[%c1_38, %c0_39, %c0_40], %48 {strides = array<i32>} : memref<8x8x4xbf16, #tpu.memory_space<vmem>>, vector<1x8x4xbf16>,
    %49 = arith.truncf %44 : vector<8x4xf32> to vector<8x4xbf16>
    %c1_41 = arith.constant 1 : index
    %c0_42 = arith.constant 0 : index
    %c0_43 = arith.constant 0 : index
    %50 = vector.load %arg19[%c1_41, %c0_42, %c0_43] : memref<8x8x4xbf16, #tpu.memory_space<vmem>>, vector<1x8x4xbf16>
    %51 = vector.shape_cast %50 : vector<1x8x4xbf16> to vector<8x4xbf16>
    %52 = vector.shape_cast %49 : vector<8x4xbf16> to vector<1x8x4xbf16>
    tpu.vector_store %arg19[%c1_41, %c0_42, %c0_43], %52 {strides = array<i32>} : memref<8x8x4xbf16, #tpu.memory_space<vmem>>, vector<1x8x4xbf16>,
    %c2 = arith.constant 2 : index
    %c0_44 = arith.constant 0 : index
    %c0_45 = arith.constant 0 : index
    %53 = vector.load %arg8[%c2, %c0_44, %c0_45] : memref<8x32x4xbf16, #tpu.memory_space<vmem>>, vector<1x32x4xbf16>
    %54 = vector.shape_cast %53 : vector<1x32x4xbf16> to vector<32x4xbf16>
    %cst_46 = arith.constant dense<0.000000e+00> : vector<8x4xf32>
    %55 = tpu.matmul %5, %54, %cst_46 {dimension_numbers = #tpu.dot_dimension_numbers<[1], [0], [0], [1], [0, 0, 1, 1], [], []>} : vector<8x32xbf16>, vector<32x4xbf16>, vector<8x4xf32> -> vector<8x4xf32>
    %c2_47 = arith.constant 2 : index
    %c0_48 = arith.constant 0 : index
    %c0_49 = arith.constant 0 : index
    %56 = vector.load %arg9[%c2_47, %c0_48, %c0_49] : memref<8x1x4xf32, #tpu.memory_space<vmem>>, vector<1x1x4xf32>
    %57 = vector.shape_cast %56 : vector<1x1x4xf32> to vector<1x4xf32>
    %58 = vector.broadcast %57 : vector<1x4xf32> to vector<8x4xf32>
    %59 = arith.addf %55, %58 : vector<8x4xf32>
    %c2_50 = arith.constant 2 : index
    %c0_51 = arith.constant 0 : index
    %c0_52 = arith.constant 0 : index
    %60 = vector.load %arg10[%c2_50, %c0_51, %c0_52] : memref<8x32x4xbf16, #tpu.memory_space<vmem>>, vector<1x32x4xbf16>
    %61 = vector.shape_cast %60 : vector<1x32x4xbf16> to vector<32x4xbf16>
    %cst_53 = arith.constant dense<0.000000e+00> : vector<8x4xf32>
    %62 = tpu.matmul %8, %61, %cst_53 {dimension_numbers = #tpu.dot_dimension_numbers<[1], [0], [0], [1], [0, 0, 1, 1], [], []>} : vector<8x32xbf16>, vector<32x4xbf16>, vector<8x4xf32> -> vector<8x4xf32>
    %c2_54 = arith.constant 2 : index
    %c0_55 = arith.constant 0 : index
    %c0_56 = arith.constant 0 : index
    %63 = vector.load %arg11[%c2_54, %c0_55, %c0_56] : memref<8x1x4xf32, #tpu.memory_space<vmem>>, vector<1x1x4xf32>
    %64 = vector.shape_cast %63 : vector<1x1x4xf32> to vector<1x4xf32>
    %65 = vector.broadcast %64 : vector<1x4xf32> to vector<8x4xf32>
    %66 = arith.addf %62, %65 : vector<8x4xf32>
    %67 = arith.truncf %59 : vector<8x4xf32> to vector<8x4xbf16>
    %c2_57 = arith.constant 2 : index
    %c0_58 = arith.constant 0 : index
    %c0_59 = arith.constant 0 : index
    %68 = vector.load %arg18[%c2_57, %c0_58, %c0_59] : memref<8x8x4xbf16, #tpu.memory_space<vmem>>, vector<1x8x4xbf16>
    %69 = vector.shape_cast %68 : vector<1x8x4xbf16> to vector<8x4xbf16>
    %70 = vector.shape_cast %67 : vector<8x4xbf16> to vector<1x8x4xbf16>
    tpu.vector_store %arg18[%c2_57, %c0_58, %c0_59], %70 {strides = array<i32>} : memref<8x8x4xbf16, #tpu.memory_space<vmem>>, vector<1x8x4xbf16>,
    %71 = arith.truncf %66 : vector<8x4xf32> to vector<8x4xbf16>
    %c2_60 = arith.constant 2 : index
    %c0_61 = arith.constant 0 : index
    %c0_62 = arith.constant 0 : index
    %72 = vector.load %arg19[%c2_60, %c0_61, %c0_62] : memref<8x8x4xbf16, #tpu.memory_space<vmem>>, vector<1x8x4xbf16>
    %73 = vector.shape_cast %72 : vector<1x8x4xbf16> to vector<8x4xbf16>
    %74 = vector.shape_cast %71 : vector<8x4xbf16> to vector<1x8x4xbf16>
    tpu.vector_store %arg19[%c2_60, %c0_61, %c0_62], %74 {strides = array<i32>} : memref<8x8x4xbf16, #tpu.memory_space<vmem>>, vector<1x8x4xbf16>,
    %c3 = arith.constant 3 : index
    %c0_63 = arith.constant 0 : index
    %c0_64 = arith.constant 0 : index
    %75 = vector.load %arg8[%c3, %c0_63, %c0_64] : memref<8x32x4xbf16, #tpu.memory_space<vmem>>, vector<1x32x4xbf16>
    %76 = vector.shape_cast %75 : vector<1x32x4xbf16> to vector<32x4xbf16>
    %cst_65 = arith.constant dense<0.000000e+00> : vector<8x4xf32>
    %77 = tpu.matmul %5, %76, %cst_65 {dimension_numbers = #tpu.dot_dimension_numbers<[1], [0], [0], [1], [0, 0, 1, 1], [], []>} : vector<8x32xbf16>, vector<32x4xbf16>, vector<8x4xf32> -> vector<8x4xf32>
    %c3_66 = arith.constant 3 : index
    %c0_67 = arith.constant 0 : index
    %c0_68 = arith.constant 0 : index
    %78 = vector.load %arg9[%c3_66, %c0_67, %c0_68] : memref<8x1x4xf32, #tpu.memory_space<vmem>>, vector<1x1x4xf32>
    %79 = vector.shape_cast %78 : vector<1x1x4xf32> to vector<1x4xf32>
    %80 = vector.broadcast %79 : vector<1x4xf32> to vector<8x4xf32>
    %81 = arith.addf %77, %80 : vector<8x4xf32>
    %c3_69 = arith.constant 3 : index
    %c0_70 = arith.constant 0 : index
    %c0_71 = arith.constant 0 : index
    %82 = vector.load %arg10[%c3_69, %c0_70, %c0_71] : memref<8x32x4xbf16, #tpu.memory_space<vmem>>, vector<1x32x4xbf16>
    %83 = vector.shape_cast %82 : vector<1x32x4xbf16> to vector<32x4xbf16>
    %cst_72 = arith.constant dense<0.000000e+00> : vector<8x4xf32>
    %84 = tpu.matmul %8, %83, %cst_72 {dimension_numbers = #tpu.dot_dimension_numbers<[1], [0], [0], [1], [0, 0, 1, 1], [], []>} : vector<8x32xbf16>, vector<32x4xbf16>, vector<8x4xf32> -> vector<8x4xf32>
    %c3_73 = arith.constant 3 : index
    %c0_74 = arith.constant 0 : index
    %c0_75 = arith.constant 0 : index
    %85 = vector.load %arg11[%c3_73, %c0_74, %c0_75] : memref<8x1x4xf32, #tpu.memory_space<vmem>>, vector<1x1x4xf32>
    %86 = vector.shape_cast %85 : vector<1x1x4xf32> to vector<1x4xf32>
    %87 = vector.broadcast %86 : vector<1x4xf32> to vector<8x4xf32>
    %88 = arith.addf %84, %87 : vector<8x4xf32>
    %89 = arith.truncf %81 : vector<8x4xf32> to vector<8x4xbf16>
    %c3_76 = arith.constant 3 : index
    %c0_77 = arith.constant 0 : index
    %c0_78 = arith.constant 0 : index
    %90 = vector.load %arg18[%c3_76, %c0_77, %c0_78] : memref<8x8x4xbf16, #tpu.memory_space<vmem>>, vector<1x8x4xbf16>
    %91 = vector.shape_cast %90 : vector<1x8x4xbf16> to vector<8x4xbf16>
    %92 = vector.shape_cast %89 : vector<8x4xbf16> to vector<1x8x4xbf16>
    tpu.vector_store %arg18[%c3_76, %c0_77, %c0_78], %92 {strides = array<i32>} : memref<8x8x4xbf16, #tpu.memory_space<vmem>>, vector<1x8x4xbf16>,
    %93 = arith.truncf %88 : vector<8x4xf32> to vector<8x4xbf16>
    %c3_79 = arith.constant 3 : index
    %c0_80 = arith.constant 0 : index
    %c0_81 = arith.constant 0 : index
    %94 = vector.load %arg19[%c3_79, %c0_80, %c0_81] : memref<8x8x4xbf16, #tpu.memory_space<vmem>>, vector<1x8x4xbf16>
    %95 = vector.shape_cast %94 : vector<1x8x4xbf16> to vector<8x4xbf16>
    %96 = vector.shape_cast %93 : vector<8x4xbf16> to vector<1x8x4xbf16>
    tpu.vector_store %arg19[%c3_79, %c0_80, %c0_81], %96 {strides = array<i32>} : memref<8x8x4xbf16, #tpu.memory_space<vmem>>, vector<1x8x4xbf16>,
    %c4 = arith.constant 4 : index
    %c0_82 = arith.constant 0 : index
    %c0_83 = arith.constant 0 : index
    %97 = vector.load %arg8[%c4, %c0_82, %c0_83] : memref<8x32x4xbf16, #tpu.memory_space<vmem>>, vector<1x32x4xbf16>
    %98 = vector.shape_cast %97 : vector<1x32x4xbf16> to vector<32x4xbf16>
    %cst_84 = arith.constant dense<0.000000e+00> : vector<8x4xf32>
    %99 = tpu.matmul %5, %98, %cst_84 {dimension_numbers = #tpu.dot_dimension_numbers<[1], [0], [0], [1], [0, 0, 1, 1], [], []>} : vector<8x32xbf16>, vector<32x4xbf16>, vector<8x4xf32> -> vector<8x4xf32>
    %c4_85 = arith.constant 4 : index
    %c0_86 = arith.constant 0 : index
    %c0_87 = arith.constant 0 : index
    %100 = vector.load %arg9[%c4_85, %c0_86, %c0_87] : memref<8x1x4xf32, #tpu.memory_space<vmem>>, vector<1x1x4xf32>
    %101 = vector.shape_cast %100 : vector<1x1x4xf32> to vector<1x4xf32>
    %102 = vector.broadcast %101 : vector<1x4xf32> to vector<8x4xf32>
    %103 = arith.addf %99, %102 : vector<8x4xf32>
    %c4_88 = arith.constant 4 : index
    %c0_89 = arith.constant 0 : index
    %c0_90 = arith.constant 0 : index
    %104 = vector.load %arg10[%c4_88, %c0_89, %c0_90] : memref<8x32x4xbf16, #tpu.memory_space<vmem>>, vector<1x32x4xbf16>
    %105 = vector.shape_cast %104 : vector<1x32x4xbf16> to vector<32x4xbf16>
    %cst_91 = arith.constant dense<0.000000e+00> : vector<8x4xf32>
    %106 = tpu.matmul %8, %105, %cst_91 {dimension_numbers = #tpu.dot_dimension_numbers<[1], [0], [0], [1], [0, 0, 1, 1], [], []>} : vector<8x32xbf16>, vector<32x4xbf16>, vector<8x4xf32> -> vector<8x4xf32>
    %c4_92 = arith.constant 4 : index
    %c0_93 = arith.constant 0 : index
    %c0_94 = arith.constant 0 : index
    %107 = vector.load %arg11[%c4_92, %c0_93, %c0_94] : memref<8x1x4xf32, #tpu.memory_space<vmem>>, vector<1x1x4xf32>
    %108 = vector.shape_cast %107 : vector<1x1x4xf32> to vector<1x4xf32>
    %109 = vector.broadcast %108 : vector<1x4xf32> to vector<8x4xf32>
    %110 = arith.addf %106, %109 : vector<8x4xf32>
    %111 = arith.truncf %103 : vector<8x4xf32> to vector<8x4xbf16>
    %c4_95 = arith.constant 4 : index
    %c0_96 = arith.constant 0 : index
    %c0_97 = arith.constant 0 : index
    %112 = vector.load %arg18[%c4_95, %c0_96, %c0_97] : memref<8x8x4xbf16, #tpu.memory_space<vmem>>, vector<1x8x4xbf16>
    %113 = vector.shape_cast %112 : vector<1x8x4xbf16> to vector<8x4xbf16>
    %114 = vector.shape_cast %111 : vector<8x4xbf16> to vector<1x8x4xbf16>
    tpu.vector_store %arg18[%c4_95, %c0_96, %c0_97], %114 {strides = array<i32>} : memref<8x8x4xbf16, #tpu.memory_space<vmem>>, vector<1x8x4xbf16>,
    %115 = arith.truncf %110 : vector<8x4xf32> to vector<8x4xbf16>
    %c4_98 = arith.constant 4 : index
    %c0_99 = arith.constant 0 : index
    %c0_100 = arith.constant 0 : index
    %116 = vector.load %arg19[%c4_98, %c0_99, %c0_100] : memref<8x8x4xbf16, #tpu.memory_space<vmem>>, vector<1x8x4xbf16>
    %117 = vector.shape_cast %116 : vector<1x8x4xbf16> to vector<8x4xbf16>
    %118 = vector.shape_cast %115 : vector<8x4xbf16> to vector<1x8x4xbf16>
    tpu.vector_store %arg19[%c4_98, %c0_99, %c0_100], %118 {strides = array<i32>} : memref<8x8x4xbf16, #tpu.memory_space<vmem>>, vector<1x8x4xbf16>,
    %c5 = arith.constant 5 : index
    %c0_101 = arith.constant 0 : index
    %c0_102 = arith.constant 0 : index
    %119 = vector.load %arg8[%c5, %c0_101, %c0_102] : memref<8x32x4xbf16, #tpu.memory_space<vmem>>, vector<1x32x4xbf16>
    %120 = vector.shape_cast %119 : vector<1x32x4xbf16> to vector<32x4xbf16>
    %cst_103 = arith.constant dense<0.000000e+00> : vector<8x4xf32>
    %121 = tpu.matmul %5, %120, %cst_103 {dimension_numbers = #tpu.dot_dimension_numbers<[1], [0], [0], [1], [0, 0, 1, 1], [], []>} : vector<8x32xbf16>, vector<32x4xbf16>, vector<8x4xf32> -> vector<8x4xf32>
    %c5_104 = arith.constant 5 : index
    %c0_105 = arith.constant 0 : index
    %c0_106 = arith.constant 0 : index
    %122 = vector.load %arg9[%c5_104, %c0_105, %c0_106] : memref<8x1x4xf32, #tpu.memory_space<vmem>>, vector<1x1x4xf32>
    %123 = vector.shape_cast %122 : vector<1x1x4xf32> to vector<1x4xf32>
    %124 = vector.broadcast %123 : vector<1x4xf32> to vector<8x4xf32>
    %125 = arith.addf %121, %124 : vector<8x4xf32>
    %c5_107 = arith.constant 5 : index
    %c0_108 = arith.constant 0 : index
    %c0_109 = arith.constant 0 : index
    %126 = vector.load %arg10[%c5_107, %c0_108, %c0_109] : memref<8x32x4xbf16, #tpu.memory_space<vmem>>, vector<1x32x4xbf16>
    %127 = vector.shape_cast %126 : vector<1x32x4xbf16> to vector<32x4xbf16>
    %cst_110 = arith.constant dense<0.000000e+00> : vector<8x4xf32>
    %128 = tpu.matmul %8, %127, %cst_110 {dimension_numbers = #tpu.dot_dimension_numbers<[1], [0], [0], [1], [0, 0, 1, 1], [], []>} : vector<8x32xbf16>, vector<32x4xbf16>, vector<8x4xf32> -> vector<8x4xf32>
    %c5_111 = arith.constant 5 : index
    %c0_112 = arith.constant 0 : index
    %c0_113 = arith.constant 0 : index
    %129 = vector.load %arg11[%c5_111, %c0_112, %c0_113] : memref<8x1x4xf32, #tpu.memory_space<vmem>>, vector<1x1x4xf32>
    %130 = vector.shape_cast %129 : vector<1x1x4xf32> to vector<1x4xf32>
    %131 = vector.broadcast %130 : vector<1x4xf32> to vector<8x4xf32>
    %132 = arith.addf %128, %131 : vector<8x4xf32>
    %133 = arith.truncf %125 : vector<8x4xf32> to vector<8x4xbf16>
    %c5_114 = arith.constant 5 : index
    %c0_115 = arith.constant 0 : index
    %c0_116 = arith.constant 0 : index
    %134 = vector.load %arg18[%c5_114, %c0_115, %c0_116] : memref<8x8x4xbf16, #tpu.memory_space<vmem>>, vector<1x8x4xbf16>
    %135 = vector.shape_cast %134 : vector<1x8x4xbf16> to vector<8x4xbf16>
    %136 = vector.shape_cast %133 : vector<8x4xbf16> to vector<1x8x4xbf16>
    tpu.vector_store %arg18[%c5_114, %c0_115, %c0_116], %136 {strides = array<i32>} : memref<8x8x4xbf16, #tpu.memory_space<vmem>>, vector<1x8x4xbf16>,
    %137 = arith.truncf %132 : vector<8x4xf32> to vector<8x4xbf16>
    %c5_117 = arith.constant 5 : index
    %c0_118 = arith.constant 0 : index
    %c0_119 = arith.constant 0 : index
    %138 = vector.load %arg19[%c5_117, %c0_118, %c0_119] : memref<8x8x4xbf16, #tpu.memory_space<vmem>>, vector<1x8x4xbf16>
    %139 = vector.shape_cast %138 : vector<1x8x4xbf16> to vector<8x4xbf16>
    %140 = vector.shape_cast %137 : vector<8x4xbf16> to vector<1x8x4xbf16>
    tpu.vector_store %arg19[%c5_117, %c0_118, %c0_119], %140 {strides = array<i32>} : memref<8x8x4xbf16, #tpu.memory_space<vmem>>, vector<1x8x4xbf16>,
    %c6 = arith.constant 6 : index
    %c0_120 = arith.constant 0 : index
    %c0_121 = arith.constant 0 : index
    %141 = vector.load %arg8[%c6, %c0_120, %c0_121] : memref<8x32x4xbf16, #tpu.memory_space<vmem>>, vector<1x32x4xbf16>
    %142 = vector.shape_cast %141 : vector<1x32x4xbf16> to vector<32x4xbf16>
    %cst_122 = arith.constant dense<0.000000e+00> : vector<8x4xf32>
    %143 = tpu.matmul %5, %142, %cst_122 {dimension_numbers = #tpu.dot_dimension_numbers<[1], [0], [0], [1], [0, 0, 1, 1], [], []>} : vector<8x32xbf16>, vector<32x4xbf16>, vector<8x4xf32> -> vector<8x4xf32>
    %c6_123 = arith.constant 6 : index
    %c0_124 = arith.constant 0 : index
    %c0_125 = arith.constant 0 : index
    %144 = vector.load %arg9[%c6_123, %c0_124, %c0_125] : memref<8x1x4xf32, #tpu.memory_space<vmem>>, vector<1x1x4xf32>
    %145 = vector.shape_cast %144 : vector<1x1x4xf32> to vector<1x4xf32>
    %146 = vector.broadcast %145 : vector<1x4xf32> to vector<8x4xf32>
    %147 = arith.addf %143, %146 : vector<8x4xf32>
    %c6_126 = arith.constant 6 : index
    %c0_127 = arith.constant 0 : index
    %c0_128 = arith.constant 0 : index
    %148 = vector.load %arg10[%c6_126, %c0_127, %c0_128] : memref<8x32x4xbf16, #tpu.memory_space<vmem>>, vector<1x32x4xbf16>
    %149 = vector.shape_cast %148 : vector<1x32x4xbf16> to vector<32x4xbf16>
    %cst_129 = arith.constant dense<0.000000e+00> : vector<8x4xf32>
    %150 = tpu.matmul %8, %149, %cst_129 {dimension_numbers = #tpu.dot_dimension_numbers<[1], [0], [0], [1], [0, 0, 1, 1], [], []>} : vector<8x32xbf16>, vector<32x4xbf16>, vector<8x4xf32> -> vector<8x4xf32>
    %c6_130 = arith.constant 6 : index
    %c0_131 = arith.constant 0 : index
    %c0_132 = arith.constant 0 : index
    %151 = vector.load %arg11[%c6_130, %c0_131, %c0_132] : memref<8x1x4xf32, #tpu.memory_space<vmem>>, vector<1x1x4xf32>
    %152 = vector.shape_cast %151 : vector<1x1x4xf32> to vector<1x4xf32>
    %153 = vector.broadcast %152 : vector<1x4xf32> to vector<8x4xf32>
    %154 = arith.addf %150, %153 : vector<8x4xf32>
    %155 = arith.truncf %147 : vector<8x4xf32> to vector<8x4xbf16>
    %c6_133 = arith.constant 6 : index
    %c0_134 = arith.constant 0 : index
    %c0_135 = arith.constant 0 : index
    %156 = vector.load %arg18[%c6_133, %c0_134, %c0_135] : memref<8x8x4xbf16, #tpu.memory_space<vmem>>, vector<1x8x4xbf16>
    %157 = vector.shape_cast %156 : vector<1x8x4xbf16> to vector<8x4xbf16>
    %158 = vector.shape_cast %155 : vector<8x4xbf16> to vector<1x8x4xbf16>
    tpu.vector_store %arg18[%c6_133, %c0_134, %c0_135], %158 {strides = array<i32>} : memref<8x8x4xbf16, #tpu.memory_space<vmem>>, vector<1x8x4xbf16>,
    %159 = arith.truncf %154 : vector<8x4xf32> to vector<8x4xbf16>
    %c6_136 = arith.constant 6 : index
    %c0_137 = arith.constant 0 : index
    %c0_138 = arith.constant 0 : index
    %160 = vector.load %arg19[%c6_136, %c0_137, %c0_138] : memref<8x8x4xbf16, #tpu.memory_space<vmem>>, vector<1x8x4xbf16>
    %161 = vector.shape_cast %160 : vector<1x8x4xbf16> to vector<8x4xbf16>
    %162 = vector.shape_cast %159 : vector<8x4xbf16> to vector<1x8x4xbf16>
    tpu.vector_store %arg19[%c6_136, %c0_137, %c0_138], %162 {strides = array<i32>} : memref<8x8x4xbf16, #tpu.memory_space<vmem>>, vector<1x8x4xbf16>,
    %c7 = arith.constant 7 : index
    %c0_139 = arith.constant 0 : index
    %c0_140 = arith.constant 0 : index
    %163 = vector.load %arg8[%c7, %c0_139, %c0_140] : memref<8x32x4xbf16, #tpu.memory_space<vmem>>, vector<1x32x4xbf16>
    %164 = vector.shape_cast %163 : vector<1x32x4xbf16> to vector<32x4xbf16>
    %cst_141 = arith.constant dense<0.000000e+00> : vector<8x4xf32>
    %165 = tpu.matmul %5, %164, %cst_141 {dimension_numbers = #tpu.dot_dimension_numbers<[1], [0], [0], [1], [0, 0, 1, 1], [], []>} : vector<8x32xbf16>, vector<32x4xbf16>, vector<8x4xf32> -> vector<8x4xf32>
    %c7_142 = arith.constant 7 : index
    %c0_143 = arith.constant 0 : index
    %c0_144 = arith.constant 0 : index
    %166 = vector.load %arg9[%c7_142, %c0_143, %c0_144] : memref<8x1x4xf32, #tpu.memory_space<vmem>>, vector<1x1x4xf32>
    %167 = vector.shape_cast %166 : vector<1x1x4xf32> to vector<1x4xf32>
    %168 = vector.broadcast %167 : vector<1x4xf32> to vector<8x4xf32>
    %169 = arith.addf %165, %168 : vector<8x4xf32>
    %c7_145 = arith.constant 7 : index
    %c0_146 = arith.constant 0 : index
    %c0_147 = arith.constant 0 : index
    %170 = vector.load %arg10[%c7_145, %c0_146, %c0_147] : memref<8x32x4xbf16, #tpu.memory_space<vmem>>, vector<1x32x4xbf16>
    %171 = vector.shape_cast %170 : vector<1x32x4xbf16> to vector<32x4xbf16>
    %cst_148 = arith.constant dense<0.000000e+00> : vector<8x4xf32>
    %172 = tpu.matmul %8, %171, %cst_148 {dimension_numbers = #tpu.dot_dimension_numbers<[1], [0], [0], [1], [0, 0, 1, 1], [], []>} : vector<8x32xbf16>, vector<32x4xbf16>, vector<8x4xf32> -> vector<8x4xf32>
    %c7_149 = arith.constant 7 : index
    %c0_150 = arith.constant 0 : index
    %c0_151 = arith.constant 0 : index
    %173 = vector.load %arg11[%c7_149, %c0_150, %c0_151] : memref<8x1x4xf32, #tpu.memory_space<vmem>>, vector<1x1x4xf32>
    %174 = vector.shape_cast %173 : vector<1x1x4xf32> to vector<1x4xf32>
    %175 = vector.broadcast %174 : vector<1x4xf32> to vector<8x4xf32>
    %176 = arith.addf %172, %175 : vector<8x4xf32>
    %177 = arith.truncf %169 : vector<8x4xf32> to vector<8x4xbf16>
    %c7_152 = arith.constant 7 : index
    %c0_153 = arith.constant 0 : index
    %c0_154 = arith.constant 0 : index
    %178 = vector.load %arg18[%c7_152, %c0_153, %c0_154] : memref<8x8x4xbf16, #tpu.memory_space<vmem>>, vector<1x8x4xbf16>
    %179 = vector.shape_cast %178 : vector<1x8x4xbf16> to vector<8x4xbf16>
    %180 = vector.shape_cast %177 : vector<8x4xbf16> to vector<1x8x4xbf16>
    tpu.vector_store %arg18[%c7_152, %c0_153, %c0_154], %180 {strides = array<i32>} : memref<8x8x4xbf16, #tpu.memory_space<vmem>>, vector<1x8x4xbf16>,
    %181 = arith.truncf %176 : vector<8x4xf32> to vector<8x4xbf16>
    %c7_155 = arith.constant 7 : index
    %c0_156 = arith.constant 0 : index
    %c0_157 = arith.constant 0 : index
    %182 = vector.load %arg19[%c7_155, %c0_156, %c0_157] : memref<8x8x4xbf16, #tpu.memory_space<vmem>>, vector<1x8x4xbf16>
    %183 = vector.shape_cast %182 : vector<1x8x4xbf16> to vector<8x4xbf16>
    %184 = vector.shape_cast %181 : vector<8x4xbf16> to vector<1x8x4xbf16>
    tpu.vector_store %arg19[%c7_155, %c0_156, %c0_157], %184 {strides = array<i32>} : memref<8x8x4xbf16, #tpu.memory_space<vmem>>, vector<1x8x4xbf16>,
    %c0_158 = arith.constant 0 : index
    %c0_159 = arith.constant 0 : index
    %c0_160 = arith.constant 0 : index
    %185 = vector.load %arg17[%c0_158, %c0_159, %c0_160] : memref<8x8x4xbf16, #tpu.memory_space<vmem>>, vector<8x8x4xbf16>
    %c0_161 = arith.constant 0 : index
    %c0_162 = arith.constant 0 : index
    %c0_163 = arith.constant 0 : index
    %186 = vector.load %arg18[%c0_161, %c0_162, %c0_163] : memref<8x8x4xbf16, #tpu.memory_space<vmem>>, vector<8x8x4xbf16>
    "tpu.trace_start"() <{level = 10 : i32, message = "hqd,hkd->hqk"}> : () -> ()
    %cst_164 = arith.constant dense<0.000000e+00> : vector<8x8x8xf32>
    %187 = tpu.matmul %185, %186, %cst_164 {dimension_numbers = #tpu.dot_dimension_numbers<[2], [2], [1], [1], [0, 0, 0, 1, 1, 1], [0], [0]>} : vector<8x8x4xbf16>, vector<8x8x4xbf16>, vector<8x8x8xf32> -> vector<8x8x8xf32>
    "tpu.trace_stop"() : () -> ()
    %c0_165 = arith.constant 0 : index
    %c0_166 = arith.constant 0 : index
    %c0_167 = arith.constant 0 : index
    %188 = vector.load %arg20[%c0_165, %c0_166, %c0_167] : memref<8x8x1xf32, #tpu.memory_space<vmem>>, vector<8x8x1xf32>
    %cst_168 = arith.constant dense<0xFF800000> : vector<8x8xf32>
    %189 = vector.multi_reduction <maximumf>, %187, %cst_168 [2] : vector<8x8x8xf32> to vector<8x8xf32>
    %190 = vector.shape_cast %189 : vector<8x8xf32> to vector<8x8x1xf32>
    %191 = arith.maximumf %188, %190 : vector<8x8x1xf32>
    %192 = arith.subf %188, %191 : vector<8x8x1xf32>
    %193 = math.exp %192 : vector<8x8x1xf32>
    %194 = vector.broadcast %191 : vector<8x8x1xf32> to vector<8x8x8xf32>
    %195 = arith.subf %187, %194 : vector<8x8x8xf32>
    %196 = math.exp %195 : vector<8x8x8xf32>
    %c0_169 = arith.constant 0 : index
    %c0_170 = arith.constant 0 : index
    %c0_171 = arith.constant 0 : index
    %197 = vector.load %arg21[%c0_169, %c0_170, %c0_171] : memref<8x8x1xf32, #tpu.memory_space<vmem>>, vector<8x8x1xf32>
    %198 = arith.mulf %193, %197 : vector<8x8x1xf32>
    %cst_172 = arith.constant dense<0.000000e+00> : vector<8x8xf32>
    %199 = vector.multi_reduction <add>, %196, %cst_172 [2] : vector<8x8x8xf32> to vector<8x8xf32>
    %200 = vector.shape_cast %199 : vector<8x8xf32> to vector<8x8x1xf32>
    %201 = arith.addf %198, %200 : vector<8x8x1xf32>
    %c0_173 = arith.constant 0 : index
    %c0_174 = arith.constant 0 : index
    %c0_175 = arith.constant 0 : index
    %202 = vector.load %arg21[%c0_173, %c0_174, %c0_175] : memref<8x8x1xf32, #tpu.memory_space<vmem>>, vector<8x8x1xf32>
    tpu.vector_store %arg21[%c0_173, %c0_174, %c0_175], %201 {strides = array<i32>} : memref<8x8x1xf32, #tpu.memory_space<vmem>>, vector<8x8x1xf32>,
    %c0_176 = arith.constant 0 : index
    %c0_177 = arith.constant 0 : index
    %c0_178 = arith.constant 0 : index
    %203 = vector.load %arg22[%c0_176, %c0_177, %c0_178] : memref<8x8x4xf32, #tpu.memory_space<vmem>>, vector<8x8x4xf32>
    %204 = vector.broadcast %193 : vector<8x8x1xf32> to vector<8x8x4xf32>
    %205 = arith.mulf %204, %203 : vector<8x8x4xf32>
    %206 = arith.truncf %196 : vector<8x8x8xf32> to vector<8x8x8xbf16>
    %c0_179 = arith.constant 0 : index
    %c0_180 = arith.constant 0 : index
    %c0_181 = arith.constant 0 : index
    %207 = vector.load %arg19[%c0_179, %c0_180, %c0_181] : memref<8x8x4xbf16, #tpu.memory_space<vmem>>, vector<8x8x4xbf16>
    "tpu.trace_start"() <{level = 10 : i32, message = "hqk,hkd->hqd"}> : () -> ()
    %cst_182 = arith.constant dense<0.000000e+00> : vector<8x8x4xf32>
    %208 = tpu.matmul %206, %207, %cst_182 {dimension_numbers = #tpu.dot_dimension_numbers<[2], [1], [1], [2], [0, 0, 0, 1, 1, 2], [0], [0]>} : vector<8x8x8xbf16>, vector<8x8x4xbf16>, vector<8x8x4xf32> -> vector<8x8x4xf32>
    "tpu.trace_stop"() : () -> ()
    %209 = arith.addf %205, %208 : vector<8x8x4xf32>
    %c0_183 = arith.constant 0 : index
    %c0_184 = arith.constant 0 : index
    %c0_185 = arith.constant 0 : index
    %210 = vector.load %arg22[%c0_183, %c0_184, %c0_185] : memref<8x8x4xf32, #tpu.memory_space<vmem>>, vector<8x8x4xf32>
    tpu.vector_store %arg22[%c0_183, %c0_184, %c0_185], %209 {strides = array<i32>} : memref<8x8x4xf32, #tpu.memory_space<vmem>>, vector<8x8x4xf32>,
    %c0_186 = arith.constant 0 : index
    %c0_187 = arith.constant 0 : index
    %c0_188 = arith.constant 0 : index
    %211 = vector.load %arg20[%c0_186, %c0_187, %c0_188] : memref<8x8x1xf32, #tpu.memory_space<vmem>>, vector<8x8x1xf32>
    tpu.vector_store %arg20[%c0_186, %c0_187, %c0_188], %191 {strides = array<i32>} : memref<8x8x1xf32, #tpu.memory_space<vmem>>, vector<8x8x1xf32>,
    %c1_i32 = arith.constant 1 : i32
    %212 = arith.cmpi eq, %arg2, %c1_i32 : i32
    %213 = arith.extui %212 : i1 to i32
    %c0_i32_189 = arith.constant 0 : i32
    %214 = arith.cmpi ne, %213, %c0_i32_189 : i32
    scf.if %214 {
      %c0_190 = arith.constant 0 : index
      %c0_191 = arith.constant 0 : index
      %215 = vector.load %arg13[%c0_190, %c0_191] : memref<1x32xf32, #tpu.memory_space<vmem>>, vector<1x32xf32>
      %c0_192 = arith.constant 0 : index
      %c0_193 = arith.constant 0 : index
      %216 = vector.load %arg14[%c0_192, %c0_193] : memref<1x32xf32, #tpu.memory_space<vmem>>, vector<1x32xf32>
      %c0_194 = arith.constant 0 : index
      %c0_195 = arith.constant 0 : index
      %217 = vector.load %arg15[%c0_194, %c0_195] : memref<1x32xf32, #tpu.memory_space<vmem>>, vector<1x32xf32>
      %c0_196 = arith.constant 0 : index
      %c0_197 = arith.constant 0 : index
      %c0_198 = arith.constant 0 : index
      %218 = vector.load %arg21[%c0_196, %c0_197, %c0_198] : memref<8x8x1xf32, #tpu.memory_space<vmem>>, vector<1x8x1xf32>
      %219 = vector.shape_cast %218 : vector<1x8x1xf32> to vector<8x1xf32>
      %220 = tpu.reciprocal %219 {approx = true} : vector<8x1xf32> -> vector<8x1xf32>
      %c0_199 = arith.constant 0 : index
      %c0_200 = arith.constant 0 : index
      %c0_201 = arith.constant 0 : index
      %221 = vector.load %arg22[%c0_199, %c0_200, %c0_201] : memref<8x8x4xf32, #tpu.memory_space<vmem>>, vector<1x8x4xf32>
      %222 = vector.shape_cast %221 : vector<1x8x4xf32> to vector<8x4xf32>
      %223 = vector.broadcast %220 : vector<8x1xf32> to vector<8x4xf32>
      %224 = arith.mulf %222, %223 : vector<8x4xf32>
      %225 = arith.truncf %224 : vector<8x4xf32> to vector<8x4xbf16>
      %c0_202 = arith.constant 0 : index
      %c0_203 = arith.constant 0 : index
      %c0_204 = arith.constant 0 : index
      %226 = vector.load %arg12[%c0_202, %c0_203, %c0_204] : memref<8x4x32xbf16, #tpu.memory_space<vmem>>, vector<1x4x32xbf16>
      %227 = vector.shape_cast %226 : vector<1x4x32xbf16> to vector<4x32xbf16>
      %cst_205 = arith.constant dense<0.000000e+00> : vector<8x32xf32>
      %228 = tpu.matmul %225, %227, %cst_205 {dimension_numbers = #tpu.dot_dimension_numbers<[1], [0], [0], [1], [0, 0, 1, 1], [], []>} : vector<8x4xbf16>, vector<4x32xbf16>, vector<8x32xf32> -> vector<8x32xf32>
      %229 = vector.broadcast %215 : vector<1x32xf32> to vector<8x32xf32>
      %230 = arith.addf %229, %228 : vector<8x32xf32>
      %c1_206 = arith.constant 1 : index
      %c0_207 = arith.constant 0 : index
      %c0_208 = arith.constant 0 : index
      %231 = vector.load %arg21[%c1_206, %c0_207, %c0_208] : memref<8x8x1xf32, #tpu.memory_space<vmem>>, vector<1x8x1xf32>
      %232 = vector.shape_cast %231 : vector<1x8x1xf32> to vector<8x1xf32>
      %233 = tpu.reciprocal %232 {approx = true} : vector<8x1xf32> -> vector<8x1xf32>
      %c1_209 = arith.constant 1 : index
      %c0_210 = arith.constant 0 : index
      %c0_211 = arith.constant 0 : index
      %234 = vector.load %arg22[%c1_209, %c0_210, %c0_211] : memref<8x8x4xf32, #tpu.memory_space<vmem>>, vector<1x8x4xf32>
      %235 = vector.shape_cast %234 : vector<1x8x4xf32> to vector<8x4xf32>
      %236 = vector.broadcast %233 : vector<8x1xf32> to vector<8x4xf32>
      %237 = arith.mulf %235, %236 : vector<8x4xf32>
      %238 = arith.truncf %237 : vector<8x4xf32> to vector<8x4xbf16>
      %c1_212 = arith.constant 1 : index
      %c0_213 = arith.constant 0 : index
      %c0_214 = arith.constant 0 : index
      %239 = vector.load %arg12[%c1_212, %c0_213, %c0_214] : memref<8x4x32xbf16, #tpu.memory_space<vmem>>, vector<1x4x32xbf16>
      %240 = vector.shape_cast %239 : vector<1x4x32xbf16> to vector<4x32xbf16>
      %cst_215 = arith.constant dense<0.000000e+00> : vector<8x32xf32>
      %241 = tpu.matmul %238, %240, %cst_215 {dimension_numbers = #tpu.dot_dimension_numbers<[1], [0], [0], [1], [0, 0, 1, 1], [], []>} : vector<8x4xbf16>, vector<4x32xbf16>, vector<8x32xf32> -> vector<8x32xf32>
      %242 = arith.addf %230, %241 : vector<8x32xf32>
      %c2_216 = arith.constant 2 : index
      %c0_217 = arith.constant 0 : index
      %c0_218 = arith.constant 0 : index
      %243 = vector.load %arg21[%c2_216, %c0_217, %c0_218] : memref<8x8x1xf32, #tpu.memory_space<vmem>>, vector<1x8x1xf32>
      %244 = vector.shape_cast %243 : vector<1x8x1xf32> to vector<8x1xf32>
      %245 = tpu.reciprocal %244 {approx = true} : vector<8x1xf32> -> vector<8x1xf32>
      %c2_219 = arith.constant 2 : index
      %c0_220 = arith.constant 0 : index
      %c0_221 = arith.constant 0 : index
      %246 = vector.load %arg22[%c2_219, %c0_220, %c0_221] : memref<8x8x4xf32, #tpu.memory_space<vmem>>, vector<1x8x4xf32>
      %247 = vector.shape_cast %246 : vector<1x8x4xf32> to vector<8x4xf32>
      %248 = vector.broadcast %245 : vector<8x1xf32> to vector<8x4xf32>
      %249 = arith.mulf %247, %248 : vector<8x4xf32>
      %250 = arith.truncf %249 : vector<8x4xf32> to vector<8x4xbf16>
      %c2_222 = arith.constant 2 : index
      %c0_223 = arith.constant 0 : index
      %c0_224 = arith.constant 0 : index
      %251 = vector.load %arg12[%c2_222, %c0_223, %c0_224] : memref<8x4x32xbf16, #tpu.memory_space<vmem>>, vector<1x4x32xbf16>
      %252 = vector.shape_cast %251 : vector<1x4x32xbf16> to vector<4x32xbf16>
      %cst_225 = arith.constant dense<0.000000e+00> : vector<8x32xf32>
      %253 = tpu.matmul %250, %252, %cst_225 {dimension_numbers = #tpu.dot_dimension_numbers<[1], [0], [0], [1], [0, 0, 1, 1], [], []>} : vector<8x4xbf16>, vector<4x32xbf16>, vector<8x32xf32> -> vector<8x32xf32>
      %254 = arith.addf %242, %253 : vector<8x32xf32>
      %c3_226 = arith.constant 3 : index
      %c0_227 = arith.constant 0 : index
      %c0_228 = arith.constant 0 : index
      %255 = vector.load %arg21[%c3_226, %c0_227, %c0_228] : memref<8x8x1xf32, #tpu.memory_space<vmem>>, vector<1x8x1xf32>
      %256 = vector.shape_cast %255 : vector<1x8x1xf32> to vector<8x1xf32>
      %257 = tpu.reciprocal %256 {approx = true} : vector<8x1xf32> -> vector<8x1xf32>
      %c3_229 = arith.constant 3 : index
      %c0_230 = arith.constant 0 : index
      %c0_231 = arith.constant 0 : index
      %258 = vector.load %arg22[%c3_229, %c0_230, %c0_231] : memref<8x8x4xf32, #tpu.memory_space<vmem>>, vector<1x8x4xf32>
      %259 = vector.shape_cast %258 : vector<1x8x4xf32> to vector<8x4xf32>
      %260 = vector.broadcast %257 : vector<8x1xf32> to vector<8x4xf32>
      %261 = arith.mulf %259, %260 : vector<8x4xf32>
      %262 = arith.truncf %261 : vector<8x4xf32> to vector<8x4xbf16>
      %c3_232 = arith.constant 3 : index
      %c0_233 = arith.constant 0 : index
      %c0_234 = arith.constant 0 : index
      %263 = vector.load %arg12[%c3_232, %c0_233, %c0_234] : memref<8x4x32xbf16, #tpu.memory_space<vmem>>, vector<1x4x32xbf16>
      %264 = vector.shape_cast %263 : vector<1x4x32xbf16> to vector<4x32xbf16>
      %cst_235 = arith.constant dense<0.000000e+00> : vector<8x32xf32>
      %265 = tpu.matmul %262, %264, %cst_235 {dimension_numbers = #tpu.dot_dimension_numbers<[1], [0], [0], [1], [0, 0, 1, 1], [], []>} : vector<8x4xbf16>, vector<4x32xbf16>, vector<8x32xf32> -> vector<8x32xf32>
      %266 = arith.addf %254, %265 : vector<8x32xf32>
      %c4_236 = arith.constant 4 : index
      %c0_237 = arith.constant 0 : index
      %c0_238 = arith.constant 0 : index
      %267 = vector.load %arg21[%c4_236, %c0_237, %c0_238] : memref<8x8x1xf32, #tpu.memory_space<vmem>>, vector<1x8x1xf32>
      %268 = vector.shape_cast %267 : vector<1x8x1xf32> to vector<8x1xf32>
      %269 = tpu.reciprocal %268 {approx = true} : vector<8x1xf32> -> vector<8x1xf32>
      %c4_239 = arith.constant 4 : index
      %c0_240 = arith.constant 0 : index
      %c0_241 = arith.constant 0 : index
      %270 = vector.load %arg22[%c4_239, %c0_240, %c0_241] : memref<8x8x4xf32, #tpu.memory_space<vmem>>, vector<1x8x4xf32>
      %271 = vector.shape_cast %270 : vector<1x8x4xf32> to vector<8x4xf32>
      %272 = vector.broadcast %269 : vector<8x1xf32> to vector<8x4xf32>
      %273 = arith.mulf %271, %272 : vector<8x4xf32>
      %274 = arith.truncf %273 : vector<8x4xf32> to vector<8x4xbf16>
      %c4_242 = arith.constant 4 : index
      %c0_243 = arith.constant 0 : index
      %c0_244 = arith.constant 0 : index
      %275 = vector.load %arg12[%c4_242, %c0_243, %c0_244] : memref<8x4x32xbf16, #tpu.memory_space<vmem>>, vector<1x4x32xbf16>
      %276 = vector.shape_cast %275 : vector<1x4x32xbf16> to vector<4x32xbf16>
      %cst_245 = arith.constant dense<0.000000e+00> : vector<8x32xf32>
      %277 = tpu.matmul %274, %276, %cst_245 {dimension_numbers = #tpu.dot_dimension_numbers<[1], [0], [0], [1], [0, 0, 1, 1], [], []>} : vector<8x4xbf16>, vector<4x32xbf16>, vector<8x32xf32> -> vector<8x32xf32>
      %278 = arith.addf %266, %277 : vector<8x32xf32>
      %c5_246 = arith.constant 5 : index
      %c0_247 = arith.constant 0 : index
      %c0_248 = arith.constant 0 : index
      %279 = vector.load %arg21[%c5_246, %c0_247, %c0_248] : memref<8x8x1xf32, #tpu.memory_space<vmem>>, vector<1x8x1xf32>
      %280 = vector.shape_cast %279 : vector<1x8x1xf32> to vector<8x1xf32>
      %281 = tpu.reciprocal %280 {approx = true} : vector<8x1xf32> -> vector<8x1xf32>
      %c5_249 = arith.constant 5 : index
      %c0_250 = arith.constant 0 : index
      %c0_251 = arith.constant 0 : index
      %282 = vector.load %arg22[%c5_249, %c0_250, %c0_251] : memref<8x8x4xf32, #tpu.memory_space<vmem>>, vector<1x8x4xf32>
      %283 = vector.shape_cast %282 : vector<1x8x4xf32> to vector<8x4xf32>
      %284 = vector.broadcast %281 : vector<8x1xf32> to vector<8x4xf32>
      %285 = arith.mulf %283, %284 : vector<8x4xf32>
      %286 = arith.truncf %285 : vector<8x4xf32> to vector<8x4xbf16>
      %c5_252 = arith.constant 5 : index
      %c0_253 = arith.constant 0 : index
      %c0_254 = arith.constant 0 : index
      %287 = vector.load %arg12[%c5_252, %c0_253, %c0_254] : memref<8x4x32xbf16, #tpu.memory_space<vmem>>, vector<1x4x32xbf16>
      %288 = vector.shape_cast %287 : vector<1x4x32xbf16> to vector<4x32xbf16>
      %cst_255 = arith.constant dense<0.000000e+00> : vector<8x32xf32>
      %289 = tpu.matmul %286, %288, %cst_255 {dimension_numbers = #tpu.dot_dimension_numbers<[1], [0], [0], [1], [0, 0, 1, 1], [], []>} : vector<8x4xbf16>, vector<4x32xbf16>, vector<8x32xf32> -> vector<8x32xf32>
      %290 = arith.addf %278, %289 : vector<8x32xf32>
      %c6_256 = arith.constant 6 : index
      %c0_257 = arith.constant 0 : index
      %c0_258 = arith.constant 0 : index
      %291 = vector.load %arg21[%c6_256, %c0_257, %c0_258] : memref<8x8x1xf32, #tpu.memory_space<vmem>>, vector<1x8x1xf32>
      %292 = vector.shape_cast %291 : vector<1x8x1xf32> to vector<8x1xf32>
      %293 = tpu.reciprocal %292 {approx = true} : vector<8x1xf32> -> vector<8x1xf32>
      %c6_259 = arith.constant 6 : index
      %c0_260 = arith.constant 0 : index
      %c0_261 = arith.constant 0 : index
      %294 = vector.load %arg22[%c6_259, %c0_260, %c0_261] : memref<8x8x4xf32, #tpu.memory_space<vmem>>, vector<1x8x4xf32>
      %295 = vector.shape_cast %294 : vector<1x8x4xf32> to vector<8x4xf32>
      %296 = vector.broadcast %293 : vector<8x1xf32> to vector<8x4xf32>
      %297 = arith.mulf %295, %296 : vector<8x4xf32>
      %298 = arith.truncf %297 : vector<8x4xf32> to vector<8x4xbf16>
      %c6_262 = arith.constant 6 : index
      %c0_263 = arith.constant 0 : index
      %c0_264 = arith.constant 0 : index
      %299 = vector.load %arg12[%c6_262, %c0_263, %c0_264] : memref<8x4x32xbf16, #tpu.memory_space<vmem>>, vector<1x4x32xbf16>
      %300 = vector.shape_cast %299 : vector<1x4x32xbf16> to vector<4x32xbf16>
      %cst_265 = arith.constant dense<0.000000e+00> : vector<8x32xf32>
      %301 = tpu.matmul %298, %300, %cst_265 {dimension_numbers = #tpu.dot_dimension_numbers<[1], [0], [0], [1], [0, 0, 1, 1], [], []>} : vector<8x4xbf16>, vector<4x32xbf16>, vector<8x32xf32> -> vector<8x32xf32>
      %302 = arith.addf %290, %301 : vector<8x32xf32>
      %c7_266 = arith.constant 7 : index
      %c0_267 = arith.constant 0 : index
      %c0_268 = arith.constant 0 : index
      %303 = vector.load %arg21[%c7_266, %c0_267, %c0_268] : memref<8x8x1xf32, #tpu.memory_space<vmem>>, vector<1x8x1xf32>
      %304 = vector.shape_cast %303 : vector<1x8x1xf32> to vector<8x1xf32>
      %305 = tpu.reciprocal %304 {approx = true} : vector<8x1xf32> -> vector<8x1xf32>
      %c7_269 = arith.constant 7 : index
      %c0_270 = arith.constant 0 : index
      %c0_271 = arith.constant 0 : index
      %306 = vector.load %arg22[%c7_269, %c0_270, %c0_271] : memref<8x8x4xf32, #tpu.memory_space<vmem>>, vector<1x8x4xf32>
      %307 = vector.shape_cast %306 : vector<1x8x4xf32> to vector<8x4xf32>
      %308 = vector.broadcast %305 : vector<8x1xf32> to vector<8x4xf32>
      %309 = arith.mulf %307, %308 : vector<8x4xf32>
      %310 = arith.truncf %309 : vector<8x4xf32> to vector<8x4xbf16>
      %c7_272 = arith.constant 7 : index
      %c0_273 = arith.constant 0 : index
      %c0_274 = arith.constant 0 : index
      %311 = vector.load %arg12[%c7_272, %c0_273, %c0_274] : memref<8x4x32xbf16, #tpu.memory_space<vmem>>, vector<1x4x32xbf16>
      %312 = vector.shape_cast %311 : vector<1x4x32xbf16> to vector<4x32xbf16>
      %cst_275 = arith.constant dense<0.000000e+00> : vector<8x32xf32>
      %313 = tpu.matmul %310, %312, %cst_275 {dimension_numbers = #tpu.dot_dimension_numbers<[1], [0], [0], [1], [0, 0, 1, 1], [], []>} : vector<8x4xbf16>, vector<4x32xbf16>, vector<8x32xf32> -> vector<8x32xf32>
      %314 = arith.addf %302, %313 : vector<8x32xf32>
      %c0_276 = arith.constant 0 : index
      %c0_277 = arith.constant 0 : index
      %c0_278 = arith.constant 0 : index
      %315 = vector.load %arg3[%c0_276, %c0_277, %c0_278] : memref<1x8x32xf32, #tpu.memory_space<vmem>>, vector<1x8x32xf32>
      %316 = vector.shape_cast %315 : vector<1x8x32xf32> to vector<8x32xf32>
      %317 = arith.addf %316, %314 : vector<8x32xf32>
      %cst_279 = arith.constant dense<0.000000e+00> : vector<8xf32>
      %318 = vector.multi_reduction <add>, %317, %cst_279 [1] : vector<8x32xf32> to vector<8xf32>
      %319 = vector.shape_cast %318 : vector<8xf32> to vector<8x1xf32>
      %cst_280 = arith.constant 3.200000e+01 : f32
      %320 = vector.broadcast %cst_280 : f32 to vector<8x1xf32>
      %321 = arith.divf %319, %320 : vector<8x1xf32>
      %322 = vector.broadcast %321 : vector<8x1xf32> to vector<8x32xf32>
      %323 = arith.subf %317, %322 : vector<8x32xf32>
      %324 = arith.mulf %323, %323 : vector<8x32xf32>
      %cst_281 = arith.constant dense<0.000000e+00> : vector<8xf32>
      %325 = vector.multi_reduction <add>, %324, %cst_281 [1] : vector<8x32xf32> to vector<8xf32>
      %326 = vector.shape_cast %325 : vector<8xf32> to vector<8x1xf32>
      %cst_282 = arith.constant 3.200000e+01 : f32
      %327 = vector.broadcast %cst_282 : f32 to vector<8x1xf32>
      %328 = arith.divf %326, %327 : vector<8x1xf32>
      %cst_283 = arith.constant 9.99999974E-6 : f32
      %329 = vector.broadcast %cst_283 : f32 to vector<8x1xf32>
      %330 = arith.addf %328, %329 : vector<8x1xf32>
      %331 = math.rsqrt %330 : vector<8x1xf32>
      %332 = vector.broadcast %331 : vector<8x1xf32> to vector<8x32xf32>
      %333 = arith.mulf %323, %332 : vector<8x32xf32>
      %334 = vector.broadcast %216 : vector<1x32xf32> to vector<8x32xf32>
      %335 = arith.mulf %333, %334 : vector<8x32xf32>
      %336 = vector.broadcast %217 : vector<1x32xf32> to vector<8x32xf32>
      %337 = arith.addf %335, %336 : vector<8x32xf32>
      %c0_284 = arith.constant 0 : index
      %c0_285 = arith.constant 0 : index
      %c0_286 = arith.constant 0 : index
      %338 = vector.load %arg16[%c0_284, %c0_285, %c0_286] : memref<1x8x32xf32, #tpu.memory_space<vmem>>, vector<1x8x32xf32>
      %339 = vector.shape_cast %338 : vector<1x8x32xf32> to vector<8x32xf32>
      %340 = vector.shape_cast %337 : vector<8x32xf32> to vector<1x8x32xf32>
      tpu.vector_store %arg16[%c0_284, %c0_285, %c0_286], %340 {strides = array<i32>} : memref<1x8x32xf32, #tpu.memory_space<vmem>>, vector<1x8x32xf32>,
    } else {
    }
    return
  }
  func.func @transform_0(%arg0: i32, %arg1: i32, %arg2: i32) -> (i32, i32, i32) {
    %c0_i32 = arith.constant 0 : i32
    %c0_i32_0 = arith.constant 0 : i32
    return %arg0, %arg1, %c0_i32 : i32, i32, i32
  }
  func.func @transform_1(%arg0: i32, %arg1: i32, %arg2: i32) -> (i32, i32, i32) {
    %c0_i32 = arith.constant 0 : i32
    %c0_i32_0 = arith.constant 0 : i32
    return %arg0, %arg2, %c0_i32 : i32, i32, i32
  }
  func.func @transform_2(%arg0: i32, %arg1: i32, %arg2: i32) -> (i32, i32, i32) {
    %c0_i32 = arith.constant 0 : i32
    %c0_i32_0 = arith.constant 0 : i32
    return %arg0, %arg2, %c0_i32 : i32, i32, i32
  }
  func.func @transform_3(%arg0: i32, %arg1: i32, %arg2: i32) -> (i32, i32, i32) {
    %c0_i32 = arith.constant 0 : i32
    %c0_i32_0 = arith.constant 0 : i32
    %c0_i32_1 = arith.constant 0 : i32
    %c0_i32_2 = arith.constant 0 : i32
    return %c0_i32, %c0_i32_0, %c0_i32_1 : i32, i32, i32
  }
  func.func @transform_4(%arg0: i32, %arg1: i32, %arg2: i32) -> (i32, i32, i32) {
    %c0_i32 = arith.constant 0 : i32
    %c0_i32_0 = arith.constant 0 : i32
    %c0_i32_1 = arith.constant 0 : i32
    %c0_i32_2 = arith.constant 0 : i32
    return %c0_i32, %c0_i32_0, %c0_i32_1 : i32, i32, i32
  }
  func.func @transform_5(%arg0: i32, %arg1: i32, %arg2: i32) -> (i32, i32, i32) {
    %c0_i32 = arith.constant 0 : i32
    %c0_i32_0 = arith.constant 0 : i32
    %c0_i32_1 = arith.constant 0 : i32
    %c0_i32_2 = arith.constant 0 : i32
    return %c0_i32, %c0_i32_0, %c0_i32_1 : i32, i32, i32
  }
  func.func @transform_6(%arg0: i32, %arg1: i32, %arg2: i32) -> (i32, i32, i32) {
    %c0_i32 = arith.constant 0 : i32
    %c0_i32_0 = arith.constant 0 : i32
    %c0_i32_1 = arith.constant 0 : i32
    %c0_i32_2 = arith.constant 0 : i32
    return %c0_i32, %c0_i32_0, %c0_i32_1 : i32, i32, i32
  }
  func.func @transform_7(%arg0: i32, %arg1: i32, %arg2: i32) -> (i32, i32, i32) {
    %c0_i32 = arith.constant 0 : i32
    %c0_i32_0 = arith.constant 0 : i32
    %c0_i32_1 = arith.constant 0 : i32
    %c0_i32_2 = arith.constant 0 : i32
    return %c0_i32, %c0_i32_0, %c0_i32_1 : i32, i32, i32
  }
  func.func @transform_8(%arg0: i32, %arg1: i32, %arg2: i32) -> (i32, i32, i32) {
    %c0_i32 = arith.constant 0 : i32
    %c0_i32_0 = arith.constant 0 : i32
    %c0_i32_1 = arith.constant 0 : i32
    %c0_i32_2 = arith.constant 0 : i32
    return %c0_i32, %c0_i32_0, %c0_i32_1 : i32, i32, i32
  }
  func.func @transform_9(%arg0: i32, %arg1: i32, %arg2: i32) -> (i32, i32, i32) {
    %c0_i32 = arith.constant 0 : i32
    %c0_i32_0 = arith.constant 0 : i32
    %c0_i32_1 = arith.constant 0 : i32
    %c0_i32_2 = arith.constant 0 : i32
    return %c0_i32, %c0_i32_0, %c0_i32_1 : i32, i32, i32
  }
  func.func @transform_10(%arg0: i32, %arg1: i32, %arg2: i32) -> (i32, i32) {
    %c0_i32 = arith.constant 0 : i32
    %c0_i32_0 = arith.constant 0 : i32
    %c0_i32_1 = arith.constant 0 : i32
    return %c0_i32, %c0_i32_0 : i32, i32
  }
  func.func @transform_11(%arg0: i32, %arg1: i32, %arg2: i32) -> (i32, i32) {
    %c0_i32 = arith.constant 0 : i32
    %c0_i32_0 = arith.constant 0 : i32
    %c0_i32_1 = arith.constant 0 : i32
    return %c0_i32, %c0_i32_0 : i32, i32
  }
  func.func @transform_12(%arg0: i32, %arg1: i32, %arg2: i32) -> (i32, i32) {
    %c0_i32 = arith.constant 0 : i32
    %c0_i32_0 = arith.constant 0 : i32
    %c0_i32_1 = arith.constant 0 : i32
    return %c0_i32, %c0_i32_0 : i32, i32
  }
  func.func @transform_13(%arg0: i32, %arg1: i32, %arg2: i32) -> (i32, i32, i32) {
    %c0_i32 = arith.constant 0 : i32
    %c0_i32_0 = arith.constant 0 : i32
    return %arg0, %arg1, %c0_i32 : i32, i32, i32
  }
}

</mosaic_0001>

<llo_original>
// kernel: tpu_custom_call.1
$region0: #{tpu_custom_call.1}
  #allocation0 [shape = 'u32[]', space=smem, size = 0x4, offset = 0x4, fixed_abs, tag = 'smem constant byte address 0x4 - core index']
  #allocation1 [shape = 'u32[72,128]{1,0:T(1,128)}', space=vmem, size = 0x9000, scoped, tag = 'internal scratch']
  #allocation2 [shape = 'bf16[8,8,4]{2,1,0:T(8,128)(2,1)}', space=vmem, size = 0x4000, scoped, tag = 'scratch operand']
  #allocation3 [shape = 'bf16[8,8,4]{2,1,0:T(8,128)(2,1)}', space=vmem, size = 0x4000, scoped, tag = 'scratch operand']
  #allocation4 [shape = 'bf16[8,8,4]{2,1,0:T(8,128)(2,1)}', space=vmem, size = 0x4000, scoped, tag = 'scratch operand']
  #allocation5 [shape = 'f32[8,8,1]{2,1,0:T(8,128)}', space=vmem, size = 0x8000, scoped, tag = 'scratch operand']
  #allocation6 [shape = 'f32[8,8,1]{2,1,0:T(8,128)}', space=vmem, size = 0x8000, scoped, tag = 'scratch operand']
  #allocation7 [shape = 'f32[8,8,4]{2,1,0:T(8,128)}', space=vmem, size = 0x8000, scoped, tag = 'scratch operand']
  %s0 = inlined_call_operand.vmem [shape: f32[2,16,32], index: 0, kind: input, shape index: {}]
  %s1 = inlined_call_operand.vmem [shape: f32[2,16,32], index: 1, kind: input, shape index: {}]
  %s2 = inlined_call_operand.vmem [shape: f32[2,16,32], index: 2, kind: input, shape index: {}]
  %s3 = inlined_call_operand.vmem [shape: bf16[8,32,4], index: 3, kind: input, shape index: {}]
  %s4 = inlined_call_operand.vmem [shape: f32[8,1,4], index: 4, kind: input, shape index: {}]
  %s5 = inlined_call_operand.vmem [shape: bf16[8,32,4], index: 5, kind: input, shape index: {}]
  %s6 = inlined_call_operand.vmem [shape: f32[8,1,4], index: 6, kind: input, shape index: {}]
  %s7 = inlined_call_operand.vmem [shape: bf16[8,32,4], index: 7, kind: input, shape index: {}]
  %s8 = inlined_call_operand.vmem [shape: f32[8,1,4], index: 8, kind: input, shape index: {}]
  %s9 = inlined_call_operand.vmem [shape: bf16[8,4,32], index: 9, kind: input, shape index: {}]
  %s10 = inlined_call_operand.vmem [shape: f32[1,32], index: 10, kind: input, shape index: {}]
  %s11 = inlined_call_operand.vmem [shape: f32[1,32], index: 11, kind: input, shape index: {}]
  %s12 = inlined_call_operand.vmem [shape: f32[1,32], index: 12, kind: input, shape index: {}]
  %s13 = inlined_call_operand.hbm [shape: f32[2,16,32], index: 13, kind: output, shape index: {}]
  %s14 = sld [smem:[#allocation0]]
  $region93: #{tpu_custom_call.1} parent=0
    _
  %s16 = ssub.s32 1, %s14
  %s17 = scalar_select 0, %s16, %s14
  $region1: #{tpu_custom_call.1} parent=0
    #allocation8 [shape = 'u8[8192]{0}', space=vmem, size = 0x2000, scoped, tag = 'output window, operand 0']
    #allocation9 [shape = 's32[2]{0}', space=sflag, size = 0x8, scoped, tag = 'scoped memory for tpu_custom_call.1']
    %18 = vsyncpa [#allocation9], 0
    %s19 = scalar_lea.sflag [#allocation9], 1
    %20 = vsyncpa %s19, 0
    loop: start=0, step=1, limit=10
    $region2: #{tpu_custom_call.1} parent=1 // loop_pre_header
      _
    $region3: #{tpu_custom_call.1} parent=1 // loop_header
      %s22 = sphi 0, %s26
      %p23 = scmp.ge.s32.totalorder %s22, 10
      %s29 = sphi 0, %s48
      %s30 = sphi 0, %s44
      %s31 = sphi 0, %s40
      %s32 = sphi 0, %s29
      %s33 = sphi 0, %s30
      %s34 = sphi 0, %s31
      %s35 = sphi 0, %s32
      %s36 = sphi 0, %s33
      %s37 = sphi 0, %s34
      %s53 = sphi 0, %s55
      %s56 = sphi 0, %s53
      %s57 = sphi 0, %s56
      %s73 = sphi 0, %s57
      %s81 = sphi 0, %s83
      %s84 = sphi 0, %s81
      %s85 = sphi 0, %s84
      %s101 = sphi 0, %s85
      %s109 = sphi 0, %s111
      %s112 = sphi 0, %s109
      %s113 = sphi 0, %s112
      %s129 = sphi 0, %s113
      %s133 = sphi 0, %s133
      %s135 = sphi 0, %s133
      %s136 = sphi 0, %s135
      %s150 = sphi 0, %s136
      %s154 = sphi 0, %s154
      %s156 = sphi 0, %s154
      %s157 = sphi 0, %s156
      %s171 = sphi 0, %s157
      %s175 = sphi 0, %s175
      %s177 = sphi 0, %s175
      %s178 = sphi 0, %s177
      %s192 = sphi 0, %s178
      %s196 = sphi 0, %s196
      %s198 = sphi 0, %s196
      %s199 = sphi 0, %s198
      %s213 = sphi 0, %s199
      %s217 = sphi 0, %s217
      %s219 = sphi 0, %s217
      %s220 = sphi 0, %s219
      %s234 = sphi 0, %s220
      %s238 = sphi 0, %s238
      %s240 = sphi 0, %s238
      %s241 = sphi 0, %s240
      %s255 = sphi 0, %s241
      %s259 = sphi 0, %s259
      %s261 = sphi 0, %s259
      %s262 = sphi 0, %s261
      %s276 = sphi 0, %s262
      %s280 = sphi 0, %s280
      %s282 = sphi 0, %s280
      %s283 = sphi 0, %s282
      %s297 = sphi 0, %s283
      %s301 = sphi 0, %s301
      %s303 = sphi 0, %s301
      %s304 = sphi 0, %s303
      %s318 = sphi 0, %s304
      %s322 = sphi 0, %s322
      %s324 = sphi 0, %s322
      %s325 = sphi 0, %s324
      %s339 = sphi 0, %s325
      %s347 = sphi 0, %s349
      %s350 = sphi 0, %s347
      %s351 = sphi 0, %s350
      %s367 = sphi 0, %s351
    $region4: #{tpu_custom_call.1} parent=1 // loop_header_branch
      %25 = sbr.rel (%p23) target = $region8
    $region5: #{tpu_custom_call.1} parent=1 // loop_body
      %s27 = ssub.s32 %s22, 1
      %s28 = ssub.s32 %s22, 2
      %s38 = sadd.s32 1, %s31
      %p39 = scmp.ge.s32.totalorder %s38, 2
      %s40 = scalar_select %p39, 0, %s38
      %s41 = sadd.s32 1, %s30
      %s42 = scalar_select %p39, %s41, %s30
      %p43 = scmp.ge.s32.totalorder %s42, 2
      %s44 = scalar_select %p43, 0, %s42
      %s45 = sadd.s32 1, %s29
      %s46 = scalar_select %p43, %s45, %s29
      %p47 = scmp.ge.s32.totalorder %s46, 2
      %s48 = scalar_select %p47, 0, %s46
      %s49 = ssub.s32 %s29, %s48
      %s50 = ssub.s32 %s30, %s44
      %s51 = sor.u32 %s49, %s50
      %p52 = scmp.eq.s32.totalorder %s51, 0
      %s54 = sadd.s32 %s53, 1
      %s55 = scalar_select %p52, %s53, %s54
      %p58 = pneg %p52
      %p59 = scmp.eq.s32.totalorder %s22, 7
      %p60 = por %p58, %p59
      %p61 = scmp.ne.s32.totalorder %s53, %s56
      %p62 = scmp.eq.s32.totalorder %s22, 0
      %p63 = por %p61, %p62
      %p64 = scmp.ne.s32.totalorder %s53, %s56
      %p65 = scmp.eq.s32.totalorder %s27, 7
      %p66 = por %p64, %p65
      %p67 = scmp.ne.s32.totalorder %s56, %s57
      %p68 = scmp.eq.s32.totalorder %s27, 0
      %p69 = por %p67, %p68
      %p70 = scmp.ne.s32.totalorder %s56, %s57
      %p71 = scmp.eq.s32.totalorder %s28, 7
      %p72 = por %p70, %p71
      %p74 = scmp.ne.s32.totalorder %s57, %s73
      %p75 = scmp.eq.s32.totalorder %s28, 0
      %p76 = por %p74, %p75
      %s77 = ssub.s32 %s29, %s48
      %s78 = ssub.s32 %s31, %s40
      %s79 = sor.u32 %s77, %s78
      %p80 = scmp.eq.s32.totalorder %s79, 0
      %s82 = sadd.s32 %s81, 1
      %s83 = scalar_select %p80, %s81, %s82
      %p86 = pneg %p80
      %p87 = scmp.eq.s32.totalorder %s22, 7
      %p88 = por %p86, %p87
      %p89 = scmp.ne.s32.totalorder %s81, %s84
      %p90 = scmp.eq.s32.totalorder %s22, 0
      %p91 = por %p89, %p90
      %p92 = scmp.ne.s32.totalorder %s81, %s84
      %p93 = scmp.eq.s32.totalorder %s27, 7
      %p94 = por %p92, %p93
      %p95 = scmp.ne.s32.totalorder %s84, %s85
      %p96 = scmp.eq.s32.totalorder %s27, 0
      %p97 = por %p95, %p96
      %p98 = scmp.ne.s32.totalorder %s84, %s85
      %p99 = scmp.eq.s32.totalorder %s28, 7
      %p100 = por %p98, %p99
      %p102 = scmp.ne.s32.totalorder %s85, %s101
      %p103 = scmp.eq.s32.totalorder %s28, 0
      %p104 = por %p102, %p103
      %s105 = ssub.s32 %s29, %s48
      %s106 = ssub.s32 %s31, %s40
      %s107 = sor.u32 %s105, %s106
      %p108 = scmp.eq.s32.totalorder %s107, 0
      %s110 = sadd.s32 %s109, 1
      %s111 = scalar_select %p108, %s109, %s110
      %p114 = pneg %p108
      %p115 = scmp.eq.s32.totalorder %s22, 7
      %p116 = por %p114, %p115
      %p117 = scmp.ne.s32.totalorder %s109, %s112
      %p118 = scmp.eq.s32.totalorder %s22, 0
      %p119 = por %p117, %p118
      %p120 = scmp.ne.s32.totalorder %s109, %s112
      %p121 = scmp.eq.s32.totalorder %s27, 7
      %p122 = por %p120, %p121
      %p123 = scmp.ne.s32.totalorder %s112, %s113
      %p124 = scmp.eq.s32.totalorder %s27, 0
      %p125 = por %p123, %p124
      %p126 = scmp.ne.s32.totalorder %s112, %s113
      %p127 = scmp.eq.s32.totalorder %s28, 7
      %p128 = por %p126, %p127
      %p130 = scmp.ne.s32.totalorder %s113, %s129
      %p131 = scmp.eq.s32.totalorder %s28, 0
      %p132 = por %p130, %p131
      %s134 = sadd.s32 %s133, 1
      %p137 = scmp.eq.s32.totalorder %s22, 7
      %p138 = scmp.ne.s32.totalorder %s133, %s135
      %p139 = scmp.eq.s32.totalorder %s22, 0
      %p140 = por %p138, %p139
      %p141 = scmp.ne.s32.totalorder %s133, %s135
      %p142 = scmp.eq.s32.totalorder %s27, 7
      %p143 = por %p141, %p142
      %p144 = scmp.ne.s32.totalorder %s135, %s136
      %p145 = scmp.eq.s32.totalorder %s27, 0
      %p146 = por %p144, %p145
      %p147 = scmp.ne.s32.totalorder %s135, %s136
      %p148 = scmp.eq.s32.totalorder %s28, 7
      %p149 = por %p147, %p148
      %p151 = scmp.ne.s32.totalorder %s136, %s150
      %p152 = scmp.eq.s32.totalorder %s28, 0
      %p153 = por %p151, %p152
      %s155 = sadd.s32 %s154, 1
      %p158 = scmp.eq.s32.totalorder %s22, 7
      %p159 = scmp.ne.s32.totalorder %s154, %s156
      %p160 = scmp.eq.s32.totalorder %s22, 0
      %p161 = por %p159, %p160
      %p162 = scmp.ne.s32.totalorder %s154, %s156
      %p163 = scmp.eq.s32.totalorder %s27, 7
      %p164 = por %p162, %p163
      %p165 = scmp.ne.s32.totalorder %s156, %s157
      %p166 = scmp.eq.s32.totalorder %s27, 0
      %p167 = por %p165, %p166
      %p168 = scmp.ne.s32.totalorder %s156, %s157
      %p169 = scmp.eq.s32.totalorder %s28, 7
      %p170 = por %p168, %p169
      %p172 = scmp.ne.s32.totalorder %s157, %s171
      %p173 = scmp.eq.s32.totalorder %s28, 0
      %p174 = por %p172, %p173
      %s176 = sadd.s32 %s175, 1
      %p179 = scmp.eq.s32.totalorder %s22, 7
      %p180 = scmp.ne.s32.totalorder %s175, %s177
      %p181 = scmp.eq.s32.totalorder %s22, 0
      %p182 = por %p180, %p181
      %p183 = scmp.ne.s32.totalorder %s175, %s177
      %p184 = scmp.eq.s32.totalorder %s27, 7
      %p185 = por %p183, %p184
      %p186 = scmp.ne.s32.totalorder %s177, %s178
      %p187 = scmp.eq.s32.totalorder %s27, 0
      %p188 = por %p186, %p187
      %p189 = scmp.ne.s32.totalorder %s177, %s178
      %p190 = scmp.eq.s32.totalorder %s28, 7
      %p191 = por %p189, %p190
      %p193 = scmp.ne.s32.totalorder %s178, %s192
      %p194 = scmp.eq.s32.totalorder %s28, 0
      %p195 = por %p193, %p194
      %s197 = sadd.s32 %s196, 1
      %p200 = scmp.eq.s32.totalorder %s22, 7
      %p201 = scmp.ne.s32.totalorder %s196, %s198
      %p202 = scmp.eq.s32.totalorder %s22, 0
      %p203 = por %p201, %p202
      %p204 = scmp.ne.s32.totalorder %s196, %s198
      %p205 = scmp.eq.s32.totalorder %s27, 7
      %p206 = por %p204, %p205
      %p207 = scmp.ne.s32.totalorder %s198, %s199
      %p208 = scmp.eq.s32.totalorder %s27, 0
      %p209 = por %p207, %p208
      %p210 = scmp.ne.s32.totalorder %s198, %s199
      %p211 = scmp.eq.s32.totalorder %s28, 7
      %p212 = por %p210, %p211
      %p214 = scmp.ne.s32.totalorder %s199, %s213
      %p215 = scmp.eq.s32.totalorder %s28, 0
      %p216 = por %p214, %p215
      %s218 = sadd.s32 %s217, 1
      %p221 = scmp.eq.s32.totalorder %s22, 7
      %p222 = scmp.ne.s32.totalorder %s217, %s219
      %p223 = scmp.eq.s32.totalorder %s22, 0
      %p224 = por %p222, %p223
      %p225 = scmp.ne.s32.totalorder %s217, %s219
      %p226 = scmp.eq.s32.totalorder %s27, 7
      %p227 = por %p225, %p226
      %p228 = scmp.ne.s32.totalorder %s219, %s220
      %p229 = scmp.eq.s32.totalorder %s27, 0
      %p230 = por %p228, %p229
      %p231 = scmp.ne.s32.totalorder %s219, %s220
      %p232 = scmp.eq.s32.totalorder %s28, 7
      %p233 = por %p231, %p232
      %p235 = scmp.ne.s32.totalorder %s220, %s234
      %p236 = scmp.eq.s32.totalorder %s28, 0
      %p237 = por %p235, %p236
      %s239 = sadd.s32 %s238, 1
      %p242 = scmp.eq.s32.totalorder %s22, 7
      %p243 = scmp.ne.s32.totalorder %s238, %s240
      %p244 = scmp.eq.s32.totalorder %s22, 0
      %p245 = por %p243, %p244
      %p246 = scmp.ne.s32.totalorder %s238, %s240
      %p247 = scmp.eq.s32.totalorder %s27, 7
      %p248 = por %p246, %p247
      %p249 = scmp.ne.s32.totalorder %s240, %s241
      %p250 = scmp.eq.s32.totalorder %s27, 0
      %p251 = por %p249, %p250
      %p252 = scmp.ne.s32.totalorder %s240, %s241
      %p253 = scmp.eq.s32.totalorder %s28, 7
      %p254 = por %p252, %p253
      %p256 = scmp.ne.s32.totalorder %s241, %s255
      %p257 = scmp.eq.s32.totalorder %s28, 0
      %p258 = por %p256, %p257
      %s260 = sadd.s32 %s259, 1
      %p263 = scmp.eq.s32.totalorder %s22, 7
      %p264 = scmp.ne.s32.totalorder %s259, %s261
      %p265 = scmp.eq.s32.totalorder %s22, 0
      %p266 = por %p264, %p265
      %p267 = scmp.ne.s32.totalorder %s259, %s261
      %p268 = scmp.eq.s32.totalorder %s27, 7
      %p269 = por %p267, %p268
      %p270 = scmp.ne.s32.totalorder %s261, %s262
      %p271 = scmp.eq.s32.totalorder %s27, 0
      %p272 = por %p270, %p271
      %p273 = scmp.ne.s32.totalorder %s261, %s262
      %p274 = scmp.eq.s32.totalorder %s28, 7
      %p275 = por %p273, %p274
      %p277 = scmp.ne.s32.totalorder %s262, %s276
      %p278 = scmp.eq.s32.totalorder %s28, 0
      %p279 = por %p277, %p278
      %s281 = sadd.s32 %s280, 1
      %p284 = scmp.eq.s32.totalorder %s22, 7
      %p285 = scmp.ne.s32.totalorder %s280, %s282
      %p286 = scmp.eq.s32.totalorder %s22, 0
      %p287 = por %p285, %p286
      %p288 = scmp.ne.s32.totalorder %s280, %s282
      %p289 = scmp.eq.s32.totalorder %s27, 7
      %p290 = por %p288, %p289
      %p291 = scmp.ne.s32.totalorder %s282, %s283
      %p292 = scmp.eq.s32.totalorder %s27, 0
      %p293 = por %p291, %p292
      %p294 = scmp.ne.s32.totalorder %s282, %s283
      %p295 = scmp.eq.s32.totalorder %s28, 7
      %p296 = por %p294, %p295
      %p298 = scmp.ne.s32.totalorder %s283, %s297
      %p299 = scmp.eq.s32.totalorder %s28, 0
      %p300 = por %p298, %p299
      %s302 = sadd.s32 %s301, 1
      %p305 = scmp.eq.s32.totalorder %s22, 7
      %p306 = scmp.ne.s32.totalorder %s301, %s303
      %p307 = scmp.eq.s32.totalorder %s22, 0
      %p308 = por %p306, %p307
      %p309 = scmp.ne.s32.totalorder %s301, %s303
      %p310 = scmp.eq.s32.totalorder %s27, 7
      %p311 = por %p309, %p310
      %p312 = scmp.ne.s32.totalorder %s303, %s304
      %p313 = scmp.eq.s32.totalorder %s27, 0
      %p314 = por %p312, %p313
      %p315 = scmp.ne.s32.totalorder %s303, %s304
      %p316 = scmp.eq.s32.totalorder %s28, 7
      %p317 = por %p315, %p316
      %p319 = scmp.ne.s32.totalorder %s304, %s318
      %p320 = scmp.eq.s32.totalorder %s28, 0
      %p321 = por %p319, %p320
      %s323 = sadd.s32 %s322, 1
      %p326 = scmp.eq.s32.totalorder %s22, 7
      %p327 = scmp.ne.s32.totalorder %s322, %s324
      %p328 = scmp.eq.s32.totalorder %s22, 0
      %p329 = por %p327, %p328
      %p330 = scmp.ne.s32.totalorder %s322, %s324
      %p331 = scmp.eq.s32.totalorder %s27, 7
      %p332 = por %p330, %p331
      %p333 = scmp.ne.s32.totalorder %s324, %s325
      %p334 = scmp.eq.s32.totalorder %s27, 0
      %p335 = por %p333, %p334
      %p336 = scmp.ne.s32.totalorder %s324, %s325
      %p337 = scmp.eq.s32.totalorder %s28, 7
      %p338 = por %p336, %p337
      %p340 = scmp.ne.s32.totalorder %s325, %s339
      %p341 = scmp.eq.s32.totalorder %s28, 0
      %p342 = por %p340, %p341
      %s343 = ssub.s32 %s29, %s48
      %s344 = ssub.s32 %s30, %s44
      %s345 = sor.u32 %s343, %s344
      %p346 = scmp.eq.s32.totalorder %s345, 0
      %s348 = sadd.s32 %s347, 1
      %s349 = scalar_select %p346, %s347, %s348
      %p352 = pneg %p346
      %p353 = scmp.eq.s32.totalorder %s22, 7
      %p354 = por %p352, %p353
      %p355 = scmp.ne.s32.totalorder %s347, %s350
      %p356 = scmp.eq.s32.totalorder %s22, 0
      %p357 = por %p355, %p356
      %p358 = scmp.ne.s32.totalorder %s347, %s350
      %p359 = scmp.eq.s32.totalorder %s27, 7
      %p360 = por %p358, %p359
      %p361 = scmp.ne.s32.totalorder %s350, %s351
      %p362 = scmp.eq.s32.totalorder %s27, 0
      %p363 = por %p361, %p362
      %p364 = scmp.ne.s32.totalorder %s350, %s351
      %p365 = scmp.eq.s32.totalorder %s28, 7
      %p366 = por %p364, %p365
      %p368 = scmp.ne.s32.totalorder %s351, %s367
      %p369 = scmp.eq.s32.totalorder %s28, 0
      %p370 = por %p368, %p369
      %p371 = scmp.le.s32.totalorder 1, %s22
      %p372 = scmp.lt.s32.totalorder %s22, 9
      %p373 = pnand %p371, %p372
      %p374 = pneg %p373
      // Predicated region
      $region9: #{tpu_custom_call.1} parent=5 // pred_check
        _
      $region10: #{tpu_custom_call.1} parent=5 // pred_check_branch
        %376 = sbr.rel (%p373) target = $region12
      $region11: #{tpu_custom_call.1} parent=5 // pred_region
        %s377 = ssub.s32 %s22, 1
        // Predicated region
        $region13: #{tpu_custom_call.1} parent=11 // pred_check
          %p378 = pneg %p146
        $region14: #{tpu_custom_call.1} parent=11 // pred_check_branch
          %380 = sbr.rel (%p378) target = $region16
        $region15: #{tpu_custom_call.1} parent=11 // pred_region
          _
        $region16: #{tpu_custom_call.1} parent=11 // pred_fallthru
          _
        // Predicated region
        $region17: #{tpu_custom_call.1} parent=11 // pred_check
          %p381 = pneg %p167
        $region18: #{tpu_custom_call.1} parent=11 // pred_check_branch
          %383 = sbr.rel (%p381) target = $region20
        $region19: #{tpu_custom_call.1} parent=11 // pred_region
          _
        $region20: #{tpu_custom_call.1} parent=11 // pred_fallthru
          _
        // Predicated region
        $region21: #{tpu_custom_call.1} parent=11 // pred_check
          %p384 = pneg %p188
        $region22: #{tpu_custom_call.1} parent=11 // pred_check_branch
          %386 = sbr.rel (%p384) target = $region24
        $region23: #{tpu_custom_call.1} parent=11 // pred_region
          _
        $region24: #{tpu_custom_call.1} parent=11 // pred_fallthru
          _
        // Predicated region
        $region25: #{tpu_custom_call.1} parent=11 // pred_check
          %p387 = pneg %p209
        $region26: #{tpu_custom_call.1} parent=11 // pred_check_branch
          %389 = sbr.rel (%p387) target = $region28
        $region27: #{tpu_custom_call.1} parent=11 // pred_region
          _
        $region28: #{tpu_custom_call.1} parent=11 // pred_fallthru
          _
        // Predicated region
        $region29: #{tpu_custom_call.1} parent=11 // pred_check
          %p390 = pneg %p230
        $region30: #{tpu_custom_call.1} parent=11 // pred_check_branch
          %392 = sbr.rel (%p390) target = $region32
        $region31: #{tpu_custom_call.1} parent=11 // pred_region
          _
        $region32: #{tpu_custom_call.1} parent=11 // pred_fallthru
          _
        // Predicated region
        $region33: #{tpu_custom_call.1} parent=11 // pred_check
          %p393 = pneg %p251
        $region34: #{tpu_custom_call.1} parent=11 // pred_check_branch
          %395 = sbr.rel (%p393) target = $region36
        $region35: #{tpu_custom_call.1} parent=11 // pred_region
          _
        $region36: #{tpu_custom_call.1} parent=11 // pred_fallthru
          _
        // Predicated region
        $region37: #{tpu_custom_call.1} parent=11 // pred_check
          %p396 = pneg %p272
        $region38: #{tpu_custom_call.1} parent=11 // pred_check_branch
          %398 = sbr.rel (%p396) target = $region40
        $region39: #{tpu_custom_call.1} parent=11 // pred_region
          _
        $region40: #{tpu_custom_call.1} parent=11 // pred_fallthru
          _
        // Predicated region
        $region41: #{tpu_custom_call.1} parent=11 // pred_check
          %p399 = pneg %p293
        $region42: #{tpu_custom_call.1} parent=11 // pred_check_branch
          %401 = sbr.rel (%p399) target = $region44
        $region43: #{tpu_custom_call.1} parent=11 // pred_region
          _
        $region44: #{tpu_custom_call.1} parent=11 // pred_fallthru
          _
        // Predicated region
        $region45: #{tpu_custom_call.1} parent=11 // pred_check
          %p402 = pneg %p314
        $region46: #{tpu_custom_call.1} parent=11 // pred_check_branch
          %404 = sbr.rel (%p402) target = $region48
        $region47: #{tpu_custom_call.1} parent=11 // pred_region
          _
        $region48: #{tpu_custom_call.1} parent=11 // pred_fallthru
          _
        // Predicated region
        $region49: #{tpu_custom_call.1} parent=11 // pred_check
          %p405 = pneg %p335
        $region50: #{tpu_custom_call.1} parent=11 // pred_check_branch
          %407 = sbr.rel (%p405) target = $region52
        $region51: #{tpu_custom_call.1} parent=11 // pred_region
          _
        $region52: #{tpu_custom_call.1} parent=11 // pred_fallthru
          _
      $region12: #{tpu_custom_call.1} parent=5 // pred_fallthru
        _
      %p408 = scmp.lt.s32.totalorder %s22, 8
      // Predicated region
      $region53: #{tpu_custom_call.1} parent=5 // pred_check
        %p409 = pneg %p408
      $region54: #{tpu_custom_call.1} parent=5 // pred_check_branch
        %411 = sbr.rel (%p409) target = $region56
      $region55: #{tpu_custom_call.1} parent=5 // pred_region
        // Predicated region
        $region57: #{tpu_custom_call.1} parent=55 // pred_check
          %p412 = pneg %p63
        $region58: #{tpu_custom_call.1} parent=55 // pred_check_branch
          %414 = sbr.rel (%p412) target = $region60
        $region59: #{tpu_custom_call.1} parent=55 // pred_region
          %p415 = scmp.lt.s32.totalorder %s29, 1
          %s416 = scalar_select %p415, %s29, 1
          %p417 = scmp.lt.s32.totalorder %s30, 1
          %s418 = scalar_select %p417, %s30, 1
          %s419 = smul.addr %s416, 2
          %s420 = sadd.s32 %s418, %s419
          %s421 = smul.addr %s420, 8
          %s422 = scalar_lea.vmem %s0, %s421
        $region60: #{tpu_custom_call.1} parent=55 // pred_fallthru
          _
        // Predicated region
        $region61: #{tpu_custom_call.1} parent=55 // pred_check
          %p423 = pneg %p91
        $region62: #{tpu_custom_call.1} parent=55 // pred_check_branch
          %425 = sbr.rel (%p423) target = $region64
        $region63: #{tpu_custom_call.1} parent=55 // pred_region
          %p426 = scmp.lt.s32.totalorder %s29, 1
          %s427 = scalar_select %p426, %s29, 1
          %p428 = scmp.lt.s32.totalorder %s31, 1
          %s429 = scalar_select %p428, %s31, 1
          %s430 = smul.addr %s427, 2
          %s431 = sadd.s32 %s429, %s430
          %s432 = smul.addr %s431, 8
          %s433 = scalar_lea.vmem %s1, %s432
        $region64: #{tpu_custom_call.1} parent=55 // pred_fallthru
          _
        // Predicated region
        $region65: #{tpu_custom_call.1} parent=55 // pred_check
          %p434 = pneg %p119
        $region66: #{tpu_custom_call.1} parent=55 // pred_check_branch
          %436 = sbr.rel (%p434) target = $region68
        $region67: #{tpu_custom_call.1} parent=55 // pred_region
          %p437 = scmp.lt.s32.totalorder %s29, 1
          %s438 = scalar_select %p437, %s29, 1
          %p439 = scmp.lt.s32.totalorder %s31, 1
          %s440 = scalar_select %p439, %s31, 1
          %s441 = smul.addr %s438, 2
          %s442 = sadd.s32 %s440, %s441
          %s443 = smul.addr %s442, 8
          %s444 = scalar_lea.vmem %s2, %s443
        $region68: #{tpu_custom_call.1} parent=55 // pred_fallthru
          _
      $region56: #{tpu_custom_call.1} parent=5 // pred_fallthru
        _
      %p445 = scmp.le.s32.totalorder 1, %s22
      %p446 = scmp.lt.s32.totalorder %s22, 9
      %p447 = pnand %p445, %p446
      %p448 = pneg %p447
      // Predicated region
      $region69: #{tpu_custom_call.1} parent=5 // pred_check
        _
      $region70: #{tpu_custom_call.1} parent=5 // pred_check_branch
        %450 = sbr.rel (%p447) target = $region72
      $region71: #{tpu_custom_call.1} parent=5 // pred_region
        %s451 = ssub.s32 %s22, 1
        %p452 = scmp.lt.s32.totalorder %s32, 1
        %s453 = scalar_select %p452, %s32, 1
        %p454 = scmp.lt.s32.totalorder %s33, 1
        %s455 = scalar_select %p454, %s33, 1
        %s456 = smul.addr %s453, 2
        %s457 = sadd.s32 %s455, %s456
        %s458 = smul.addr %s457, 8
        %s459 = scalar_lea.vmem %s0, %s458
        %p460 = pneg %p69
        %p461 = pneg %p66
        %p462 = scmp.lt.s32.totalorder %s32, 1
        %s463 = scalar_select %p462, %s32, 1
        %p464 = scmp.lt.s32.totalorder %s34, 1
        %s465 = scalar_select %p464, %s34, 1
        %s466 = smul.addr %s463, 2
        %s467 = sadd.s32 %s465, %s466
        %s468 = smul.addr %s467, 8
        %s469 = scalar_lea.vmem %s1, %s468
        %p470 = pneg %p97
        %p471 = pneg %p94
        %p472 = scmp.lt.s32.totalorder %s32, 1
        %s473 = scalar_select %p472, %s32, 1
        %p474 = scmp.lt.s32.totalorder %s34, 1
        %s475 = scalar_select %p474, %s34, 1
        %s476 = smul.addr %s473, 2
        %s477 = sadd.s32 %s475, %s476
        %s478 = smul.addr %s477, 8
        %s479 = scalar_lea.vmem %s2, %s478
        %p480 = pneg %p125
        %p481 = pneg %p122
        %p482 = pneg %p146
        %p483 = pneg %p143
        %p484 = pneg %p167
        %p485 = pneg %p164
        %p486 = pneg %p188
        %p487 = pneg %p185
        %p488 = pneg %p209
        %p489 = pneg %p206
        %p490 = pneg %p230
        %p491 = pneg %p227
        %p492 = pneg %p251
        %p493 = pneg %p248
        %p494 = pneg %p272
        %p495 = pneg %p269
        %p496 = pneg %p293
        %p497 = pneg %p290
        %p498 = pneg %p314
        %p499 = pneg %p311
        %p500 = pneg %p335
        %p501 = pneg %p332
        %p502 = pneg %p363
        %p503 = pneg %p360
        %s504 = sand.u32 %s350, 1
        %s505 = scalar_lea.sflag [#allocation9], %s504
        %s506 = sand.u32 %s350, 1
        %s507 = smul.addr %s506, 8
        %s508 = scalar_lea.vmem [#allocation8], %s507
        %p509 = scmp.lt.s32.totalorder %s32, 1
        %s510 = scalar_select %p509, %s32, 1
        %p511 = scmp.lt.s32.totalorder %s33, 1
        %s512 = scalar_select %p511, %s33, 1
        %s513 = smul.addr %s510, 2
        %s514 = sadd.s32 %s512, %s513
        %s515 = smul.addr %s514, 8
        %s516 = scalar_lea.vmem %s0, %s515
        %p517 = scmp.lt.s32.totalorder %s32, 1
        %s518 = scalar_select %p517, %s32, 1
        %p519 = scmp.lt.s32.totalorder %s34, 1
        %s520 = scalar_select %p519, %s34, 1
        %s521 = smul.addr %s518, 2
        %s522 = sadd.s32 %s520, %s521
        %s523 = smul.addr %s522, 8
        %s524 = scalar_lea.vmem %s1, %s523
        %p525 = scmp.lt.s32.totalorder %s32, 1
        %s526 = scalar_select %p525, %s32, 1
        %p527 = scmp.lt.s32.totalorder %s34, 1
        %s528 = scalar_select %p527, %s34, 1
        %s529 = smul.addr %s526, 2
        %s530 = sadd.s32 %s528, %s529
        %s531 = smul.addr %s530, 8
        %s532 = scalar_lea.vmem %s2, %s531
        %p534 = scmp.eq.s32.totalorder %s34, 0
        // Predicated region
        $region73: #{tpu_custom_call.1} parent=71 // pred_check
          %p535 = pneg %p534
        $region74: #{tpu_custom_call.1} parent=71 // pred_check_branch
          %537 = sbr.rel (%p535) target = $region76
        $region75: #{tpu_custom_call.1} parent=71 // pred_region
          %vm538 = vcmask 7168
          %539 = vst.msk [vmem:[#allocation5] sm:$0xff] %vm538, -inf
          %540 = vst.msk [vmem:[#allocation5 + $0x8] sm:$0xff] %vm538, -inf
          %541 = vst.msk [vmem:[#allocation5 + $0x10] sm:$0xff] %vm538, -inf
          %542 = vst.msk [vmem:[#allocation5 + $0x18] sm:$0xff] %vm538, -inf
          %543 = vst.msk [vmem:[#allocation5 + $0x20] sm:$0xff] %vm538, -inf
          %544 = vst.msk [vmem:[#allocation5 + $0x28] sm:$0xff] %vm538, -inf
          %545 = vst.msk [vmem:[#allocation5 + $0x30] sm:$0xff] %vm538, -inf
          %546 = vst.msk [vmem:[#allocation5 + $0x38] sm:$0xff] %vm538, -inf
          %547 = vst.msk [vmem:[#allocation6] sm:$0xff] %vm538, 0.0
          %548 = vst.msk [vmem:[#allocation6 + $0x8] sm:$0xff] %vm538, 0.0
          %549 = vst.msk [vmem:[#allocation6 + $0x10] sm:$0xff] %vm538, 0.0
          %550 = vst.msk [vmem:[#allocation6 + $0x18] sm:$0xff] %vm538, 0.0
          %551 = vst.msk [vmem:[#allocation6 + $0x20] sm:$0xff] %vm538, 0.0
          %552 = vst.msk [vmem:[#allocation6 + $0x28] sm:$0xff] %vm538, 0.0
          %553 = vst.msk [vmem:[#allocation6 + $0x30] sm:$0xff] %vm538, 0.0
          %554 = vst.msk [vmem:[#allocation6 + $0x38] sm:$0xff] %vm538, 0.0
          %vm555 = vcmask 31744
          %556 = vst.msk [vmem:[#allocation7] sm:$0xff] %vm555, 0.0
          %557 = vst.msk [vmem:[#allocation7 + $0x8] sm:$0xff] %vm555, 0.0
          %558 = vst.msk [vmem:[#allocation7 + $0x10] sm:$0xff] %vm555, 0.0
          %559 = vst.msk [vmem:[#allocation7 + $0x18] sm:$0xff] %vm555, 0.0
          %560 = vst.msk [vmem:[#allocation7 + $0x20] sm:$0xff] %vm555, 0.0
          %561 = vst.msk [vmem:[#allocation7 + $0x28] sm:$0xff] %vm555, 0.0
          %562 = vst.msk [vmem:[#allocation7 + $0x30] sm:$0xff] %vm555, 0.0
          %563 = vst.msk [vmem:[#allocation7 + $0x38] sm:$0xff] %vm555, 0.0
          %v564 = vld [vmem:[%s516] sm:$0xff]
          %v565 = vpack.c.bf16 %v564, %v564
          %v566 = vld [vmem:[%s3] sm:$0xf]
          %v567 = vld [vmem:[%s3 + $0x4] sm:$0xf]
          %v568 = vld [vmem:[%s3 + $0x8] sm:$0xf]
          %v569 = vld [vmem:[%s3 + $0xc] sm:$0xf]
          %v570 = vld [vmem:[%s4] sm:$0x1]
          %v572 = vperm.slane %v570, 0
          %v578 = vunpack.c.l.b16 %v566
          %v579 = vunpack.c.l.b16 %v567
          %v580 = vunpack.c.l.b16 %v568
          %v581 = vunpack.c.l.b16 %v569
          %v582 = vpack.c.b16 %v579, %v578
          %v583 = vpack.c.b16 %v581, %v580
          %vm586 = vcmask 261120
          %v588 = vsel %vm586, %v565, 0
          %590 = vmatpush.bf16.msra.mxu0 0
          %591 = vmatpush.bf16.msra.mxu0 0
          %592 = vmatpush.bf16.msra.mxu0 0
          %593 = vmatpush.bf16.msra.mxu0 0
          %594 = vmatpush.bf16.msra.mxu0 0
          %595 = vmatpush.bf16.msra.mxu0 0
          %596 = vmatpush.bf16.msra.mxu0 %v583
          %597 = vmatpush.bf16.msra.mxu0 %v582
          %598 = vmatmul.bf16.gmra.mxu0 %v588
          %v599 = vpop.f32.mrf.mxu0
          %v600 = vadd.f32 %v572, %v599
          %v601 = vpop.f32.mrf.mxu0
          %602 = vdwg.mxu0
          %v603 = vpack.c.bf16 %v600, %v600
          %vm604 = vcmask 27648
          %605 = vst.msk [vmem:[#allocation2] sm:$0xf] %vm604, %v603
          %s606 = scalar_lea.vmem %s3, 16
          %v607 = vld [vmem:[%s606] sm:$0xf]
          %v608 = vld [vmem:[%s606 + $0x4] sm:$0xf]
          %v609 = vld [vmem:[%s606 + $0x8] sm:$0xf]
          %v610 = vld [vmem:[%s606 + $0xc] sm:$0xf]
          %s611 = scalar_lea.vmem %s4, 1
          %v612 = vld [vmem:[%s611] sm:$0x1]
          %v614 = vperm.slane %v612, 0
          %v620 = vunpack.c.l.b16 %v607
          %v621 = vunpack.c.l.b16 %v608
          %v622 = vunpack.c.l.b16 %v609
          %v623 = vunpack.c.l.b16 %v610
          %v624 = vpack.c.b16 %v621, %v620
          %v625 = vpack.c.b16 %v623, %v622
          %628 = vmatpush.bf16.msra.mxu0 0
          %629 = vmatpush.bf16.msra.mxu0 0
          %630 = vmatpush.bf16.msra.mxu0 0
          %631 = vmatpush.bf16.msra.mxu0 0
          %632 = vmatpush.bf16.msra.mxu0 0
          %633 = vmatpush.bf16.msra.mxu0 0
          %634 = vmatpush.bf16.msra.mxu0 %v625
          %635 = vmatpush.bf16.msra.mxu0 %v624
          %636 = vmatmul.bf16.gmra.mxu0 %v588
          %v637 = vpop.f32.mrf.mxu0
          %v638 = vadd.f32 %v614, %v637
          %v639 = vpop.f32.mrf.mxu0
          %640 = vdwg.mxu0
          %v641 = vpack.c.bf16 %v638, %v638
          %s642 = scalar_lea.vmem [#allocation2], 4
          %643 = vst.msk [vmem:[%s642] sm:$0xf] %vm604, %v641
          %s644 = scalar_lea.vmem %s3, 32
          %v645 = vld [vmem:[%s644] sm:$0xf]
          %v646 = vld [vmem:[%s644 + $0x4] sm:$0xf]
          %v647 = vld [vmem:[%s644 + $0x8] sm:$0xf]
          %v648 = vld [vmem:[%s644 + $0xc] sm:$0xf]
          %s649 = scalar_lea.vmem %s4, 2
          %v650 = vld [vmem:[%s649] sm:$0x1]
          %v652 = vperm.slane %v650, 0
          %v658 = vunpack.c.l.b16 %v645
          %v659 = vunpack.c.l.b16 %v646
          %v660 = vunpack.c.l.b16 %v647
          %v661 = vunpack.c.l.b16 %v648
          %v662 = vpack.c.b16 %v659, %v658
          %v663 = vpack.c.b16 %v661, %v660
          %666 = vmatpush.bf16.msra.mxu0 0
          %667 = vmatpush.bf16.msra.mxu0 0
          %668 = vmatpush.bf16.msra.mxu0 0
          %669 = vmatpush.bf16.msra.mxu0 0
          %670 = vmatpush.bf16.msra.mxu0 0
          %671 = vmatpush.bf16.msra.mxu0 0
          %672 = vmatpush.bf16.msra.mxu0 %v663
          %673 = vmatpush.bf16.msra.mxu0 %v662
          %674 = vmatmul.bf16.gmra.mxu0 %v588
          %v675 = vpop.f32.mrf.mxu0
          %v676 = vadd.f32 %v652, %v675
          %v677 = vpop.f32.mrf.mxu0
          %678 = vdwg.mxu0
          %v679 = vpack.c.bf16 %v676, %v676
          %s680 = scalar_lea.vmem [#allocation2], 8
          %681 = vst.msk [vmem:[%s680] sm:$0xf] %vm604, %v679
          %s682 = scalar_lea.vmem %s3, 48
          %v683 = vld [vmem:[%s682] sm:$0xf]
          %v684 = vld [vmem:[%s682 + $0x4] sm:$0xf]
          %v685 = vld [vmem:[%s682 + $0x8] sm:$0xf]
          %v686 = vld [vmem:[%s682 + $0xc] sm:$0xf]
          %s687 = scalar_lea.vmem %s4, 3
          %v688 = vld [vmem:[%s687] sm:$0x1]
          %v690 = vperm.slane %v688, 0
          %v696 = vunpack.c.l.b16 %v683
          %v697 = vunpack.c.l.b16 %v684
          %v698 = vunpack.c.l.b16 %v685
          %v699 = vunpack.c.l.b16 %v686
          %v700 = vpack.c.b16 %v697, %v696
          %v701 = vpack.c.b16 %v699, %v698
          %704 = vmatpush.bf16.msra.mxu0 0
          %705 = vmatpush.bf16.msra.mxu0 0
          %706 = vmatpush.bf16.msra.mxu0 0
          %707 = vmatpush.bf16.msra.mxu0 0
          %708 = vmatpush.bf16.msra.mxu0 0
          %709 = vmatpush.bf16.msra.mxu0 0
          %710 = vmatpush.bf16.msra.mxu0 %v701
          %711 = vmatpush.bf16.msra.mxu0 %v700
          %712 = vmatmul.bf16.gmra.mxu0 %v588
          %v713 = vpop.f32.mrf.mxu0
          %v714 = vadd.f32 %v690, %v713
          %v715 = vpop.f32.mrf.mxu0
          %716 = vdwg.mxu0
          %v717 = vpack.c.bf16 %v714, %v714
          %s718 = scalar_lea.vmem [#allocation2], 12
          %719 = vst.msk [vmem:[%s718] sm:$0xf] %vm604, %v717
          %s720 = scalar_lea.vmem %s3, 64
          %v721 = vld [vmem:[%s720] sm:$0xf]
          %v722 = vld [vmem:[%s720 + $0x4] sm:$0xf]
          %v723 = vld [vmem:[%s720 + $0x8] sm:$0xf]
          %v724 = vld [vmem:[%s720 + $0xc] sm:$0xf]
          %s725 = scalar_lea.vmem %s4, 4
          %v726 = vld [vmem:[%s725] sm:$0x1]
          %v728 = vperm.slane %v726, 0
          %v734 = vunpack.c.l.b16 %v721
          %v735 = vunpack.c.l.b16 %v722
          %v736 = vunpack.c.l.b16 %v723
          %v737 = vunpack.c.l.b16 %v724
          %v738 = vpack.c.b16 %v735, %v734
          %v739 = vpack.c.b16 %v737, %v736
          %742 = vmatpush.bf16.msra.mxu0 0
          %743 = vmatpush.bf16.msra.mxu0 0
          %744 = vmatpush.bf16.msra.mxu0 0
          %745 = vmatpush.bf16.msra.mxu0 0
          %746 = vmatpush.bf16.msra.mxu0 0
          %747 = vmatpush.bf16.msra.mxu0 0
          %748 = vmatpush.bf16.msra.mxu0 %v739
          %749 = vmatpush.bf16.msra.mxu0 %v738
          %750 = vmatmul.bf16.gmra.mxu0 %v588
          %v751 = vpop.f32.mrf.mxu0
          %v752 = vadd.f32 %v728, %v751
          %v753 = vpop.f32.mrf.mxu0
          %754 = vdwg.mxu0
          %v755 = vpack.c.bf16 %v752, %v752
          %s756 = scalar_lea.vmem [#allocation2], 16
          %757 = vst.msk [vmem:[%s756] sm:$0xf] %vm604, %v755
          %s758 = scalar_lea.vmem %s3, 80
          %v759 = vld [vmem:[%s758] sm:$0xf]
          %v760 = vld [vmem:[%s758 + $0x4] sm:$0xf]
          %v761 = vld [vmem:[%s758 + $0x8] sm:$0xf]
          %v762 = vld [vmem:[%s758 + $0xc] sm:$0xf]
          %s763 = scalar_lea.vmem %s4, 5
          %v764 = vld [vmem:[%s763] sm:$0x1]
          %v766 = vperm.slane %v764, 0
          %v772 = vunpack.c.l.b16 %v759
          %v773 = vunpack.c.l.b16 %v760
          %v774 = vunpack.c.l.b16 %v761
          %v775 = vunpack.c.l.b16 %v762
          %v776 = vpack.c.b16 %v773, %v772
          %v777 = vpack.c.b16 %v775, %v774
          %780 = vmatpush.bf16.msra.mxu0 0
          %781 = vmatpush.bf16.msra.mxu0 0
          %782 = vmatpush.bf16.msra.mxu0 0
          %783 = vmatpush.bf16.msra.mxu0 0
          %784 = vmatpush.bf16.msra.mxu0 0
          %785 = vmatpush.bf16.msra.mxu0 0
          %786 = vmatpush.bf16.msra.mxu0 %v777
          %787 = vmatpush.bf16.msra.mxu0 %v776
          %788 = vmatmul.bf16.gmra.mxu0 %v588
          %v789 = vpop.f32.mrf.mxu0
          %v790 = vadd.f32 %v766, %v789
          %v791 = vpop.f32.mrf.mxu0
          %792 = vdwg.mxu0
          %v793 = vpack.c.bf16 %v790, %v790
          %s794 = scalar_lea.vmem [#allocation2], 20
          %795 = vst.msk [vmem:[%s794] sm:$0xf] %vm604, %v793
          %s796 = scalar_lea.vmem %s3, 96
          %v797 = vld [vmem:[%s796] sm:$0xf]
          %v798 = vld [vmem:[%s796 + $0x4] sm:$0xf]
          %v799 = vld [vmem:[%s796 + $0x8] sm:$0xf]
          %v800 = vld [vmem:[%s796 + $0xc] sm:$0xf]
          %s801 = scalar_lea.vmem %s4, 6
          %v802 = vld [vmem:[%s801] sm:$0x1]
          %v804 = vperm.slane %v802, 0
          %v810 = vunpack.c.l.b16 %v797
          %v811 = vunpack.c.l.b16 %v798
          %v812 = vunpack.c.l.b16 %v799
          %v813 = vunpack.c.l.b16 %v800
          %v814 = vpack.c.b16 %v811, %v810
          %v815 = vpack.c.b16 %v813, %v812
          %818 = vmatpush.bf16.msra.mxu0 0
          %819 = vmatpush.bf16.msra.mxu0 0
          %820 = vmatpush.bf16.msra.mxu0 0
          %821 = vmatpush.bf16.msra.mxu0 0
          %822 = vmatpush.bf16.msra.mxu0 0
          %823 = vmatpush.bf16.msra.mxu0 0
          %824 = vmatpush.bf16.msra.mxu0 %v815
          %825 = vmatpush.bf16.msra.mxu0 %v814
          %826 = vmatmul.bf16.gmra.mxu0 %v588
          %v827 = vpop.f32.mrf.mxu0
          %v828 = vadd.f32 %v804, %v827
          %v829 = vpop.f32.mrf.mxu0
          %830 = vdwg.mxu0
          %v831 = vpack.c.bf16 %v828, %v828
          %s832 = scalar_lea.vmem [#allocation2], 24
          %833 = vst.msk [vmem:[%s832] sm:$0xf] %vm604, %v831
          %s834 = scalar_lea.vmem %s3, 112
          %v835 = vld [vmem:[%s834] sm:$0xf]
          %v836 = vld [vmem:[%s834 + $0x4] sm:$0xf]
          %v837 = vld [vmem:[%s834 + $0x8] sm:$0xf]
          %v838 = vld [vmem:[%s834 + $0xc] sm:$0xf]
          %s839 = scalar_lea.vmem %s4, 7
          %v840 = vld [vmem:[%s839] sm:$0x1]
          %v842 = vperm.slane %v840, 0
          %v848 = vunpack.c.l.b16 %v835
          %v849 = vunpack.c.l.b16 %v836
          %v850 = vunpack.c.l.b16 %v837
          %v851 = vunpack.c.l.b16 %v838
          %v852 = vpack.c.b16 %v849, %v848
          %v853 = vpack.c.b16 %v851, %v850
          %856 = vmatpush.bf16.msra.mxu0 0
          %857 = vmatpush.bf16.msra.mxu0 0
          %858 = vmatpush.bf16.msra.mxu0 0
          %859 = vmatpush.bf16.msra.mxu0 0
          %860 = vmatpush.bf16.msra.mxu0 0
          %861 = vmatpush.bf16.msra.mxu0 0
          %862 = vmatpush.bf16.msra.mxu0 %v853
          %863 = vmatpush.bf16.msra.mxu0 %v852
          %864 = vmatmul.bf16.gmra.mxu0 %v588
          %v865 = vpop.f32.mrf.mxu0
          %v866 = vadd.f32 %v842, %v865
          %v867 = vpop.f32.mrf.mxu0
          %868 = vdwg.mxu0
          %v869 = vpack.c.bf16 %v866, %v866
          %s870 = scalar_lea.vmem [#allocation2], 28
          %871 = vst.msk [vmem:[%s870] sm:$0xf] %vm604, %v869
        $region76: #{tpu_custom_call.1} parent=71 // pred_fallthru
          _
        %v872 = vld [vmem:[%s524] sm:$0xff]
        %v873 = vpack.c.bf16 %v872, %v872
        %v874 = vld [vmem:[%s532] sm:$0xff]
        %v875 = vpack.c.bf16 %v874, %v874
        %v876 = vld [vmem:[%s5] sm:$0xf]
        %v877 = vld [vmem:[%s5 + $0x4] sm:$0xf]
        %v878 = vld [vmem:[%s5 + $0x8] sm:$0xf]
        %v879 = vld [vmem:[%s5 + $0xc] sm:$0xf]
        %v880 = vld [vmem:[%s6] sm:$0x1]
        %v882 = vperm.slane %v880, 0
        %v888 = vunpack.c.l.b16 %v876
        %v889 = vunpack.c.l.b16 %v877
        %v890 = vunpack.c.l.b16 %v878
        %v891 = vunpack.c.l.b16 %v879
        %v892 = vpack.c.b16 %v889, %v888
        %v893 = vpack.c.b16 %v891, %v890
        %vm896 = vcmask 261120
        %v898 = vsel %vm896, %v873, 0
        %900 = vmatpush.bf16.msra.mxu0 0
        %901 = vmatpush.bf16.msra.mxu0 0
        %902 = vmatpush.bf16.msra.mxu0 0
        %903 = vmatpush.bf16.msra.mxu0 0
        %904 = vmatpush.bf16.msra.mxu0 0
        %905 = vmatpush.bf16.msra.mxu0 0
        %906 = vmatpush.bf16.msra.mxu0 %v893
        %907 = vmatpush.bf16.msra.mxu0 %v892
        %908 = vmatmul.bf16.gmra.mxu0 %v898
        %v909 = vpop.f32.mrf.mxu0
        %v910 = vadd.f32 %v882, %v909
        %v911 = vpop.f32.mrf.mxu0
        %912 = vdwg.mxu0
        %v913 = vld [vmem:[%s7] sm:$0xf]
        %v914 = vld [vmem:[%s7 + $0x4] sm:$0xf]
        %v915 = vld [vmem:[%s7 + $0x8] sm:$0xf]
        %v916 = vld [vmem:[%s7 + $0xc] sm:$0xf]
        %v917 = vld [vmem:[%s8] sm:$0x1]
        %v919 = vperm.slane %v917, 0
        %v925 = vunpack.c.l.b16 %v913
        %v926 = vunpack.c.l.b16 %v914
        %v927 = vunpack.c.l.b16 %v915
        %v928 = vunpack.c.l.b16 %v916
        %v929 = vpack.c.b16 %v926, %v925
        %v930 = vpack.c.b16 %v928, %v927
        %v934 = vsel %vm896, %v875, 0
        %936 = vmatpush.bf16.msra.mxu0 0
        %937 = vmatpush.bf16.msra.mxu0 0
        %938 = vmatpush.bf16.msra.mxu0 0
        %939 = vmatpush.bf16.msra.mxu0 0
        %940 = vmatpush.bf16.msra.mxu0 0
        %941 = vmatpush.bf16.msra.mxu0 0
        %942 = vmatpush.bf16.msra.mxu0 %v930
        %943 = vmatpush.bf16.msra.mxu0 %v929
        %944 = vmatmul.bf16.gmra.mxu0 %v934
        %v945 = vpop.f32.mrf.mxu0
        %v946 = vadd.f32 %v919, %v945
        %v947 = vpop.f32.mrf.mxu0
        %948 = vdwg.mxu0
        %v949 = vpack.c.bf16 %v910, %v910
        %vm950 = vcmask 27648
        %951 = vst.msk [vmem:[#allocation3] sm:$0xf] %vm950, %v949
        %v952 = vpack.c.bf16 %v946, %v946
        %953 = vst.msk [vmem:[#allocation4] sm:$0xf] %vm950, %v952
        %s954 = scalar_lea.vmem %s5, 16
        %v955 = vld [vmem:[%s954] sm:$0xf]
        %v956 = vld [vmem:[%s954 + $0x4] sm:$0xf]
        %v957 = vld [vmem:[%s954 + $0x8] sm:$0xf]
        %v958 = vld [vmem:[%s954 + $0xc] sm:$0xf]
        %s959 = scalar_lea.vmem %s6, 1
        %v960 = vld [vmem:[%s959] sm:$0x1]
        %v962 = vperm.slane %v960, 0
        %v968 = vunpack.c.l.b16 %v955
        %v969 = vunpack.c.l.b16 %v956
        %v970 = vunpack.c.l.b16 %v957
        %v971 = vunpack.c.l.b16 %v958
        %v972 = vpack.c.b16 %v969, %v968
        %v973 = vpack.c.b16 %v971, %v970
        %976 = vmatpush.bf16.msra.mxu0 0
        %977 = vmatpush.bf16.msra.mxu0 0
        %978 = vmatpush.bf16.msra.mxu0 0
        %979 = vmatpush.bf16.msra.mxu0 0
        %980 = vmatpush.bf16.msra.mxu0 0
        %981 = vmatpush.bf16.msra.mxu0 0
        %982 = vmatpush.bf16.msra.mxu0 %v973
        %983 = vmatpush.bf16.msra.mxu0 %v972
        %984 = vmatmul.bf16.gmra.mxu0 %v898
        %v985 = vpop.f32.mrf.mxu0
        %v986 = vadd.f32 %v962, %v985
        %v987 = vpop.f32.mrf.mxu0
        %988 = vdwg.mxu0
        %s989 = scalar_lea.vmem %s7, 16
        %v990 = vld [vmem:[%s989] sm:$0xf]
        %v991 = vld [vmem:[%s989 + $0x4] sm:$0xf]
        %v992 = vld [vmem:[%s989 + $0x8] sm:$0xf]
        %v993 = vld [vmem:[%s989 + $0xc] sm:$0xf]
        %s994 = scalar_lea.vmem %s8, 1
        %v995 = vld [vmem:[%s994] sm:$0x1]
        %v997 = vperm.slane %v995, 0
        %v1003 = vunpack.c.l.b16 %v990
        %v1004 = vunpack.c.l.b16 %v991
        %v1005 = vunpack.c.l.b16 %v992
        %v1006 = vunpack.c.l.b16 %v993
        %v1007 = vpack.c.b16 %v1004, %v1003
        %v1008 = vpack.c.b16 %v1006, %v1005
        %1011 = vmatpush.bf16.msra.mxu0 0
        %1012 = vmatpush.bf16.msra.mxu0 0
        %1013 = vmatpush.bf16.msra.mxu0 0
        %1014 = vmatpush.bf16.msra.mxu0 0
        %1015 = vmatpush.bf16.msra.mxu0 0
        %1016 = vmatpush.bf16.msra.mxu0 0
        %1017 = vmatpush.bf16.msra.mxu0 %v1008
        %1018 = vmatpush.bf16.msra.mxu0 %v1007
        %1019 = vmatmul.bf16.gmra.mxu0 %v934
        %v1020 = vpop.f32.mrf.mxu0
        %v1021 = vadd.f32 %v997, %v1020
        %v1022 = vpop.f32.mrf.mxu0
        %1023 = vdwg.mxu0
        %v1024 = vpack.c.bf16 %v986, %v986
        %s1025 = scalar_lea.vmem [#allocation3], 4
        %1026 = vst.msk [vmem:[%s1025] sm:$0xf] %vm950, %v1024
        %v1027 = vpack.c.bf16 %v1021, %v1021
        %s1028 = scalar_lea.vmem [#allocation4], 4
        %1029 = vst.msk [vmem:[%s1028] sm:$0xf] %vm950, %v1027
        %s1030 = scalar_lea.vmem %s5, 32
        %v1031 = vld [vmem:[%s1030] sm:$0xf]
        %v1032 = vld [vmem:[%s1030 + $0x4] sm:$0xf]
        %v1033 = vld [vmem:[%s1030 + $0x8] sm:$0xf]
        %v1034 = vld [vmem:[%s1030 + $0xc] sm:$0xf]
        %s1035 = scalar_lea.vmem %s6, 2
        %v1036 = vld [vmem:[%s1035] sm:$0x1]
        %v1038 = vperm.slane %v1036, 0
        %v1044 = vunpack.c.l.b16 %v1031
        %v1045 = vunpack.c.l.b16 %v1032
        %v1046 = vunpack.c.l.b16 %v1033
        %v1047 = vunpack.c.l.b16 %v1034
        %v1048 = vpack.c.b16 %v1045, %v1044
        %v1049 = vpack.c.b16 %v1047, %v1046
        %1052 = vmatpush.bf16.msra.mxu0 0
        %1053 = vmatpush.bf16.msra.mxu0 0
        %1054 = vmatpush.bf16.msra.mxu0 0
        %1055 = vmatpush.bf16.msra.mxu0 0
        %1056 = vmatpush.bf16.msra.mxu0 0
        %1057 = vmatpush.bf16.msra.mxu0 0
        %1058 = vmatpush.bf16.msra.mxu0 %v1049
        %1059 = vmatpush.bf16.msra.mxu0 %v1048
        %1060 = vmatmul.bf16.gmra.mxu0 %v898
        %v1061 = vpop.f32.mrf.mxu0
        %v1062 = vadd.f32 %v1038, %v1061
        %v1063 = vpop.f32.mrf.mxu0
        %1064 = vdwg.mxu0
        %s1065 = scalar_lea.vmem %s7, 32
        %v1066 = vld [vmem:[%s1065] sm:$0xf]
        %v1067 = vld [vmem:[%s1065 + $0x4] sm:$0xf]
        %v1068 = vld [vmem:[%s1065 + $0x8] sm:$0xf]
        %v1069 = vld [vmem:[%s1065 + $0xc] sm:$0xf]
        %s1070 = scalar_lea.vmem %s8, 2
        %v1071 = vld [vmem:[%s1070] sm:$0x1]
        %v1073 = vperm.slane %v1071, 0
        %v1079 = vunpack.c.l.b16 %v1066
        %v1080 = vunpack.c.l.b16 %v1067
        %v1081 = vunpack.c.l.b16 %v1068
        %v1082 = vunpack.c.l.b16 %v1069
        %v1083 = vpack.c.b16 %v1080, %v1079
        %v1084 = vpack.c.b16 %v1082, %v1081
        %1087 = vmatpush.bf16.msra.mxu0 0
        %1088 = vmatpush.bf16.msra.mxu0 0
        %1089 = vmatpush.bf16.msra.mxu0 0
        %1090 = vmatpush.bf16.msra.mxu0 0
        %1091 = vmatpush.bf16.msra.mxu0 0
        %1092 = vmatpush.bf16.msra.mxu0 0
        %1093 = vmatpush.bf16.msra.mxu0 %v1084
        %1094 = vmatpush.bf16.msra.mxu0 %v1083
        %1095 = vmatmul.bf16.gmra.mxu0 %v934
        %v1096 = vpop.f32.mrf.mxu0
        %v1097 = vadd.f32 %v1073, %v1096
        %v1098 = vpop.f32.mrf.mxu0
        %1099 = vdwg.mxu0
        %v1100 = vpack.c.bf16 %v1062, %v1062
        %s1101 = scalar_lea.vmem [#allocation3], 8
        %1102 = vst.msk [vmem:[%s1101] sm:$0xf] %vm950, %v1100
        %v1103 = vpack.c.bf16 %v1097, %v1097
        %s1104 = scalar_lea.vmem [#allocation4], 8
        %1105 = vst.msk [vmem:[%s1104] sm:$0xf] %vm950, %v1103
        %s1106 = scalar_lea.vmem %s5, 48
        %v1107 = vld [vmem:[%s1106] sm:$0xf]
        %v1108 = vld [vmem:[%s1106 + $0x4] sm:$0xf]
        %v1109 = vld [vmem:[%s1106 + $0x8] sm:$0xf]
        %v1110 = vld [vmem:[%s1106 + $0xc] sm:$0xf]
        %s1111 = scalar_lea.vmem %s6, 3
        %v1112 = vld [vmem:[%s1111] sm:$0x1]
        %v1114 = vperm.slane %v1112, 0
        %v1120 = vunpack.c.l.b16 %v1107
        %v1121 = vunpack.c.l.b16 %v1108
        %v1122 = vunpack.c.l.b16 %v1109
        %v1123 = vunpack.c.l.b16 %v1110
        %v1124 = vpack.c.b16 %v1121, %v1120
        %v1125 = vpack.c.b16 %v1123, %v1122
        %1128 = vmatpush.bf16.msra.mxu0 0
        %1129 = vmatpush.bf16.msra.mxu0 0
        %1130 = vmatpush.bf16.msra.mxu0 0
        %1131 = vmatpush.bf16.msra.mxu0 0
        %1132 = vmatpush.bf16.msra.mxu0 0
        %1133 = vmatpush.bf16.msra.mxu0 0
        %1134 = vmatpush.bf16.msra.mxu0 %v1125
        %1135 = vmatpush.bf16.msra.mxu0 %v1124
        %1136 = vmatmul.bf16.gmra.mxu0 %v898
        %v1137 = vpop.f32.mrf.mxu0
        %v1138 = vadd.f32 %v1114, %v1137
        %v1139 = vpop.f32.mrf.mxu0
        %1140 = vdwg.mxu0
        %s1141 = scalar_lea.vmem %s7, 48
        %v1142 = vld [vmem:[%s1141] sm:$0xf]
        %v1143 = vld [vmem:[%s1141 + $0x4] sm:$0xf]
        %v1144 = vld [vmem:[%s1141 + $0x8] sm:$0xf]
        %v1145 = vld [vmem:[%s1141 + $0xc] sm:$0xf]
        %s1146 = scalar_lea.vmem %s8, 3
        %v1147 = vld [vmem:[%s1146] sm:$0x1]
        %v1149 = vperm.slane %v1147, 0
        %v1155 = vunpack.c.l.b16 %v1142
        %v1156 = vunpack.c.l.b16 %v1143
        %v1157 = vunpack.c.l.b16 %v1144
        %v1158 = vunpack.c.l.b16 %v1145
        %v1159 = vpack.c.b16 %v1156, %v1155
        %v1160 = vpack.c.b16 %v1158, %v1157
        %1163 = vmatpush.bf16.msra.mxu0 0
        %1164 = vmatpush.bf16.msra.mxu0 0
        %1165 = vmatpush.bf16.msra.mxu0 0
        %1166 = vmatpush.bf16.msra.mxu0 0
        %1167 = vmatpush.bf16.msra.mxu0 0
        %1168 = vmatpush.bf16.msra.mxu0 0
        %1169 = vmatpush.bf16.msra.mxu0 %v1160
        %1170 = vmatpush.bf16.msra.mxu0 %v1159
        %1171 = vmatmul.bf16.gmra.mxu0 %v934
        %v1172 = vpop.f32.mrf.mxu0
        %v1173 = vadd.f32 %v1149, %v1172
        %v1174 = vpop.f32.mrf.mxu0
        %1175 = vdwg.mxu0
        %v1176 = vpack.c.bf16 %v1138, %v1138
        %s1177 = scalar_lea.vmem [#allocation3], 12
        %1178 = vst.msk [vmem:[%s1177] sm:$0xf] %vm950, %v1176
        %v1179 = vpack.c.bf16 %v1173, %v1173
        %s1180 = scalar_lea.vmem [#allocation4], 12
        %1181 = vst.msk [vmem:[%s1180] sm:$0xf] %vm950, %v1179
        %s1182 = scalar_lea.vmem %s5, 64
        %v1183 = vld [vmem:[%s1182] sm:$0xf]
        %v1184 = vld [vmem:[%s1182 + $0x4] sm:$0xf]
        %v1185 = vld [vmem:[%s1182 + $0x8] sm:$0xf]
        %v1186 = vld [vmem:[%s1182 + $0xc] sm:$0xf]
        %s1187 = scalar_lea.vmem %s6, 4
        %v1188 = vld [vmem:[%s1187] sm:$0x1]
        %v1190 = vperm.slane %v1188, 0
        %v1196 = vunpack.c.l.b16 %v1183
        %v1197 = vunpack.c.l.b16 %v1184
        %v1198 = vunpack.c.l.b16 %v1185
        %v1199 = vunpack.c.l.b16 %v1186
        %v1200 = vpack.c.b16 %v1197, %v1196
        %v1201 = vpack.c.b16 %v1199, %v1198
        %1204 = vmatpush.bf16.msra.mxu0 0
        %1205 = vmatpush.bf16.msra.mxu0 0
        %1206 = vmatpush.bf16.msra.mxu0 0
        %1207 = vmatpush.bf16.msra.mxu0 0
        %1208 = vmatpush.bf16.msra.mxu0 0
        %1209 = vmatpush.bf16.msra.mxu0 0
        %1210 = vmatpush.bf16.msra.mxu0 %v1201
        %1211 = vmatpush.bf16.msra.mxu0 %v1200
        %1212 = vmatmul.bf16.gmra.mxu0 %v898
        %v1213 = vpop.f32.mrf.mxu0
        %v1214 = vadd.f32 %v1190, %v1213
        %v1215 = vpop.f32.mrf.mxu0
        %1216 = vdwg.mxu0
        %s1217 = scalar_lea.vmem %s7, 64
        %v1218 = vld [vmem:[%s1217] sm:$0xf]
        %v1219 = vld [vmem:[%s1217 + $0x4] sm:$0xf]
        %v1220 = vld [vmem:[%s1217 + $0x8] sm:$0xf]
        %v1221 = vld [vmem:[%s1217 + $0xc] sm:$0xf]
        %s1222 = scalar_lea.vmem %s8, 4
        %v1223 = vld [vmem:[%s1222] sm:$0x1]
        %v1225 = vperm.slane %v1223, 0
        %v1231 = vunpack.c.l.b16 %v1218
        %v1232 = vunpack.c.l.b16 %v1219
        %v1233 = vunpack.c.l.b16 %v1220
        %v1234 = vunpack.c.l.b16 %v1221
        %v1235 = vpack.c.b16 %v1232, %v1231
        %v1236 = vpack.c.b16 %v1234, %v1233
        %1239 = vmatpush.bf16.msra.mxu0 0
        %1240 = vmatpush.bf16.msra.mxu0 0
        %1241 = vmatpush.bf16.msra.mxu0 0
        %1242 = vmatpush.bf16.msra.mxu0 0
        %1243 = vmatpush.bf16.msra.mxu0 0
        %1244 = vmatpush.bf16.msra.mxu0 0
        %1245 = vmatpush.bf16.msra.mxu0 %v1236
        %1246 = vmatpush.bf16.msra.mxu0 %v1235
        %1247 = vmatmul.bf16.gmra.mxu0 %v934
        %v1248 = vpop.f32.mrf.mxu0
        %v1249 = vadd.f32 %v1225, %v1248
        %v1250 = vpop.f32.mrf.mxu0
        %1251 = vdwg.mxu0
        %v1252 = vpack.c.bf16 %v1214, %v1214
        %s1253 = scalar_lea.vmem [#allocation3], 16
        %1254 = vst.msk [vmem:[%s1253] sm:$0xf] %vm950, %v1252
        %v1255 = vpack.c.bf16 %v1249, %v1249
        %s1256 = scalar_lea.vmem [#allocation4], 16
        %1257 = vst.msk [vmem:[%s1256] sm:$0xf] %vm950, %v1255
        %s1258 = scalar_lea.vmem %s5, 80
        %v1259 = vld [vmem:[%s1258] sm:$0xf]
        %v1260 = vld [vmem:[%s1258 + $0x4] sm:$0xf]
        %v1261 = vld [vmem:[%s1258 + $0x8] sm:$0xf]
        %v1262 = vld [vmem:[%s1258 + $0xc] sm:$0xf]
        %s1263 = scalar_lea.vmem %s6, 5
        %v1264 = vld [vmem:[%s1263] sm:$0x1]
        %v1266 = vperm.slane %v1264, 0
        %v1272 = vunpack.c.l.b16 %v1259
        %v1273 = vunpack.c.l.b16 %v1260
        %v1274 = vunpack.c.l.b16 %v1261
        %v1275 = vunpack.c.l.b16 %v1262
        %v1276 = vpack.c.b16 %v1273, %v1272
        %v1277 = vpack.c.b16 %v1275, %v1274
        %1280 = vmatpush.bf16.msra.mxu0 0
        %1281 = vmatpush.bf16.msra.mxu0 0
        %1282 = vmatpush.bf16.msra.mxu0 0
        %1283 = vmatpush.bf16.msra.mxu0 0
        %1284 = vmatpush.bf16.msra.mxu0 0
        %1285 = vmatpush.bf16.msra.mxu0 0
        %1286 = vmatpush.bf16.msra.mxu0 %v1277
        %1287 = vmatpush.bf16.msra.mxu0 %v1276
        %1288 = vmatmul.bf16.gmra.mxu0 %v898
        %v1289 = vpop.f32.mrf.mxu0
        %v1290 = vadd.f32 %v1266, %v1289
        %v1291 = vpop.f32.mrf.mxu0
        %1292 = vdwg.mxu0
        %s1293 = scalar_lea.vmem %s7, 80
        %v1294 = vld [vmem:[%s1293] sm:$0xf]
        %v1295 = vld [vmem:[%s1293 + $0x4] sm:$0xf]
        %v1296 = vld [vmem:[%s1293 + $0x8] sm:$0xf]
        %v1297 = vld [vmem:[%s1293 + $0xc] sm:$0xf]
        %s1298 = scalar_lea.vmem %s8, 5
        %v1299 = vld [vmem:[%s1298] sm:$0x1]
        %v1301 = vperm.slane %v1299, 0
        %v1307 = vunpack.c.l.b16 %v1294
        %v1308 = vunpack.c.l.b16 %v1295
        %v1309 = vunpack.c.l.b16 %v1296
        %v1310 = vunpack.c.l.b16 %v1297
        %v1311 = vpack.c.b16 %v1308, %v1307
        %v1312 = vpack.c.b16 %v1310, %v1309
        %1315 = vmatpush.bf16.msra.mxu0 0
        %1316 = vmatpush.bf16.msra.mxu0 0
        %1317 = vmatpush.bf16.msra.mxu0 0
        %1318 = vmatpush.bf16.msra.mxu0 0
        %1319 = vmatpush.bf16.msra.mxu0 0
        %1320 = vmatpush.bf16.msra.mxu0 0
        %1321 = vmatpush.bf16.msra.mxu0 %v1312
        %1322 = vmatpush.bf16.msra.mxu0 %v1311
        %1323 = vmatmul.bf16.gmra.mxu0 %v934
        %v1324 = vpop.f32.mrf.mxu0
        %v1325 = vadd.f32 %v1301, %v1324
        %v1326 = vpop.f32.mrf.mxu0
        %1327 = vdwg.mxu0
        %v1328 = vpack.c.bf16 %v1290, %v1290
        %s1329 = scalar_lea.vmem [#allocation3], 20
        %1330 = vst.msk [vmem:[%s1329] sm:$0xf] %vm950, %v1328
        %v1331 = vpack.c.bf16 %v1325, %v1325
        %s1332 = scalar_lea.vmem [#allocation4], 20
        %1333 = vst.msk [vmem:[%s1332] sm:$0xf] %vm950, %v1331
        %s1334 = scalar_lea.vmem %s5, 96
        %v1335 = vld [vmem:[%s1334] sm:$0xf]
        %v1336 = vld [vmem:[%s1334 + $0x4] sm:$0xf]
        %v1337 = vld [vmem:[%s1334 + $0x8] sm:$0xf]
        %v1338 = vld [vmem:[%s1334 + $0xc] sm:$0xf]
        %s1339 = scalar_lea.vmem %s6, 6
        %v1340 = vld [vmem:[%s1339] sm:$0x1]
        %v1342 = vperm.slane %v1340, 0
        %v1348 = vunpack.c.l.b16 %v1335
        %v1349 = vunpack.c.l.b16 %v1336
        %v1350 = vunpack.c.l.b16 %v1337
        %v1351 = vunpack.c.l.b16 %v1338
        %v1352 = vpack.c.b16 %v1349, %v1348
        %v1353 = vpack.c.b16 %v1351, %v1350
        %1356 = vmatpush.bf16.msra.mxu0 0
        %1357 = vmatpush.bf16.msra.mxu0 0
        %1358 = vmatpush.bf16.msra.mxu0 0
        %1359 = vmatpush.bf16.msra.mxu0 0
        %1360 = vmatpush.bf16.msra.mxu0 0
        %1361 = vmatpush.bf16.msra.mxu0 0
        %1362 = vmatpush.bf16.msra.mxu0 %v1353
        %1363 = vmatpush.bf16.msra.mxu0 %v1352
        %1364 = vmatmul.bf16.gmra.mxu0 %v898
        %v1365 = vpop.f32.mrf.mxu0
        %v1366 = vadd.f32 %v1342, %v1365
        %v1367 = vpop.f32.mrf.mxu0
        %1368 = vdwg.mxu0
        %s1369 = scalar_lea.vmem %s7, 96
        %v1370 = vld [vmem:[%s1369] sm:$0xf]
        %v1371 = vld [vmem:[%s1369 + $0x4] sm:$0xf]
        %v1372 = vld [vmem:[%s1369 + $0x8] sm:$0xf]
        %v1373 = vld [vmem:[%s1369 + $0xc] sm:$0xf]
        %s1374 = scalar_lea.vmem %s8, 6
        %v1375 = vld [vmem:[%s1374] sm:$0x1]
        %v1377 = vperm.slane %v1375, 0
        %v1383 = vunpack.c.l.b16 %v1370
        %v1384 = vunpack.c.l.b16 %v1371
        %v1385 = vunpack.c.l.b16 %v1372
        %v1386 = vunpack.c.l.b16 %v1373
        %v1387 = vpack.c.b16 %v1384, %v1383
        %v1388 = vpack.c.b16 %v1386, %v1385
        %1391 = vmatpush.bf16.msra.mxu0 0
        %1392 = vmatpush.bf16.msra.mxu0 0
        %1393 = vmatpush.bf16.msra.mxu0 0
        %1394 = vmatpush.bf16.msra.mxu0 0
        %1395 = vmatpush.bf16.msra.mxu0 0
        %1396 = vmatpush.bf16.msra.mxu0 0
        %1397 = vmatpush.bf16.msra.mxu0 %v1388
        %1398 = vmatpush.bf16.msra.mxu0 %v1387
        %1399 = vmatmul.bf16.gmra.mxu0 %v934
        %v1400 = vpop.f32.mrf.mxu0
        %v1401 = vadd.f32 %v1377, %v1400
        %v1402 = vpop.f32.mrf.mxu0
        %1403 = vdwg.mxu0
        %v1404 = vpack.c.bf16 %v1366, %v1366
        %s1405 = scalar_lea.vmem [#allocation3], 24
        %1406 = vst.msk [vmem:[%s1405] sm:$0xf] %vm950, %v1404
        %v1407 = vpack.c.bf16 %v1401, %v1401
        %s1408 = scalar_lea.vmem [#allocation4], 24
        %1409 = vst.msk [vmem:[%s1408] sm:$0xf] %vm950, %v1407
        %s1410 = scalar_lea.vmem %s5, 112
        %v1411 = vld [vmem:[%s1410] sm:$0xf]
        %v1412 = vld [vmem:[%s1410 + $0x4] sm:$0xf]
        %v1413 = vld [vmem:[%s1410 + $0x8] sm:$0xf]
        %v1414 = vld [vmem:[%s1410 + $0xc] sm:$0xf]
        %s1415 = scalar_lea.vmem %s6, 7
        %v1416 = vld [vmem:[%s1415] sm:$0x1]
        %v1418 = vperm.slane %v1416, 0
        %v1424 = vunpack.c.l.b16 %v1411
        %v1425 = vunpack.c.l.b16 %v1412
        %v1426 = vunpack.c.l.b16 %v1413
        %v1427 = vunpack.c.l.b16 %v1414
        %v1428 = vpack.c.b16 %v1425, %v1424
        %v1429 = vpack.c.b16 %v1427, %v1426
        %1432 = vmatpush.bf16.msra.mxu0 0
        %1433 = vmatpush.bf16.msra.mxu0 0
        %1434 = vmatpush.bf16.msra.mxu0 0
        %1435 = vmatpush.bf16.msra.mxu0 0
        %1436 = vmatpush.bf16.msra.mxu0 0
        %1437 = vmatpush.bf16.msra.mxu0 0
        %1438 = vmatpush.bf16.msra.mxu0 %v1429
        %1439 = vmatpush.bf16.msra.mxu0 %v1428
        %1440 = vmatmul.bf16.gmra.mxu0 %v898
        %v1441 = vpop.f32.mrf.mxu0
        %v1442 = vadd.f32 %v1418, %v1441
        %v1443 = vpop.f32.mrf.mxu0
        %1444 = vdwg.mxu0
        %s1445 = scalar_lea.vmem %s7, 112
        %v1446 = vld [vmem:[%s1445] sm:$0xf]
        %v1447 = vld [vmem:[%s1445 + $0x4] sm:$0xf]
        %v1448 = vld [vmem:[%s1445 + $0x8] sm:$0xf]
        %v1449 = vld [vmem:[%s1445 + $0xc] sm:$0xf]
        %s1450 = scalar_lea.vmem %s8, 7
        %v1451 = vld [vmem:[%s1450] sm:$0x1]
        %v1453 = vperm.slane %v1451, 0
        %v1459 = vunpack.c.l.b16 %v1446
        %v1460 = vunpack.c.l.b16 %v1447
        %v1461 = vunpack.c.l.b16 %v1448
        %v1462 = vunpack.c.l.b16 %v1449
        %v1463 = vpack.c.b16 %v1460, %v1459
        %v1464 = vpack.c.b16 %v1462, %v1461
        %1467 = vmatpush.bf16.msra.mxu0 0
        %1468 = vmatpush.bf16.msra.mxu0 0
        %1469 = vmatpush.bf16.msra.mxu0 0
        %1470 = vmatpush.bf16.msra.mxu0 0
        %1471 = vmatpush.bf16.msra.mxu0 0
        %1472 = vmatpush.bf16.msra.mxu0 0
        %1473 = vmatpush.bf16.msra.mxu0 %v1464
        %1474 = vmatpush.bf16.msra.mxu0 %v1463
        %1475 = vmatmul.bf16.gmra.mxu0 %v934
        %v1476 = vpop.f32.mrf.mxu0
        %v1477 = vadd.f32 %v1453, %v1476
        %v1478 = vpop.f32.mrf.mxu0
        %1479 = vdwg.mxu0
        %v1480 = vpack.c.bf16 %v1442, %v1442
        %s1481 = scalar_lea.vmem [#allocation3], 28
        %1482 = vst.msk [vmem:[%s1481] sm:$0xf] %vm950, %v1480
        %v1483 = vpack.c.bf16 %v1477, %v1477
        %s1484 = scalar_lea.vmem [#allocation4], 28
        %1485 = vst.msk [vmem:[%s1484] sm:$0xf] %vm950, %v1483
        %v1486 = vld [vmem:[#allocation2] sm:$0xf]
        %v1487 = vld [vmem:[#allocation2 + $0x4] sm:$0xf]
        %v1488 = vld [vmem:[#allocation2 + $0x8] sm:$0xf]
        %v1489 = vld [vmem:[#allocation2 + $0xc] sm:$0xf]
        %v1490 = vld [vmem:[#allocation2 + $0x10] sm:$0xf]
        %v1491 = vld [vmem:[#allocation2 + $0x14] sm:$0xf]
        %v1492 = vld [vmem:[#allocation2 + $0x18] sm:$0xf]
        %v1493 = vld [vmem:[#allocation2 + $0x1c] sm:$0xf]
        %v1494 = vld [vmem:[#allocation3] sm:$0xf]
        %v1495 = vld [vmem:[#allocation3 + $0x4] sm:$0xf]
        %v1496 = vld [vmem:[#allocation3 + $0x8] sm:$0xf]
        %v1497 = vld [vmem:[#allocation3 + $0xc] sm:$0xf]
        %v1498 = vld [vmem:[#allocation3 + $0x10] sm:$0xf]
        %v1499 = vld [vmem:[#allocation3 + $0x14] sm:$0xf]
        %v1500 = vld [vmem:[#allocation3 + $0x18] sm:$0xf]
        %v1501 = vld [vmem:[#allocation3 + $0x1c] sm:$0xf]
        %vm1502 = vcmask 31744
        %v1504 = vsel %vm1502, %v1486, 0
        %v1507 = vsel %vm1502, %v1494, 0
        %1509 = vmatpush.bf16.xpose.msra.mxu0 0
        %1510 = vmatpush.bf16.xpose.msra.mxu0 0
        %1511 = vmatpush.bf16.xpose.msra.mxu0 0
        %1512 = vmatpush.bf16.xpose.msra.mxu0 0
        %1513 = vmatpush.bf16.xpose.msra.mxu0 0
        %1514 = vmatpush.bf16.xpose.msra.mxu0 0
        %1515 = vmatpush.bf16.xpose.msra.mxu0 0
        %1516 = vmatpush.bf16.xpose.msra.mxu0 %v1507
        %1517 = vmatmul.bf16.gmra.mxu0 %v1504
        %v1518 = vpop.f32.mrf.mxu0
        %v1519 = vadd.f32 0.0, %v1518
        %v1520 = vpop.f32.mrf.mxu0
        %1521 = vdwg.mxu0
        %v1523 = vsel %vm1502, %v1487, 0
        %v1526 = vsel %vm1502, %v1495, 0
        %1528 = vmatpush.bf16.xpose.msra.mxu0 0
        %1529 = vmatpush.bf16.xpose.msra.mxu0 0
        %1530 = vmatpush.bf16.xpose.msra.mxu0 0
        %1531 = vmatpush.bf16.xpose.msra.mxu0 0
        %1532 = vmatpush.bf16.xpose.msra.mxu0 0
        %1533 = vmatpush.bf16.xpose.msra.mxu0 0
        %1534 = vmatpush.bf16.xpose.msra.mxu0 0
        %1535 = vmatpush.bf16.xpose.msra.mxu0 %v1526
        %1536 = vmatmul.bf16.gmra.mxu0 %v1523
        %v1537 = vpop.f32.mrf.mxu0
        %v1538 = vadd.f32 0.0, %v1537
        %v1539 = vpop.f32.mrf.mxu0
        %1540 = vdwg.mxu0
        %v1542 = vsel %vm1502, %v1488, 0
        %v1545 = vsel %vm1502, %v1496, 0
        %1547 = vmatpush.bf16.xpose.msra.mxu0 0
        %1548 = vmatpush.bf16.xpose.msra.mxu0 0
        %1549 = vmatpush.bf16.xpose.msra.mxu0 0
        %1550 = vmatpush.bf16.xpose.msra.mxu0 0
        %1551 = vmatpush.bf16.xpose.msra.mxu0 0
        %1552 = vmatpush.bf16.xpose.msra.mxu0 0
        %1553 = vmatpush.bf16.xpose.msra.mxu0 0
        %1554 = vmatpush.bf16.xpose.msra.mxu0 %v1545
        %1555 = vmatmul.bf16.gmra.mxu0 %v1542
        %v1556 = vpop.f32.mrf.mxu0
        %v1557 = vadd.f32 0.0, %v1556
        %v1558 = vpop.f32.mrf.mxu0
        %1559 = vdwg.mxu0
        %v1561 = vsel %vm1502, %v1489, 0
        %v1564 = vsel %vm1502, %v1497, 0
        %1566 = vmatpush.bf16.xpose.msra.mxu0 0
        %1567 = vmatpush.bf16.xpose.msra.mxu0 0
        %1568 = vmatpush.bf16.xpose.msra.mxu0 0
        %1569 = vmatpush.bf16.xpose.msra.mxu0 0
        %1570 = vmatpush.bf16.xpose.msra.mxu0 0
        %1571 = vmatpush.bf16.xpose.msra.mxu0 0
        %1572 = vmatpush.bf16.xpose.msra.mxu0 0
        %1573 = vmatpush.bf16.xpose.msra.mxu0 %v1564
        %1574 = vmatmul.bf16.gmra.mxu0 %v1561
        %v1575 = vpop.f32.mrf.mxu0
        %v1576 = vadd.f32 0.0, %v1575
        %v1577 = vpop.f32.mrf.mxu0
        %1578 = vdwg.mxu0
        %v1580 = vsel %vm1502, %v1490, 0
        %v1583 = vsel %vm1502, %v1498, 0
        %1585 = vmatpush.bf16.xpose.msra.mxu0 0
        %1586 = vmatpush.bf16.xpose.msra.mxu0 0
        %1587 = vmatpush.bf16.xpose.msra.mxu0 0
        %1588 = vmatpush.bf16.xpose.msra.mxu0 0
        %1589 = vmatpush.bf16.xpose.msra.mxu0 0
        %1590 = vmatpush.bf16.xpose.msra.mxu0 0
        %1591 = vmatpush.bf16.xpose.msra.mxu0 0
        %1592 = vmatpush.bf16.xpose.msra.mxu0 %v1583
        %1593 = vmatmul.bf16.gmra.mxu0 %v1580
        %v1594 = vpop.f32.mrf.mxu0
        %v1595 = vadd.f32 0.0, %v1594
        %v1596 = vpop.f32.mrf.mxu0
        %1597 = vdwg.mxu0
        %v1599 = vsel %vm1502, %v1491, 0
        %v1602 = vsel %vm1502, %v1499, 0
        %1604 = vmatpush.bf16.xpose.msra.mxu0 0
        %1605 = vmatpush.bf16.xpose.msra.mxu0 0
        %1606 = vmatpush.bf16.xpose.msra.mxu0 0
        %1607 = vmatpush.bf16.xpose.msra.mxu0 0
        %1608 = vmatpush.bf16.xpose.msra.mxu0 0
        %1609 = vmatpush.bf16.xpose.msra.mxu0 0
        %1610 = vmatpush.bf16.xpose.msra.mxu0 0
        %1611 = vmatpush.bf16.xpose.msra.mxu0 %v1602
        %1612 = vmatmul.bf16.gmra.mxu0 %v1599
        %v1613 = vpop.f32.mrf.mxu0
        %v1614 = vadd.f32 0.0, %v1613
        %v1615 = vpop.f32.mrf.mxu0
        %1616 = vdwg.mxu0
        %v1618 = vsel %vm1502, %v1492, 0
        %v1621 = vsel %vm1502, %v1500, 0
        %1623 = vmatpush.bf16.xpose.msra.mxu0 0
        %1624 = vmatpush.bf16.xpose.msra.mxu0 0
        %1625 = vmatpush.bf16.xpose.msra.mxu0 0
        %1626 = vmatpush.bf16.xpose.msra.mxu0 0
        %1627 = vmatpush.bf16.xpose.msra.mxu0 0
        %1628 = vmatpush.bf16.xpose.msra.mxu0 0
        %1629 = vmatpush.bf16.xpose.msra.mxu0 0
        %1630 = vmatpush.bf16.xpose.msra.mxu0 %v1621
        %1631 = vmatmul.bf16.gmra.mxu0 %v1618
        %v1632 = vpop.f32.mrf.mxu0
        %v1633 = vadd.f32 0.0, %v1632
        %v1634 = vpop.f32.mrf.mxu0
        %1635 = vdwg.mxu0
        %v1637 = vsel %vm1502, %v1493, 0
        %v1640 = vsel %vm1502, %v1501, 0
        %1642 = vmatpush.bf16.xpose.msra.mxu0 0
        %1643 = vmatpush.bf16.xpose.msra.mxu0 0
        %1644 = vmatpush.bf16.xpose.msra.mxu0 0
        %1645 = vmatpush.bf16.xpose.msra.mxu0 0
        %1646 = vmatpush.bf16.xpose.msra.mxu0 0
        %1647 = vmatpush.bf16.xpose.msra.mxu0 0
        %1648 = vmatpush.bf16.xpose.msra.mxu0 0
        %1649 = vmatpush.bf16.xpose.msra.mxu0 %v1640
        %1650 = vmatmul.bf16.gmra.mxu0 %v1637
        %v1651 = vpop.f32.mrf.mxu0
        %v1652 = vadd.f32 0.0, %v1651
        %v1653 = vpop.f32.mrf.mxu0
        %1654 = vdwg.mxu0
        %v1655 = vld [vmem:[#allocation5] sm:$0xff]
        %v1656 = vld [vmem:[#allocation5 + $0x8] sm:$0xff]
        %v1657 = vld [vmem:[#allocation5 + $0x10] sm:$0xff]
        %v1658 = vld [vmem:[#allocation5 + $0x18] sm:$0xff]
        %v1659 = vld [vmem:[#allocation5 + $0x20] sm:$0xff]
        %v1660 = vld [vmem:[#allocation5 + $0x28] sm:$0xff]
        %v1661 = vld [vmem:[#allocation5 + $0x30] sm:$0xff]
        %v1662 = vld [vmem:[#allocation5 + $0x38] sm:$0xff]
        %vm1663 = vcmask 64512
        %v1664 = vsel %vm1663, %v1519, -inf
        %1665 = vmax.xlane.f32.xlu0 %v1664
        %v1666 = vpop.xlane.xlu0 %1665
        %v1667 = vsel %vm1663, %v1538, -inf
        %1668 = vmax.xlane.f32.xlu0 %v1667
        %v1669 = vpop.xlane.xlu0 %1668
        %v1670 = vsel %vm1663, %v1557, -inf
        %1671 = vmax.xlane.f32.xlu0 %v1670
        %v1672 = vpop.xlane.xlu0 %1671
        %v1673 = vsel %vm1663, %v1576, -inf
        %1674 = vmax.xlane.f32.xlu0 %v1673
        %v1675 = vpop.xlane.xlu0 %1674
        %v1676 = vsel %vm1663, %v1595, -inf
        %1677 = vmax.xlane.f32.xlu0 %v1676
        %v1678 = vpop.xlane.xlu0 %1677
        %v1679 = vsel %vm1663, %v1614, -inf
        %1680 = vmax.xlane.f32.xlu0 %v1679
        %v1681 = vpop.xlane.xlu0 %1680
        %v1682 = vsel %vm1663, %v1633, -inf
        %1683 = vmax.xlane.f32.xlu0 %v1682
        %v1684 = vpop.xlane.xlu0 %1683
        %v1685 = vsel %vm1663, %v1652, -inf
        %1686 = vmax.xlane.f32.xlu0 %v1685
        %v1687 = vpop.xlane.xlu0 %1686
        %v1688 = vmax.f32 %v1655, %v1666
        %v1689 = vmax.f32 %v1656, %v1669
        %v1690 = vmax.f32 %v1657, %v1672
        %v1691 = vmax.f32 %v1658, %v1675
        %v1692 = vmax.f32 %v1659, %v1678
        %v1693 = vmax.f32 %v1660, %v1681
        %v1694 = vmax.f32 %v1661, %v1684
        %v1695 = vmax.f32 %v1662, %v1687
        %v1696 = vsub.f32 %v1655, %v1688
        %v1697 = vsub.f32 %v1656, %v1689
        %v1698 = vsub.f32 %v1657, %v1690
        %v1699 = vsub.f32 %v1658, %v1691
        %v1700 = vsub.f32 %v1659, %v1692
        %v1701 = vsub.f32 %v1660, %v1693
        %v1702 = vsub.f32 %v1661, %v1694
        %v1703 = vsub.f32 %v1662, %v1695
        %v1704 = vmul.f32 %v1696, 1.442695
        %v1705 = vpow.pop %v1704
        %v1706 = vmul.f32 %v1697, 1.442695
        %v1707 = vpow.pop %v1706
        %v1708 = vmul.f32 %v1698, 1.442695
        %v1709 = vpow.pop %v1708
        %v1710 = vmul.f32 %v1699, 1.442695
        %v1711 = vpow.pop %v1710
        %v1712 = vmul.f32 %v1700, 1.442695
        %v1713 = vpow.pop %v1712
        %v1714 = vmul.f32 %v1701, 1.442695
        %v1715 = vpow.pop %v1714
        %v1716 = vmul.f32 %v1702, 1.442695
        %v1717 = vpow.pop %v1716
        %v1718 = vmul.f32 %v1703, 1.442695
        %v1719 = vpow.pop %v1718
        %1721 = vset.pattern.permute.xlu0 0
        %1722 = vperm.xlu0 %1721, %v1688
        %v1723 = vpop.permute.xlu0 %1722
        %1726 = vset.pattern.permute.xlu0 0
        %1727 = vperm.xlu0 %1726, %v1689
        %v1728 = vpop.permute.xlu0 %1727
        %1731 = vset.pattern.permute.xlu0 0
        %1732 = vperm.xlu0 %1731, %v1690
        %v1733 = vpop.permute.xlu0 %1732
        %1736 = vset.pattern.permute.xlu0 0
        %1737 = vperm.xlu0 %1736, %v1691
        %v1738 = vpop.permute.xlu0 %1737
        %1741 = vset.pattern.permute.xlu0 0
        %1742 = vperm.xlu0 %1741, %v1692
        %v1743 = vpop.permute.xlu0 %1742
        %1746 = vset.pattern.permute.xlu0 0
        %1747 = vperm.xlu0 %1746, %v1693
        %v1748 = vpop.permute.xlu0 %1747
        %1751 = vset.pattern.permute.xlu0 0
        %1752 = vperm.xlu0 %1751, %v1694
        %v1753 = vpop.permute.xlu0 %1752
        %1756 = vset.pattern.permute.xlu0 0
        %1757 = vperm.xlu0 %1756, %v1695
        %v1758 = vpop.permute.xlu0 %1757
        %v1760 = vsub.f32 %v1519, %v1723
        %v1761 = vsub.f32 %v1538, %v1728
        %v1762 = vsub.f32 %v1557, %v1733
        %v1763 = vsub.f32 %v1576, %v1738
        %v1764 = vsub.f32 %v1595, %v1743
        %v1765 = vsub.f32 %v1614, %v1748
        %v1766 = vsub.f32 %v1633, %v1753
        %v1767 = vsub.f32 %v1652, %v1758
        %v1768 = vmul.f32 %v1760, 1.442695
        %v1769 = vpow.pop %v1768
        %v1770 = vmul.f32 %v1761, 1.442695
        %v1771 = vpow.pop %v1770
        %v1772 = vmul.f32 %v1762, 1.442695
        %v1773 = vpow.pop %v1772
        %v1774 = vmul.f32 %v1763, 1.442695
        %v1775 = vpow.pop %v1774
        %v1776 = vmul.f32 %v1764, 1.442695
        %v1777 = vpow.pop %v1776
        %v1778 = vmul.f32 %v1765, 1.442695
        %v1779 = vpow.pop %v1778
        %v1780 = vmul.f32 %v1766, 1.442695
        %v1781 = vpow.pop %v1780
        %v1782 = vmul.f32 %v1767, 1.442695
        %v1783 = vpow.pop %v1782
        %v1784 = vld [vmem:[#allocation6] sm:$0xff]
        %v1785 = vld [vmem:[#allocation6 + $0x8] sm:$0xff]
        %v1786 = vld [vmem:[#allocation6 + $0x10] sm:$0xff]
        %v1787 = vld [vmem:[#allocation6 + $0x18] sm:$0xff]
        %v1788 = vld [vmem:[#allocation6 + $0x20] sm:$0xff]
        %v1789 = vld [vmem:[#allocation6 + $0x28] sm:$0xff]
        %v1790 = vld [vmem:[#allocation6 + $0x30] sm:$0xff]
        %v1791 = vld [vmem:[#allocation6 + $0x38] sm:$0xff]
        %v1792 = vmul.f32 %v1705, %v1784
        %v1793 = vmul.f32 %v1707, %v1785
        %v1794 = vmul.f32 %v1709, %v1786
        %v1795 = vmul.f32 %v1711, %v1787
        %v1796 = vmul.f32 %v1713, %v1788
        %v1797 = vmul.f32 %v1715, %v1789
        %v1798 = vmul.f32 %v1717, %v1790
        %v1799 = vmul.f32 %v1719, %v1791
        %v1800 = vsel %vm1663, %v1769, 0.0
        %1801 = vadd.xlane.f32.xlu0 %v1800
        %v1802 = vpop.xlane.xlu0 %1801
        %v1803 = vsel %vm1663, %v1771, 0.0
        %1804 = vadd.xlane.f32.xlu0 %v1803
        %v1805 = vpop.xlane.xlu0 %1804
        %v1806 = vsel %vm1663, %v1773, 0.0
        %1807 = vadd.xlane.f32.xlu0 %v1806
        %v1808 = vpop.xlane.xlu0 %1807
        %v1809 = vsel %vm1663, %v1775, 0.0
        %1810 = vadd.xlane.f32.xlu0 %v1809
        %v1811 = vpop.xlane.xlu0 %1810
        %v1812 = vsel %vm1663, %v1777, 0.0
        %1813 = vadd.xlane.f32.xlu0 %v1812
        %v1814 = vpop.xlane.xlu0 %1813
        %v1815 = vsel %vm1663, %v1779, 0.0
        %1816 = vadd.xlane.f32.xlu0 %v1815
        %v1817 = vpop.xlane.xlu0 %1816
        %v1818 = vsel %vm1663, %v1781, 0.0
        %1819 = vadd.xlane.f32.xlu0 %v1818
        %v1820 = vpop.xlane.xlu0 %1819
        %v1821 = vsel %vm1663, %v1783, 0.0
        %1822 = vadd.xlane.f32.xlu0 %v1821
        %v1823 = vpop.xlane.xlu0 %1822
        %v1824 = vadd.f32 %v1792, %v1802
        %v1825 = vadd.f32 %v1793, %v1805
        %v1826 = vadd.f32 %v1794, %v1808
        %v1827 = vadd.f32 %v1795, %v1811
        %v1828 = vadd.f32 %v1796, %v1814
        %v1829 = vadd.f32 %v1797, %v1817
        %v1830 = vadd.f32 %v1798, %v1820
        %v1831 = vadd.f32 %v1799, %v1823
        %vm1832 = vcmask 7168
        %1833 = vst.msk [vmem:[#allocation6] sm:$0xff] %vm1832, %v1824
        %1834 = vst.msk [vmem:[#allocation6 + $0x8] sm:$0xff] %vm1832, %v1825
        %1835 = vst.msk [vmem:[#allocation6 + $0x10] sm:$0xff] %vm1832, %v1826
        %1836 = vst.msk [vmem:[#allocation6 + $0x18] sm:$0xff] %vm1832, %v1827
        %1837 = vst.msk [vmem:[#allocation6 + $0x20] sm:$0xff] %vm1832, %v1828
        %1838 = vst.msk [vmem:[#allocation6 + $0x28] sm:$0xff] %vm1832, %v1829
        %1839 = vst.msk [vmem:[#allocation6 + $0x30] sm:$0xff] %vm1832, %v1830
        %1840 = vst.msk [vmem:[#allocation6 + $0x38] sm:$0xff] %vm1832, %v1831
        %v1841 = vld [vmem:[#allocation7] sm:$0xff]
        %v1842 = vld [vmem:[#allocation7 + $0x8] sm:$0xff]
        %v1843 = vld [vmem:[#allocation7 + $0x10] sm:$0xff]
        %v1844 = vld [vmem:[#allocation7 + $0x18] sm:$0xff]
        %v1845 = vld [vmem:[#allocation7 + $0x20] sm:$0xff]
        %v1846 = vld [vmem:[#allocation7 + $0x28] sm:$0xff]
        %v1847 = vld [vmem:[#allocation7 + $0x30] sm:$0xff]
        %v1848 = vld [vmem:[#allocation7 + $0x38] sm:$0xff]
        %1850 = vset.pattern.permute.xlu0 0
        %1851 = vperm.xlu0 %1850, %v1705
        %v1852 = vpop.permute.xlu0 %1851
        %1855 = vset.pattern.permute.xlu0 0
        %1856 = vperm.xlu0 %1855, %v1707
        %v1857 = vpop.permute.xlu0 %1856
        %1860 = vset.pattern.permute.xlu0 0
        %1861 = vperm.xlu0 %1860, %v1709
        %v1862 = vpop.permute.xlu0 %1861
        %1865 = vset.pattern.permute.xlu0 0
        %1866 = vperm.xlu0 %1865, %v1711
        %v1867 = vpop.permute.xlu0 %1866
        %1870 = vset.pattern.permute.xlu0 0
        %1871 = vperm.xlu0 %1870, %v1713
        %v1872 = vpop.permute.xlu0 %1871
        %1875 = vset.pattern.permute.xlu0 0
        %1876 = vperm.xlu0 %1875, %v1715
        %v1877 = vpop.permute.xlu0 %1876
        %1880 = vset.pattern.permute.xlu0 0
        %1881 = vperm.xlu0 %1880, %v1717
        %v1882 = vpop.permute.xlu0 %1881
        %1885 = vset.pattern.permute.xlu0 0
        %1886 = vperm.xlu0 %1885, %v1719
        %v1887 = vpop.permute.xlu0 %1886
        %v1889 = vmul.f32 %v1852, %v1841
        %v1890 = vmul.f32 %v1857, %v1842
        %v1891 = vmul.f32 %v1862, %v1843
        %v1892 = vmul.f32 %v1867, %v1844
        %v1893 = vmul.f32 %v1872, %v1845
        %v1894 = vmul.f32 %v1877, %v1846
        %v1895 = vmul.f32 %v1882, %v1847
        %v1896 = vmul.f32 %v1887, %v1848
        %v1897 = vpack.c.bf16 %v1769, %v1769
        %v1898 = vpack.c.bf16 %v1771, %v1771
        %v1899 = vpack.c.bf16 %v1773, %v1773
        %v1900 = vpack.c.bf16 %v1775, %v1775
        %v1901 = vpack.c.bf16 %v1777, %v1777
        %v1902 = vpack.c.bf16 %v1779, %v1779
        %v1903 = vpack.c.bf16 %v1781, %v1781
        %v1904 = vpack.c.bf16 %v1783, %v1783
        %v1905 = vld [vmem:[#allocation4] sm:$0xf]
        %v1906 = vld [vmem:[#allocation4 + $0x4] sm:$0xf]
        %v1907 = vld [vmem:[#allocation4 + $0x8] sm:$0xf]
        %v1908 = vld [vmem:[#allocation4 + $0xc] sm:$0xf]
        %v1909 = vld [vmem:[#allocation4 + $0x10] sm:$0xf]
        %v1910 = vld [vmem:[#allocation4 + $0x14] sm:$0xf]
        %v1911 = vld [vmem:[#allocation4 + $0x18] sm:$0xf]
        %v1912 = vld [vmem:[#allocation4 + $0x1c] sm:$0xf]
        %v1914 = vsel %vm1663, %v1897, 0
        %vm1916 = vcmask 1043456
        %v1918 = vsel %vm1916, %v1905, 0
        %1920 = vmatpush.bf16.msra.mxu0 0
        %1921 = vmatpush.bf16.msra.mxu0 0
        %1922 = vmatpush.bf16.msra.mxu0 0
        %1923 = vmatpush.bf16.msra.mxu0 0
        %1924 = vmatpush.bf16.msra.mxu0 0
        %1925 = vmatpush.bf16.msra.mxu0 0
        %1926 = vmatpush.bf16.msra.mxu0 0
        %1927 = vmatpush.bf16.msra.mxu0 %v1918
        %1928 = vmatmul.bf16.gmra.mxu0 %v1914
        %v1929 = vpop.f32.mrf.mxu0
        %v1930 = vadd.f32 0.0, %v1929
        %v1931 = vpop.f32.mrf.mxu0
        %1932 = vdwg.mxu0
        %v1934 = vsel %vm1663, %v1898, 0
        %v1937 = vsel %vm1916, %v1906, 0
        %1939 = vmatpush.bf16.msra.mxu0 0
        %1940 = vmatpush.bf16.msra.mxu0 0
        %1941 = vmatpush.bf16.msra.mxu0 0
        %1942 = vmatpush.bf16.msra.mxu0 0
        %1943 = vmatpush.bf16.msra.mxu0 0
        %1944 = vmatpush.bf16.msra.mxu0 0
        %1945 = vmatpush.bf16.msra.mxu0 0
        %1946 = vmatpush.bf16.msra.mxu0 %v1937
        %1947 = vmatmul.bf16.gmra.mxu0 %v1934
        %v1948 = vpop.f32.mrf.mxu0
        %v1949 = vadd.f32 0.0, %v1948
        %v1950 = vpop.f32.mrf.mxu0
        %1951 = vdwg.mxu0
        %v1953 = vsel %vm1663, %v1899, 0
        %v1956 = vsel %vm1916, %v1907, 0
        %1958 = vmatpush.bf16.msra.mxu0 0
        %1959 = vmatpush.bf16.msra.mxu0 0
        %1960 = vmatpush.bf16.msra.mxu0 0
        %1961 = vmatpush.bf16.msra.mxu0 0
        %1962 = vmatpush.bf16.msra.mxu0 0
        %1963 = vmatpush.bf16.msra.mxu0 0
        %1964 = vmatpush.bf16.msra.mxu0 0
        %1965 = vmatpush.bf16.msra.mxu0 %v1956
        %1966 = vmatmul.bf16.gmra.mxu0 %v1953
        %v1967 = vpop.f32.mrf.mxu0
        %v1968 = vadd.f32 0.0, %v1967
        %v1969 = vpop.f32.mrf.mxu0
        %1970 = vdwg.mxu0
        %v1972 = vsel %vm1663, %v1900, 0
        %v1975 = vsel %vm1916, %v1908, 0
        %1977 = vmatpush.bf16.msra.mxu0 0
        %1978 = vmatpush.bf16.msra.mxu0 0
        %1979 = vmatpush.bf16.msra.mxu0 0
        %1980 = vmatpush.bf16.msra.mxu0 0
        %1981 = vmatpush.bf16.msra.mxu0 0
        %1982 = vmatpush.bf16.msra.mxu0 0
        %1983 = vmatpush.bf16.msra.mxu0 0
        %1984 = vmatpush.bf16.msra.mxu0 %v1975
        %1985 = vmatmul.bf16.gmra.mxu0 %v1972
        %v1986 = vpop.f32.mrf.mxu0
        %v1987 = vadd.f32 0.0, %v1986
        %v1988 = vpop.f32.mrf.mxu0
        %1989 = vdwg.mxu0
        %v1991 = vsel %vm1663, %v1901, 0
        %v1994 = vsel %vm1916, %v1909, 0
        %1996 = vmatpush.bf16.msra.mxu0 0
        %1997 = vmatpush.bf16.msra.mxu0 0
        %1998 = vmatpush.bf16.msra.mxu0 0
        %1999 = vmatpush.bf16.msra.mxu0 0
        %2000 = vmatpush.bf16.msra.mxu0 0
        %2001 = vmatpush.bf16.msra.mxu0 0
        %2002 = vmatpush.bf16.msra.mxu0 0
        %2003 = vmatpush.bf16.msra.mxu0 %v1994
        %2004 = vmatmul.bf16.gmra.mxu0 %v1991
        %v2005 = vpop.f32.mrf.mxu0
        %v2006 = vadd.f32 0.0, %v2005
        %v2007 = vpop.f32.mrf.mxu0
        %2008 = vdwg.mxu0
        %v2010 = vsel %vm1663, %v1902, 0
        %v2013 = vsel %vm1916, %v1910, 0
        %2015 = vmatpush.bf16.msra.mxu0 0
        %2016 = vmatpush.bf16.msra.mxu0 0
        %2017 = vmatpush.bf16.msra.mxu0 0
        %2018 = vmatpush.bf16.msra.mxu0 0
        %2019 = vmatpush.bf16.msra.mxu0 0
        %2020 = vmatpush.bf16.msra.mxu0 0
        %2021 = vmatpush.bf16.msra.mxu0 0
        %2022 = vmatpush.bf16.msra.mxu0 %v2013
        %2023 = vmatmul.bf16.gmra.mxu0 %v2010
        %v2024 = vpop.f32.mrf.mxu0
        %v2025 = vadd.f32 0.0, %v2024
        %v2026 = vpop.f32.mrf.mxu0
        %2027 = vdwg.mxu0
        %v2029 = vsel %vm1663, %v1903, 0
        %v2032 = vsel %vm1916, %v1911, 0
        %2034 = vmatpush.bf16.msra.mxu0 0
        %2035 = vmatpush.bf16.msra.mxu0 0
        %2036 = vmatpush.bf16.msra.mxu0 0
        %2037 = vmatpush.bf16.msra.mxu0 0
        %2038 = vmatpush.bf16.msra.mxu0 0
        %2039 = vmatpush.bf16.msra.mxu0 0
        %2040 = vmatpush.bf16.msra.mxu0 0
        %2041 = vmatpush.bf16.msra.mxu0 %v2032
        %2042 = vmatmul.bf16.gmra.mxu0 %v2029
        %v2043 = vpop.f32.mrf.mxu0
        %v2044 = vadd.f32 0.0, %v2043
        %v2045 = vpop.f32.mrf.mxu0
        %2046 = vdwg.mxu0
        %v2048 = vsel %vm1663, %v1904, 0
        %v2051 = vsel %vm1916, %v1912, 0
        %2053 = vmatpush.bf16.msra.mxu0 0
        %2054 = vmatpush.bf16.msra.mxu0 0
        %2055 = vmatpush.bf16.msra.mxu0 0
        %2056 = vmatpush.bf16.msra.mxu0 0
        %2057 = vmatpush.bf16.msra.mxu0 0
        %2058 = vmatpush.bf16.msra.mxu0 0
        %2059 = vmatpush.bf16.msra.mxu0 0
        %2060 = vmatpush.bf16.msra.mxu0 %v2051
        %2061 = vmatmul.bf16.gmra.mxu0 %v2048
        %v2062 = vpop.f32.mrf.mxu0
        %v2063 = vadd.f32 0.0, %v2062
        %v2064 = vpop.f32.mrf.mxu0
        %2065 = vdwg.mxu0
        %v2066 = vadd.f32 %v1889, %v1930
        %v2067 = vadd.f32 %v1890, %v1949
        %v2068 = vadd.f32 %v1891, %v1968
        %v2069 = vadd.f32 %v1892, %v1987
        %v2070 = vadd.f32 %v1893, %v2006
        %v2071 = vadd.f32 %v1894, %v2025
        %v2072 = vadd.f32 %v1895, %v2044
        %v2073 = vadd.f32 %v1896, %v2063
        %2074 = vst.msk [vmem:[#allocation7] sm:$0xff] %vm1502, %v2066
        %2075 = vst.msk [vmem:[#allocation7 + $0x8] sm:$0xff] %vm1502, %v2067
        %2076 = vst.msk [vmem:[#allocation7 + $0x10] sm:$0xff] %vm1502, %v2068
        %2077 = vst.msk [vmem:[#allocation7 + $0x18] sm:$0xff] %vm1502, %v2069
        %2078 = vst.msk [vmem:[#allocation7 + $0x20] sm:$0xff] %vm1502, %v2070
        %2079 = vst.msk [vmem:[#allocation7 + $0x28] sm:$0xff] %vm1502, %v2071
        %2080 = vst.msk [vmem:[#allocation7 + $0x30] sm:$0xff] %vm1502, %v2072
        %2081 = vst.msk [vmem:[#allocation7 + $0x38] sm:$0xff] %vm1502, %v2073
        %2082 = vst.msk [vmem:[#allocation5] sm:$0xff] %vm1832, %v1688
        %2083 = vst.msk [vmem:[#allocation5 + $0x8] sm:$0xff] %vm1832, %v1689
        %2084 = vst.msk [vmem:[#allocation5 + $0x10] sm:$0xff] %vm1832, %v1690
        %2085 = vst.msk [vmem:[#allocation5 + $0x18] sm:$0xff] %vm1832, %v1691
        %2086 = vst.msk [vmem:[#allocation5 + $0x20] sm:$0xff] %vm1832, %v1692
        %2087 = vst.msk [vmem:[#allocation5 + $0x28] sm:$0xff] %vm1832, %v1693
        %2088 = vst.msk [vmem:[#allocation5 + $0x30] sm:$0xff] %vm1832, %v1694
        %2089 = vst.msk [vmem:[#allocation5 + $0x38] sm:$0xff] %vm1832, %v1695
        %p2090 = scmp.eq.s32.totalorder %s34, 1
        // Predicated region
        $region77: #{tpu_custom_call.1} parent=71 // pred_check
          %p2091 = pneg %p2090
        $region78: #{tpu_custom_call.1} parent=71 // pred_check_branch
          %2093 = sbr.rel (%p2091) target = $region80
        $region79: #{tpu_custom_call.1} parent=71 // pred_region
          %v2094 = vld [vmem:[%s10] sm:$0x1]
          %v2095 = vld [vmem:[%s11] sm:$0x1]
          %v2096 = vld [vmem:[%s12] sm:$0x1]
          %v2097 = vld [vmem:[#allocation6] sm:$0xff]
          %v2098 = vrcp.pop %v2097
          %v2099 = vld [vmem:[#allocation7] sm:$0xff]
          %2101 = vset.pattern.permute.xlu0 0
          %2102 = vperm.xlu0 %2101, %v2098
          %v2103 = vpop.permute.xlu0 %2102
          %v2105 = vmul.f32 %v2099, %v2103
          %v2106 = vpack.c.bf16 %v2105, %v2105
          %v2107 = vld [vmem:[%s9] sm:$0x3]
          %v2109 = vsel %vm1502, %v2106, 0
          %vm2111 = vcmask 1041408
          %v2113 = vsel %vm2111, %v2107, 0
          %2115 = vmatpush.bf16.msra.mxu0 0
          %2116 = vmatpush.bf16.msra.mxu0 0
          %2117 = vmatpush.bf16.msra.mxu0 0
          %2118 = vmatpush.bf16.msra.mxu0 0
          %2119 = vmatpush.bf16.msra.mxu0 0
          %2120 = vmatpush.bf16.msra.mxu0 0
          %2121 = vmatpush.bf16.msra.mxu0 0
          %2122 = vmatpush.bf16.msra.mxu0 %v2113
          %2123 = vmatmul.bf16.gmra.mxu0 %v2109
          %v2124 = vpop.f32.mrf.mxu0
          %v2125 = vadd.f32 0.0, %v2124
          %v2126 = vpop.f32.mrf.mxu0
          %2127 = vdwg.mxu0
          %v2129 = vperm.slane %v2094, 0
          %v2131 = vadd.f32 %v2129, %v2125
          %s2132 = scalar_lea.vmem [#allocation6], 8
          %v2133 = vld [vmem:[%s2132] sm:$0xff]
          %v2134 = vrcp.pop %v2133
          %s2135 = scalar_lea.vmem [#allocation7], 8
          %v2136 = vld [vmem:[%s2135] sm:$0xff]
          %2138 = vset.pattern.permute.xlu0 0
          %2139 = vperm.xlu0 %2138, %v2134
          %v2140 = vpop.permute.xlu0 %2139
          %v2142 = vmul.f32 %v2136, %v2140
          %v2143 = vpack.c.bf16 %v2142, %v2142
          %s2144 = scalar_lea.vmem %s9, 2
          %v2145 = vld [vmem:[%s2144] sm:$0x3]
          %v2147 = vsel %vm1502, %v2143, 0
          %v2150 = vsel %vm2111, %v2145, 0
          %2152 = vmatpush.bf16.msra.mxu0 0
          %2153 = vmatpush.bf16.msra.mxu0 0
          %2154 = vmatpush.bf16.msra.mxu0 0
          %2155 = vmatpush.bf16.msra.mxu0 0
          %2156 = vmatpush.bf16.msra.mxu0 0
          %2157 = vmatpush.bf16.msra.mxu0 0
          %2158 = vmatpush.bf16.msra.mxu0 0
          %2159 = vmatpush.bf16.msra.mxu0 %v2150
          %2160 = vmatmul.bf16.gmra.mxu0 %v2147
          %v2161 = vpop.f32.mrf.mxu0
          %v2162 = vadd.f32 0.0, %v2161
          %v2163 = vpop.f32.mrf.mxu0
          %2164 = vdwg.mxu0
          %v2165 = vadd.f32 %v2131, %v2162
          %s2166 = scalar_lea.vmem [#allocation6], 16
          %v2167 = vld [vmem:[%s2166] sm:$0xff]
          %v2168 = vrcp.pop %v2167
          %s2169 = scalar_lea.vmem [#allocation7], 16
          %v2170 = vld [vmem:[%s2169] sm:$0xff]
          %2172 = vset.pattern.permute.xlu0 0
          %2173 = vperm.xlu0 %2172, %v2168
          %v2174 = vpop.permute.xlu0 %2173
          %v2176 = vmul.f32 %v2170, %v2174
          %v2177 = vpack.c.bf16 %v2176, %v2176
          %s2178 = scalar_lea.vmem %s9, 4
          %v2179 = vld [vmem:[%s2178] sm:$0x3]
          %v2181 = vsel %vm1502, %v2177, 0
          %v2184 = vsel %vm2111, %v2179, 0
          %2186 = vmatpush.bf16.msra.mxu0 0
          %2187 = vmatpush.bf16.msra.mxu0 0
          %2188 = vmatpush.bf16.msra.mxu0 0
          %2189 = vmatpush.bf16.msra.mxu0 0
          %2190 = vmatpush.bf16.msra.mxu0 0
          %2191 = vmatpush.bf16.msra.mxu0 0
          %2192 = vmatpush.bf16.msra.mxu0 0
          %2193 = vmatpush.bf16.msra.mxu0 %v2184
          %2194 = vmatmul.bf16.gmra.mxu0 %v2181
          %v2195 = vpop.f32.mrf.mxu0
          %v2196 = vadd.f32 0.0, %v2195
          %v2197 = vpop.f32.mrf.mxu0
          %2198 = vdwg.mxu0
          %v2199 = vadd.f32 %v2165, %v2196
          %s2200 = scalar_lea.vmem [#allocation6], 24
          %v2201 = vld [vmem:[%s2200] sm:$0xff]
          %v2202 = vrcp.pop %v2201
          %s2203 = scalar_lea.vmem [#allocation7], 24
          %v2204 = vld [vmem:[%s2203] sm:$0xff]
          %2206 = vset.pattern.permute.xlu0 0
          %2207 = vperm.xlu0 %2206, %v2202
          %v2208 = vpop.permute.xlu0 %2207
          %v2210 = vmul.f32 %v2204, %v2208
          %v2211 = vpack.c.bf16 %v2210, %v2210
          %s2212 = scalar_lea.vmem %s9, 6
          %v2213 = vld [vmem:[%s2212] sm:$0x3]
          %v2215 = vsel %vm1502, %v2211, 0
          %v2218 = vsel %vm2111, %v2213, 0
          %2220 = vmatpush.bf16.msra.mxu0 0
          %2221 = vmatpush.bf16.msra.mxu0 0
          %2222 = vmatpush.bf16.msra.mxu0 0
          %2223 = vmatpush.bf16.msra.mxu0 0
          %2224 = vmatpush.bf16.msra.mxu0 0
          %2225 = vmatpush.bf16.msra.mxu0 0
          %2226 = vmatpush.bf16.msra.mxu0 0
          %2227 = vmatpush.bf16.msra.mxu0 %v2218
          %2228 = vmatmul.bf16.gmra.mxu0 %v2215
          %v2229 = vpop.f32.mrf.mxu0
          %v2230 = vadd.f32 0.0, %v2229
          %v2231 = vpop.f32.mrf.mxu0
          %2232 = vdwg.mxu0
          %v2233 = vadd.f32 %v2199, %v2230
          %s2234 = scalar_lea.vmem [#allocation6], 32
          %v2235 = vld [vmem:[%s2234] sm:$0xff]
          %v2236 = vrcp.pop %v2235
          %s2237 = scalar_lea.vmem [#allocation7], 32
          %v2238 = vld [vmem:[%s2237] sm:$0xff]
          %2240 = vset.pattern.permute.xlu0 0
          %2241 = vperm.xlu0 %2240, %v2236
          %v2242 = vpop.permute.xlu0 %2241
          %v2244 = vmul.f32 %v2238, %v2242
          %v2245 = vpack.c.bf16 %v2244, %v2244
          %s2246 = scalar_lea.vmem %s9, 8
          %v2247 = vld [vmem:[%s2246] sm:$0x3]
          %v2249 = vsel %vm1502, %v2245, 0
          %v2252 = vsel %vm2111, %v2247, 0
          %2254 = vmatpush.bf16.msra.mxu0 0
          %2255 = vmatpush.bf16.msra.mxu0 0
          %2256 = vmatpush.bf16.msra.mxu0 0
          %2257 = vmatpush.bf16.msra.mxu0 0
          %2258 = vmatpush.bf16.msra.mxu0 0
          %2259 = vmatpush.bf16.msra.mxu0 0
          %2260 = vmatpush.bf16.msra.mxu0 0
          %2261 = vmatpush.bf16.msra.mxu0 %v2252
          %2262 = vmatmul.bf16.gmra.mxu0 %v2249
          %v2263 = vpop.f32.mrf.mxu0
          %v2264 = vadd.f32 0.0, %v2263
          %v2265 = vpop.f32.mrf.mxu0
          %2266 = vdwg.mxu0
          %v2267 = vadd.f32 %v2233, %v2264
          %s2268 = scalar_lea.vmem [#allocation6], 40
          %v2269 = vld [vmem:[%s2268] sm:$0xff]
          %v2270 = vrcp.pop %v2269
          %s2271 = scalar_lea.vmem [#allocation7], 40
          %v2272 = vld [vmem:[%s2271] sm:$0xff]
          %2274 = vset.pattern.permute.xlu0 0
          %2275 = vperm.xlu0 %2274, %v2270
          %v2276 = vpop.permute.xlu0 %2275
          %v2278 = vmul.f32 %v2272, %v2276
          %v2279 = vpack.c.bf16 %v2278, %v2278
          %s2280 = scalar_lea.vmem %s9, 10
          %v2281 = vld [vmem:[%s2280] sm:$0x3]
          %v2283 = vsel %vm1502, %v2279, 0
          %v2286 = vsel %vm2111, %v2281, 0
          %2288 = vmatpush.bf16.msra.mxu0 0
          %2289 = vmatpush.bf16.msra.mxu0 0
          %2290 = vmatpush.bf16.msra.mxu0 0
          %2291 = vmatpush.bf16.msra.mxu0 0
          %2292 = vmatpush.bf16.msra.mxu0 0
          %2293 = vmatpush.bf16.msra.mxu0 0
          %2294 = vmatpush.bf16.msra.mxu0 0
          %2295 = vmatpush.bf16.msra.mxu0 %v2286
          %2296 = vmatmul.bf16.gmra.mxu0 %v2283
          %v2297 = vpop.f32.mrf.mxu0
          %v2298 = vadd.f32 0.0, %v2297
          %v2299 = vpop.f32.mrf.mxu0
          %2300 = vdwg.mxu0
          %v2301 = vadd.f32 %v2267, %v2298
          %s2302 = scalar_lea.vmem [#allocation6], 48
          %v2303 = vld [vmem:[%s2302] sm:$0xff]
          %v2304 = vrcp.pop %v2303
          %s2305 = scalar_lea.vmem [#allocation7], 48
          %v2306 = vld [vmem:[%s2305] sm:$0xff]
          %2308 = vset.pattern.permute.xlu0 0
          %2309 = vperm.xlu0 %2308, %v2304
          %v2310 = vpop.permute.xlu0 %2309
          %v2312 = vmul.f32 %v2306, %v2310
          %v2313 = vpack.c.bf16 %v2312, %v2312
          %s2314 = scalar_lea.vmem %s9, 12
          %v2315 = vld [vmem:[%s2314] sm:$0x3]
          %v2317 = vsel %vm1502, %v2313, 0
          %v2320 = vsel %vm2111, %v2315, 0
          %2322 = vmatpush.bf16.msra.mxu0 0
          %2323 = vmatpush.bf16.msra.mxu0 0
          %2324 = vmatpush.bf16.msra.mxu0 0
          %2325 = vmatpush.bf16.msra.mxu0 0
          %2326 = vmatpush.bf16.msra.mxu0 0
          %2327 = vmatpush.bf16.msra.mxu0 0
          %2328 = vmatpush.bf16.msra.mxu0 0
          %2329 = vmatpush.bf16.msra.mxu0 %v2320
          %2330 = vmatmul.bf16.gmra.mxu0 %v2317
          %v2331 = vpop.f32.mrf.mxu0
          %v2332 = vadd.f32 0.0, %v2331
          %v2333 = vpop.f32.mrf.mxu0
          %2334 = vdwg.mxu0
          %v2335 = vadd.f32 %v2301, %v2332
          %s2336 = scalar_lea.vmem [#allocation6], 56
          %v2337 = vld [vmem:[%s2336] sm:$0xff]
          %v2338 = vrcp.pop %v2337
          %s2339 = scalar_lea.vmem [#allocation7], 56
          %v2340 = vld [vmem:[%s2339] sm:$0xff]
          %2342 = vset.pattern.permute.xlu0 0
          %2343 = vperm.xlu0 %2342, %v2338
          %v2344 = vpop.permute.xlu0 %2343
          %v2346 = vmul.f32 %v2340, %v2344
          %v2347 = vpack.c.bf16 %v2346, %v2346
          %s2348 = scalar_lea.vmem %s9, 14
          %v2349 = vld [vmem:[%s2348] sm:$0x3]
          %v2351 = vsel %vm1502, %v2347, 0
          %v2354 = vsel %vm2111, %v2349, 0
          %2356 = vmatpush.bf16.msra.mxu0 0
          %2357 = vmatpush.bf16.msra.mxu0 0
          %2358 = vmatpush.bf16.msra.mxu0 0
          %2359 = vmatpush.bf16.msra.mxu0 0
          %2360 = vmatpush.bf16.msra.mxu0 0
          %2361 = vmatpush.bf16.msra.mxu0 0
          %2362 = vmatpush.bf16.msra.mxu0 0
          %2363 = vmatpush.bf16.msra.mxu0 %v2354
          %2364 = vmatmul.bf16.gmra.mxu0 %v2351
          %v2365 = vpop.f32.mrf.mxu0
          %v2366 = vadd.f32 0.0, %v2365
          %v2367 = vpop.f32.mrf.mxu0
          %2368 = vdwg.mxu0
          %v2369 = vadd.f32 %v2335, %v2366
          %v2370 = vld [vmem:[%s516] sm:$0xff]
          %v2371 = vadd.f32 %v2370, %v2369
          %v2372 = vsel %vm896, %v2371, 0.0
          %2373 = vadd.xlane.f32.xlu0 %v2372
          %v2374 = vpop.xlane.xlu0 %2373
          %v2375 = vrcp.pop 32.0
          %v2376 = vmul.f32 32.0, %v2375
          %v2377 = vsub.f32 1.0, %v2376
          %v2378 = vmul.f32 %v2375, %v2377
          %v2379 = vadd.f32 %v2375, %v2378
          %vm2380 = vweird.f32 %v2375
          %v2381 = vsel %vm2380, %v2375, %v2379
          %v2382 = vmul.f32 %v2374, %v2381
          %v2383 = vsub.f32 %v2371, %v2382
          %v2384 = vmul.f32 %v2383, %v2383
          %v2385 = vsel %vm896, %v2384, 0.0
          %2386 = vadd.xlane.f32.xlu0 %v2385
          %v2387 = vpop.xlane.xlu0 %2386
          %v2388 = vmul.f32 %v2387, %v2381
          %v2389 = vadd.f32 %v2388, 1e-05
          %v2390 = vrsqrt.pop %v2389
          %v2391 = vmul.f32 %v2390, %v2389
          %v2392 = vmul.f32 %v2391, %v2390
          %v2393 = vmul.f32 0.5, %v2392
          %v2394 = vsub.f32 1.5, %v2393
          %v2395 = vmul.f32 %v2390, %v2394
          %vm2396 = vweird.f32 %v2389
          %vm2397 = vweird.f32 %v2390
          %vm2398 = vmor %vm2396, %vm2397
          %v2399 = vsel %vm2398, %v2390, %v2395
          %v2400 = vmul.f32 %v2383, %v2399
          %v2402 = vperm.slane %v2095, 0
          %v2404 = vmul.f32 %v2400, %v2402
          %v2406 = vperm.slane %v2096, 0
          %v2408 = vadd.f32 %v2404, %v2406
          %2409 = vst.msk [vmem:[%s508] sm:$0xff] %vm896, %v2408
        $region80: #{tpu_custom_call.1} parent=71 // pred_fallthru
          _
        %s2410 = sand.u32 %s350, 1
        %s2411 = scalar_lea.sflag [#allocation9], %s2410
        %s2412 = sand.u32 %s350, 1
        %s2413 = smul.addr %s2412, 8
        %s2414 = scalar_lea.vmem [#allocation8], %s2413
        // Predicated region
        $region81: #{tpu_custom_call.1} parent=71 // pred_check
          %p2415 = pneg %p360
        $region82: #{tpu_custom_call.1} parent=71 // pred_check_branch
          %2417 = sbr.rel (%p2415) target = $region84
        $region83: #{tpu_custom_call.1} parent=71 // pred_region
          %2419 = vsyncadd %s2411, 0
          %s2420 = smul.addr %s32, 2
          %s2421 = sadd.s32 %s33, %s2420
          %s2422 = smul.addr %s2421, 8
          %s2423 = scalar_lea.hbm %s13, %s2422
          %s2425 = sshll.u32 %s2414, 4
          %s2426 = int_to_ptr.vmem [resolvable:$true] %s2425
          %s2427 = sshll.u32 %s2423, 4
          %s2428 = int_to_ptr.hbm [resolvable:$true] %s2427
          %2430 = dma.vmem_to_hbm [thread:$0]  %s2426, 128, %s2428, %s2411
        $region84: #{tpu_custom_call.1} parent=71 // pred_fallthru
          _
      $region72: #{tpu_custom_call.1} parent=5 // pred_fallthru
        _
      %p2431 = scmp.le.s32.totalorder 2, %s22
      // Predicated region
      $region85: #{tpu_custom_call.1} parent=5 // pred_check
        %p2432 = pneg %p2431
      $region86: #{tpu_custom_call.1} parent=5 // pred_check_branch
        %2434 = sbr.rel (%p2432) target = $region88
      $region87: #{tpu_custom_call.1} parent=5 // pred_region
        %s2435 = ssub.s32 %s22, 2
        // Predicated region
        $region89: #{tpu_custom_call.1} parent=87 // pred_check
          %p2436 = pneg %p366
        $region90: #{tpu_custom_call.1} parent=87 // pred_check_branch
          %2438 = sbr.rel (%p2436) target = $region92
        $region91: #{tpu_custom_call.1} parent=87 // pred_region
          %s2439 = sand.u32 %s351, 1
          %s2440 = scalar_lea.sflag [#allocation9], %s2439
          %s2441 = sand.u32 %s351, 1
          %s2442 = smul.addr %s2441, 8
          %s2443 = scalar_lea.vmem [#allocation8], %s2442
          %2445 = dma.done %s2440, 128
        $region92: #{tpu_custom_call.1} parent=87 // pred_fallthru
          _
      $region88: #{tpu_custom_call.1} parent=5 // pred_fallthru
        _
    $region6: #{tpu_custom_call.1} parent=1 // loop_footer
      %s26 = sadd.s32 1, %s22
    $region7: #{tpu_custom_call.1} parent=1 // loop_footer_branch
      %21 = sbr.rel target = $region3
    $region8: #{tpu_custom_call.1} parent=1 // loop_exit
      _
    %2446 = vsyncpa [#allocation9], 1
    %s2447 = scalar_lea.sflag [#allocation9], 1
    %2448 = vsyncpa %s2447, 1

</llo_original>
